<compile_context>
chip_gen: v7x
topology: tpu7x:2x2x1
jax: 0.10.0
libtpu: 0.0.40
codegen_flags: <defaults>
</compile_context>

<pallas_src>
import jax
import jax.numpy as jnp
from jax.experimental import pallas as pl
from jax.experimental.pallas import tpu as pltpu


# ---------------------------------------------------------------------------
# Fused unit_gcn kernel (one batch element per grid step)
# ---------------------------------------------------------------------------
def gcn_kernel(x_ref, w3k_ref, b3_ref, w1m_ref, b1_ref, w2m_ref, b2_ref,
               at_ref, w4_ref, b4_ref, gs_ref, gb_ref, out_ref):
    # Block shapes:
    #   x_ref   : (1, C*T, V)    input, row index = c*T + t, f32
    #   w3k_ref : (K, C*T, C*T)  kron(W3[k], I_T)            (compute dtype)
    #   b3_ref  : (K, C*T, 1)    conv3 bias repeated over T
    #   w1m_ref : (K*R, C*T)     conv1 weight with temporal mean folded in
    #   b1_ref  : (K*R, 1)
    #   w2m_ref : (K*R, C*T)     conv2 weight with temporal mean folded in
    #   b2_ref  : (K*R, 1)
    #   at_ref  : (K, V, V)      A[k]^T                      (compute dtype)
    #   w4_ref  : (K, R, C*T, 1) alpha * W4[k, :, r] repeated over T
    #   b4_ref  : (K, C*T, 1)    alpha * B4[k, :]    repeated over T
    #   gs_ref  : (C*T, 1)       BN(eval) scale repeated over T
    #   gb_ref  : (C*T, 1)       BN(eval) bias  repeated over T
    #   out_ref : (1, C*T, V)
    CT = x_ref.shape[1]
    V = x_ref.shape[2]
    K = at_ref.shape[0]
    R = w4_ref.shape[1]
    cdt = w3k_ref.dtype                     # MXU operand dtype (f32 or bf16)

    def mdot(a, b):                         # dot with f32 accumulation
        return jnp.dot(a.astype(cdt), b.astype(cdt),
                       preferred_element_type=jnp.float32)

    x = x_ref[0]                                            # (CT, V), f32

    # conv1 / conv2 fused with the temporal mean: one small dot each.
    h1 = mdot(w1m_ref[...], x) + b1_ref[...]                # (K*R, V)
    h2 = mdot(w2m_ref[...], x) + b2_ref[...]                # (K*R, V)

    # One-hot + lane-reduce to place h2 values on sublanes ((V,1) columns);
    # avoids an odd-shaped XLU transpose and the duplicated channels-last
    # input of the previous version.
    eye_vv = (jax.lax.broadcasted_iota(jnp.int32, (V, V), 0) ==
              jax.lax.broadcasted_iota(jnp.int32, (V, V), 1)
              ).astype(jnp.float32)                         # (V, V)

    acc = jnp.zeros((CT, V), jnp.float32)
    for k in range(K):
        # conv3 for all timesteps in a single MXU dot (kron(W3, I_T) weight).
        h3 = mdot(w3k_ref[k], x) + b3_ref[k]                # (CT, V), f32
        # fixed-topology term: sum_v A[k][u, v] * h3[(c,t), v]
        acc = acc + mdot(h3, at_ref[k])
        # conv4 bias term (alpha folded): alpha*b4[c] * sum_v h3[(c,t), v]
        acc = acc + b4_ref[k] * jnp.sum(h3, axis=1, keepdims=True)
        # dynamic relation terms; alpha*W4 channel scale folded into the lhs
        # operand so this stays a pure dot -> accumulate chain.
        for r in range(R):
            j = k * R + r
            h1_row = h1[j:j + 1, :]                         # (1, V), index u
            h2_col = jnp.sum(eye_vv * h2[j:j + 1, :],
                             axis=1, keepdims=True)         # (V, 1), index v
            rel_t = jnp.tanh(h1_row - h2_col)               # (V, V): [v, u]
            acc = acc + mdot(w4_ref[k, r] * h3, rel_t)

    # BN (eval) + identity residual + ReLU, single full-block store.
    y = acc * gs_ref[...] + gb_ref[...] + x
    out_ref[0] = jnp.maximum(y, 0.0)


# ---------------------------------------------------------------------------
# One-time parameter preparation (all folding/reshaping outside the kernel)
# ---------------------------------------------------------------------------
def prepare_params(P, T, compute_dtype=jnp.float32):
    A = P['A']
    K = A.shape[0]
    W1, B1 = P['W1'], P['B1']            # (K, R, C), (K, R)
    W2, B2 = P['W2'], P['B2']
    W3, B3 = P['W3'], P['B3']            # (K, Cout, C), (K, Cout)
    W4, B4 = P['W4'], P['B4']            # (K, Cout, R), (K, Cout)
    alpha = P['alpha']
    R, C = W1.shape[1], W1.shape[2]
    eye_t = jnp.eye(T, dtype=jnp.float32)

    prep = {
        'A': A.astype(jnp.float32),
        # conv3 expanded to act directly on the (C*T, V) layout
        'W3K': jnp.stack([jnp.kron(W3[k], eye_t) for k in range(K)]
                         ).astype(compute_dtype),                  # (K, Cout*T, C*T)
        'B3R': jnp.repeat(B3, T, axis=1)[:, :, None],              # (K, Cout*T, 1)
        # conv1 / conv2 with the temporal mean folded in
        'W1M': (jnp.repeat(W1.reshape(K * R, C), T, axis=1) / T
                ).astype(compute_dtype),                           # (K*R, C*T)
        'B1C': B1.reshape(K * R, 1),
        'W2M': (jnp.repeat(W2.reshape(K * R, C), T, axis=1) / T
                ).astype(compute_dtype),
        'B2C': B2.reshape(K * R, 1),
        'AT': jnp.transpose(A, (0, 2, 1)).astype(compute_dtype),   # (K, V, V)
        'W4R': (alpha * jnp.repeat(jnp.transpose(W4, (0, 2, 1)), T, axis=2)
                )[:, :, :, None],                                  # (K, R, Cout*T, 1)
        'B4R': (alpha * jnp.repeat(B4, T, axis=1))[:, :, None],    # (K, Cout*T, 1)
        'GSR': jnp.repeat(P['gscale'], T)[:, None],                # (Cout*T, 1)
        'GBR': jnp.repeat(P['gbias'], T)[:, None],                 # (Cout*T, 1)
    }
    return prep


def _const_spec(a):
    zeros = (0,) * a.ndim
    return pl.BlockSpec(a.shape, lambda n, _z=zeros: _z)


def unit_gcn_forward(x, prep):
    N, C, T, V = x.shape
    CT_in = C * T
    CT_out = prep['GSR'].shape[0]
    assert CT_in == CT_out, "identity residual requires in_channels == out_channels"

    x2 = x.reshape(N, CT_in, V).astype(jnp.float32)
    consts = (prep['W3K'], prep['B3R'], prep['W1M'], prep['B1C'],
              prep['W2M'], prep['B2C'], prep['AT'], prep['W4R'],
              prep['B4R'], prep['GSR'], prep['GBR'])

    out2 = pl.pallas_call(
        gcn_kernel,
        out_shape=jax.ShapeDtypeStruct((N, CT_out, V), jnp.float32),
        grid=(N,),
        in_specs=[pl.BlockSpec((1, CT_in, V), lambda n: (n, 0, 0))]
        + [_const_spec(a) for a in consts],
        out_specs=pl.BlockSpec((1, CT_out, V), lambda n: (n, 0, 0)),
        compiler_params=pltpu.CompilerParams(
            dimension_semantics=("parallel",)),
    )(x2, *consts)

    y = out2.reshape(N, C, T, V)
    return y, prep['A']


# ---------------------------------------------------------------------------
# Deterministic parameter initialization (shapes from the module __init__)
# ---------------------------------------------------------------------------
def init_params(key, C, Cout, K, V):
    R = 8 if C in (3, 9) else C // 8          # CTRGC rel_channels
    ki = iter(jax.random.split(key, 32))

    def nrm(shape, std=1.0):
        return std * jax.random.normal(next(ki), shape, jnp.float32)

    def bn_affine(c):                         # inference-mode BN -> scale/bias
        gamma = 1.0 + 0.02 * jax.random.normal(next(ki), (c,), jnp.float32)
        beta = 0.02 * jax.random.normal(next(ki), (c,), jnp.float32)
        mean = 0.1 * jax.random.normal(next(ki), (c,), jnp.float32)
        var = 1.0 + 0.1 * jnp.abs(jax.random.normal(next(ki), (c,), jnp.float32))
        s = gamma * jax.lax.rsqrt(var + 1e-5)
        return s, beta - mean * s

    P = {'alpha': 0.5}
    P['A'] = nrm((K, V, V), 0.2)
    P['W1'] = nrm((K, R, C), (2.0 / R) ** 0.5)
    P['B1'] = nrm((K, R), 0.05)
    P['W2'] = nrm((K, R, C), (2.0 / R) ** 0.5)
    P['B2'] = nrm((K, R), 0.05)
    P['W3'] = nrm((K, Cout, C), (2.0 / Cout) ** 0.5)
    P['B3'] = nrm((K, Cout), 0.05)
    P['W4'] = nrm((K, Cout, R), (2.0 / Cout) ** 0.5)
    P['B4'] = nrm((K, Cout), 0.05)
    P['gscale'], P['gbias'] = bn_affine(Cout)
    return P


# ---------------------------------------------------------------------------
# Pure-JAX reference (mirrors the PyTorch unit_gcn forward, eval-mode BN)
# ---------------------------------------------------------------------------
def ref_forward(x, P):
    N, C, T, V = x.shape
    A = P['A']
    K = A.shape[0]
    alpha = P['alpha']
    xm = x.mean(axis=2)                                        # (N, C, V)
    y = 0.0
    for k in range(K):
        x1 = jnp.einsum('rc,ncv->nrv', P['W1'][k], xm) + P['B1'][k][None, :, None]
        x2 = jnp.einsum('rc,ncv->nrv', P['W2'][k], xm) + P['B2'][k][None, :, None]
        x3 = jnp.einsum('oc,nctv->notv', P['W3'][k], x) + P['B3'][k][None, :, None, None]
        m = jnp.tanh(x1[:, :, :, None] - x2[:, :, None, :])    # (N, R, u, v)
        adj = (jnp.einsum('or,nruv->nouv', P['W4'][k], m)
               + P['B4'][k][None, :, None, None]) * alpha + A[k][None, None]
        y = y + jnp.einsum('nouv,notv->notu', adj, x3)
    y = y * P['gscale'][None, :, None, None] + P['gbias'][None, :, None, None]
    return jnp.maximum(y + x, 0.0)


if __name__ == "__main__":
    N, C, T, V, K = 2, 16, 8, 25, 3
    key = jax.random.PRNGKey(0)
    kx, kp = jax.random.split(key)
    x = jax.random.normal(kx, (N, C, T, V), dtype=jnp.float32)
    P = init_params(kp, C, C, K, V)

    # one-time parameter preparation; use compute_dtype=jnp.bfloat16 on
    # v6e/v7x (and relax the tolerance below to ~1.5e-2).
    prep = prepare_params(P, T, compute_dtype=jnp.float32)

    y, A_out = unit_gcn_forward(x, prep)
    y = jax.block_until_ready(y)
    assert y.shape == (N, C, T, V)
    assert A_out.shape == (K, V, V)

    ref = ref_forward(x, P)
    denom = float(jnp.max(jnp.abs(ref))) + 1e-6
    rel_err = float(jnp.max(jnp.abs(y - ref))) / denom
    if rel_err > 1e-3:
        raise AssertionError(f"Pallas output mismatch vs reference: rel_err={rel_err}")
    print("KERNEL_OK")
</pallas_src>

<mosaic_0001>
module attributes {stable_mosaic.version = 11 : i64} {
  func.func @gcn_kernel(%arg0: i32, %arg1: memref<1x128x25xf32, #tpu.memory_space<vmem>>, %arg2: memref<3x128x128xf32, #tpu.memory_space<vmem>>, %arg3: memref<3x128x1xf32, #tpu.memory_space<vmem>>, %arg4: memref<6x128xf32, #tpu.memory_space<vmem>>, %arg5: memref<6x1xf32, #tpu.memory_space<vmem>>, %arg6: memref<6x128xf32, #tpu.memory_space<vmem>>, %arg7: memref<6x1xf32, #tpu.memory_space<vmem>>, %arg8: memref<3x25x25xf32, #tpu.memory_space<vmem>>, %arg9: memref<3x2x128x1xf32, #tpu.memory_space<vmem>>, %arg10: memref<3x128x1xf32, #tpu.memory_space<vmem>>, %arg11: memref<128x1xf32, #tpu.memory_space<vmem>>, %arg12: memref<128x1xf32, #tpu.memory_space<vmem>>, %arg13: memref<1x128x25xf32, #tpu.memory_space<vmem>>) attributes {dimension_semantics = [#tpu.dimension_semantics<parallel>], iteration_bounds = array<i64: 2>, scalar_prefetch = 0 : i64, scratch_operands = 0 : i64, tpu.core_type = #tpu.core_type<tc>, window_params = [{transform_indices = @transform_0, window_bounds = array<i64: 1, 128, 25>}, {pipeline_mode = #tpu.pipeline_mode<synchronous>, transform_indices = @transform_1, window_bounds = array<i64: 3, 128, 128>}, {pipeline_mode = #tpu.pipeline_mode<synchronous>, transform_indices = @transform_2, window_bounds = array<i64: 3, 128, 1>}, {pipeline_mode = #tpu.pipeline_mode<synchronous>, transform_indices = @transform_3, window_bounds = array<i64: 6, 128>}, {pipeline_mode = #tpu.pipeline_mode<synchronous>, transform_indices = @transform_4, window_bounds = array<i64: 6, 1>}, {pipeline_mode = #tpu.pipeline_mode<synchronous>, transform_indices = @transform_5, window_bounds = array<i64: 6, 128>}, {pipeline_mode = #tpu.pipeline_mode<synchronous>, transform_indices = @transform_6, window_bounds = array<i64: 6, 1>}, {pipeline_mode = #tpu.pipeline_mode<synchronous>, transform_indices = @transform_7, window_bounds = array<i64: 3, 25, 25>}, {pipeline_mode = #tpu.pipeline_mode<synchronous>, transform_indices = @transform_8, window_bounds = array<i64: 3, 2, 128, 1>}, {pipeline_mode = #tpu.pipeline_mode<synchronous>, transform_indices = @transform_9, window_bounds = array<i64: 3, 128, 1>}, {pipeline_mode = #tpu.pipeline_mode<synchronous>, transform_indices = @transform_10, window_bounds = array<i64: 128, 1>}, {pipeline_mode = #tpu.pipeline_mode<synchronous>, transform_indices = @transform_11, window_bounds = array<i64: 128, 1>}, {transform_indices = @transform_12, window_bounds = array<i64: 1, 128, 25>}]} {
    %c0 = arith.constant 0 : index
    %c0_0 = arith.constant 0 : index
    %c0_1 = arith.constant 0 : index
    %0 = vector.load %arg1[%c0, %c0_0, %c0_1] : memref<1x128x25xf32, #tpu.memory_space<vmem>>, vector<1x128x25xf32>
    %1 = vector.shape_cast %0 : vector<1x128x25xf32> to vector<128x25xf32>
    %c0_2 = arith.constant 0 : index
    %c0_3 = arith.constant 0 : index
    %2 = vector.load %arg4[%c0_2, %c0_3] : memref<6x128xf32, #tpu.memory_space<vmem>>, vector<6x128xf32>
    %cst = arith.constant dense<0.000000e+00> : vector<6x25xf32>
    %3 = tpu.matmul %2, %1, %cst {dimension_numbers = #tpu.dot_dimension_numbers<[1], [0], [0], [1], [0, 0, 1, 1], [], []>} : vector<6x128xf32>, vector<128x25xf32>, vector<6x25xf32> -> vector<6x25xf32>
    %c0_4 = arith.constant 0 : index
    %c0_5 = arith.constant 0 : index
    %4 = vector.load %arg5[%c0_4, %c0_5] : memref<6x1xf32, #tpu.memory_space<vmem>>, vector<6x1xf32>
    %5 = vector.broadcast %4 : vector<6x1xf32> to vector<6x25xf32>
    %6 = arith.addf %3, %5 : vector<6x25xf32>
    %c0_6 = arith.constant 0 : index
    %c0_7 = arith.constant 0 : index
    %7 = vector.load %arg6[%c0_6, %c0_7] : memref<6x128xf32, #tpu.memory_space<vmem>>, vector<6x128xf32>
    %cst_8 = arith.constant dense<0.000000e+00> : vector<6x25xf32>
    %8 = tpu.matmul %7, %1, %cst_8 {dimension_numbers = #tpu.dot_dimension_numbers<[1], [0], [0], [1], [0, 0, 1, 1], [], []>} : vector<6x128xf32>, vector<128x25xf32>, vector<6x25xf32> -> vector<6x25xf32>
    %c0_9 = arith.constant 0 : index
    %c0_10 = arith.constant 0 : index
    %9 = vector.load %arg7[%c0_9, %c0_10] : memref<6x1xf32, #tpu.memory_space<vmem>>, vector<6x1xf32>
    %10 = vector.broadcast %9 : vector<6x1xf32> to vector<6x25xf32>
    %11 = arith.addf %8, %10 : vector<6x25xf32>
    %12 = tpu.iota {dimensions = array<i32: 0>} : vector<25x25xi32>
    %13 = tpu.iota {dimensions = array<i32: 1>} : vector<25x25xi32>
    %14 = arith.cmpi eq, %12, %13 : vector<25x25xi32>
    %15 = arith.extui %14 : vector<25x25xi1> to vector<25x25xi32>
    %16 = arith.sitofp %15 : vector<25x25xi32> to vector<25x25xf32>
    %cst_11 = arith.constant 0.000000e+00 : f32
    %17 = vector.broadcast %cst_11 : f32 to vector<128x25xf32>
    %c0_12 = arith.constant 0 : index
    %c0_13 = arith.constant 0 : index
    %c0_14 = arith.constant 0 : index
    %18 = vector.load %arg2[%c0_12, %c0_13, %c0_14] : memref<3x128x128xf32, #tpu.memory_space<vmem>>, vector<1x128x128xf32>
    %19 = vector.shape_cast %18 : vector<1x128x128xf32> to vector<128x128xf32>
    %cst_15 = arith.constant dense<0.000000e+00> : vector<128x25xf32>
    %20 = tpu.matmul %19, %1, %cst_15 {dimension_numbers = #tpu.dot_dimension_numbers<[1], [0], [0], [1], [0, 0, 1, 1], [], []>} : vector<128x128xf32>, vector<128x25xf32>, vector<128x25xf32> -> vector<128x25xf32>
    %c0_16 = arith.constant 0 : index
    %c0_17 = arith.constant 0 : index
    %c0_18 = arith.constant 0 : index
    %21 = vector.load %arg3[%c0_16, %c0_17, %c0_18] : memref<3x128x1xf32, #tpu.memory_space<vmem>>, vector<1x128x1xf32>
    %22 = vector.shape_cast %21 : vector<1x128x1xf32> to vector<128x1xf32>
    %23 = vector.broadcast %22 : vector<128x1xf32> to vector<128x25xf32>
    %24 = arith.addf %20, %23 : vector<128x25xf32>
    %c0_19 = arith.constant 0 : index
    %c0_20 = arith.constant 0 : index
    %c0_21 = arith.constant 0 : index
    %25 = vector.load %arg8[%c0_19, %c0_20, %c0_21] : memref<3x25x25xf32, #tpu.memory_space<vmem>>, vector<1x25x25xf32>
    %26 = vector.shape_cast %25 : vector<1x25x25xf32> to vector<25x25xf32>
    %cst_22 = arith.constant dense<0.000000e+00> : vector<128x25xf32>
    %27 = tpu.matmul %24, %26, %cst_22 {dimension_numbers = #tpu.dot_dimension_numbers<[1], [0], [0], [1], [0, 0, 1, 1], [], []>} : vector<128x25xf32>, vector<25x25xf32>, vector<128x25xf32> -> vector<128x25xf32>
    %28 = arith.addf %17, %27 : vector<128x25xf32>
    %c0_23 = arith.constant 0 : index
    %c0_24 = arith.constant 0 : index
    %c0_25 = arith.constant 0 : index
    %29 = vector.load %arg10[%c0_23, %c0_24, %c0_25] : memref<3x128x1xf32, #tpu.memory_space<vmem>>, vector<1x128x1xf32>
    %30 = vector.shape_cast %29 : vector<1x128x1xf32> to vector<128x1xf32>
    %cst_26 = arith.constant dense<0.000000e+00> : vector<128xf32>
    %31 = vector.multi_reduction <add>, %24, %cst_26 [1] : vector<128x25xf32> to vector<128xf32>
    %32 = vector.shape_cast %31 : vector<128xf32> to vector<128x1xf32>
    %33 = arith.mulf %30, %32 : vector<128x1xf32>
    %34 = vector.broadcast %33 : vector<128x1xf32> to vector<128x25xf32>
    %35 = arith.addf %28, %34 : vector<128x25xf32>
    %36 = vector.extract_strided_slice %6 {offsets = [0, 0], sizes = [1, 25], strides = [1, 1]} : vector<6x25xf32> to vector<1x25xf32>
    %37 = vector.extract_strided_slice %11 {offsets = [0, 0], sizes = [1, 25], strides = [1, 1]} : vector<6x25xf32> to vector<1x25xf32>
    %38 = vector.broadcast %37 : vector<1x25xf32> to vector<25x25xf32>
    %39 = arith.mulf %16, %38 : vector<25x25xf32>
    %cst_27 = arith.constant dense<0.000000e+00> : vector<25xf32>
    %40 = vector.multi_reduction <add>, %39, %cst_27 [1] : vector<25x25xf32> to vector<25xf32>
    %41 = vector.shape_cast %40 : vector<25xf32> to vector<25x1xf32>
    %42 = vector.broadcast %36 : vector<1x25xf32> to vector<25x25xf32>
    %43 = vector.broadcast %41 : vector<25x1xf32> to vector<25x25xf32>
    %44 = arith.subf %42, %43 : vector<25x25xf32>
    %45 = math.tanh %44 : vector<25x25xf32>
    %c0_28 = arith.constant 0 : index
    %c0_29 = arith.constant 0 : index
    %c0_30 = arith.constant 0 : index
    %c0_31 = arith.constant 0 : index
    %46 = vector.load %arg9[%c0_28, %c0_29, %c0_30, %c0_31] : memref<3x2x128x1xf32, #tpu.memory_space<vmem>>, vector<1x1x128x1xf32>
    %47 = vector.shape_cast %46 : vector<1x1x128x1xf32> to vector<128x1xf32>
    %48 = vector.broadcast %47 : vector<128x1xf32> to vector<128x25xf32>
    %49 = arith.mulf %48, %24 : vector<128x25xf32>
    %cst_32 = arith.constant dense<0.000000e+00> : vector<128x25xf32>
    %50 = tpu.matmul %49, %45, %cst_32 {dimension_numbers = #tpu.dot_dimension_numbers<[1], [0], [0], [1], [0, 0, 1, 1], [], []>} : vector<128x25xf32>, vector<25x25xf32>, vector<128x25xf32> -> vector<128x25xf32>
    %51 = arith.addf %35, %50 : vector<128x25xf32>
    %52 = vector.extract_strided_slice %6 {offsets = [1, 0], sizes = [1, 25], strides = [1, 1]} : vector<6x25xf32> to vector<1x25xf32>
    %53 = vector.extract_strided_slice %11 {offsets = [1, 0], sizes = [1, 25], strides = [1, 1]} : vector<6x25xf32> to vector<1x25xf32>
    %54 = vector.broadcast %53 : vector<1x25xf32> to vector<25x25xf32>
    %55 = arith.mulf %16, %54 : vector<25x25xf32>
    %cst_33 = arith.constant dense<0.000000e+00> : vector<25xf32>
    %56 = vector.multi_reduction <add>, %55, %cst_33 [1] : vector<25x25xf32> to vector<25xf32>
    %57 = vector.shape_cast %56 : vector<25xf32> to vector<25x1xf32>
    %58 = vector.broadcast %52 : vector<1x25xf32> to vector<25x25xf32>
    %59 = vector.broadcast %57 : vector<25x1xf32> to vector<25x25xf32>
    %60 = arith.subf %58, %59 : vector<25x25xf32>
    %61 = math.tanh %60 : vector<25x25xf32>
    %c0_34 = arith.constant 0 : index
    %c1 = arith.constant 1 : index
    %c0_35 = arith.constant 0 : index
    %c0_36 = arith.constant 0 : index
    %62 = vector.load %arg9[%c0_34, %c1, %c0_35, %c0_36] : memref<3x2x128x1xf32, #tpu.memory_space<vmem>>, vector<1x1x128x1xf32>
    %63 = vector.shape_cast %62 : vector<1x1x128x1xf32> to vector<128x1xf32>
    %64 = vector.broadcast %63 : vector<128x1xf32> to vector<128x25xf32>
    %65 = arith.mulf %64, %24 : vector<128x25xf32>
    %cst_37 = arith.constant dense<0.000000e+00> : vector<128x25xf32>
    %66 = tpu.matmul %65, %61, %cst_37 {dimension_numbers = #tpu.dot_dimension_numbers<[1], [0], [0], [1], [0, 0, 1, 1], [], []>} : vector<128x25xf32>, vector<25x25xf32>, vector<128x25xf32> -> vector<128x25xf32>
    %67 = arith.addf %51, %66 : vector<128x25xf32>
    %c1_38 = arith.constant 1 : index
    %c0_39 = arith.constant 0 : index
    %c0_40 = arith.constant 0 : index
    %68 = vector.load %arg2[%c1_38, %c0_39, %c0_40] : memref<3x128x128xf32, #tpu.memory_space<vmem>>, vector<1x128x128xf32>
    %69 = vector.shape_cast %68 : vector<1x128x128xf32> to vector<128x128xf32>
    %cst_41 = arith.constant dense<0.000000e+00> : vector<128x25xf32>
    %70 = tpu.matmul %69, %1, %cst_41 {dimension_numbers = #tpu.dot_dimension_numbers<[1], [0], [0], [1], [0, 0, 1, 1], [], []>} : vector<128x128xf32>, vector<128x25xf32>, vector<128x25xf32> -> vector<128x25xf32>
    %c1_42 = arith.constant 1 : index
    %c0_43 = arith.constant 0 : index
    %c0_44 = arith.constant 0 : index
    %71 = vector.load %arg3[%c1_42, %c0_43, %c0_44] : memref<3x128x1xf32, #tpu.memory_space<vmem>>, vector<1x128x1xf32>
    %72 = vector.shape_cast %71 : vector<1x128x1xf32> to vector<128x1xf32>
    %73 = vector.broadcast %72 : vector<128x1xf32> to vector<128x25xf32>
    %74 = arith.addf %70, %73 : vector<128x25xf32>
    %c1_45 = arith.constant 1 : index
    %c0_46 = arith.constant 0 : index
    %c0_47 = arith.constant 0 : index
    %75 = vector.load %arg8[%c1_45, %c0_46, %c0_47] : memref<3x25x25xf32, #tpu.memory_space<vmem>>, vector<1x25x25xf32>
    %76 = vector.shape_cast %75 : vector<1x25x25xf32> to vector<25x25xf32>
    %cst_48 = arith.constant dense<0.000000e+00> : vector<128x25xf32>
    %77 = tpu.matmul %74, %76, %cst_48 {dimension_numbers = #tpu.dot_dimension_numbers<[1], [0], [0], [1], [0, 0, 1, 1], [], []>} : vector<128x25xf32>, vector<25x25xf32>, vector<128x25xf32> -> vector<128x25xf32>
    %78 = arith.addf %67, %77 : vector<128x25xf32>
    %c1_49 = arith.constant 1 : index
    %c0_50 = arith.constant 0 : index
    %c0_51 = arith.constant 0 : index
    %79 = vector.load %arg10[%c1_49, %c0_50, %c0_51] : memref<3x128x1xf32, #tpu.memory_space<vmem>>, vector<1x128x1xf32>
    %80 = vector.shape_cast %79 : vector<1x128x1xf32> to vector<128x1xf32>
    %cst_52 = arith.constant dense<0.000000e+00> : vector<128xf32>
    %81 = vector.multi_reduction <add>, %74, %cst_52 [1] : vector<128x25xf32> to vector<128xf32>
    %82 = vector.shape_cast %81 : vector<128xf32> to vector<128x1xf32>
    %83 = arith.mulf %80, %82 : vector<128x1xf32>
    %84 = vector.broadcast %83 : vector<128x1xf32> to vector<128x25xf32>
    %85 = arith.addf %78, %84 : vector<128x25xf32>
    %86 = vector.extract_strided_slice %6 {offsets = [2, 0], sizes = [1, 25], strides = [1, 1]} : vector<6x25xf32> to vector<1x25xf32>
    %87 = vector.extract_strided_slice %11 {offsets = [2, 0], sizes = [1, 25], strides = [1, 1]} : vector<6x25xf32> to vector<1x25xf32>
    %88 = vector.broadcast %87 : vector<1x25xf32> to vector<25x25xf32>
    %89 = arith.mulf %16, %88 : vector<25x25xf32>
    %cst_53 = arith.constant dense<0.000000e+00> : vector<25xf32>
    %90 = vector.multi_reduction <add>, %89, %cst_53 [1] : vector<25x25xf32> to vector<25xf32>
    %91 = vector.shape_cast %90 : vector<25xf32> to vector<25x1xf32>
    %92 = vector.broadcast %86 : vector<1x25xf32> to vector<25x25xf32>
    %93 = vector.broadcast %91 : vector<25x1xf32> to vector<25x25xf32>
    %94 = arith.subf %92, %93 : vector<25x25xf32>
    %95 = math.tanh %94 : vector<25x25xf32>
    %c1_54 = arith.constant 1 : index
    %c0_55 = arith.constant 0 : index
    %c0_56 = arith.constant 0 : index
    %c0_57 = arith.constant 0 : index
    %96 = vector.load %arg9[%c1_54, %c0_55, %c0_56, %c0_57] : memref<3x2x128x1xf32, #tpu.memory_space<vmem>>, vector<1x1x128x1xf32>
    %97 = vector.shape_cast %96 : vector<1x1x128x1xf32> to vector<128x1xf32>
    %98 = vector.broadcast %97 : vector<128x1xf32> to vector<128x25xf32>
    %99 = arith.mulf %98, %74 : vector<128x25xf32>
    %cst_58 = arith.constant dense<0.000000e+00> : vector<128x25xf32>
    %100 = tpu.matmul %99, %95, %cst_58 {dimension_numbers = #tpu.dot_dimension_numbers<[1], [0], [0], [1], [0, 0, 1, 1], [], []>} : vector<128x25xf32>, vector<25x25xf32>, vector<128x25xf32> -> vector<128x25xf32>
    %101 = arith.addf %85, %100 : vector<128x25xf32>
    %102 = vector.extract_strided_slice %6 {offsets = [3, 0], sizes = [1, 25], strides = [1, 1]} : vector<6x25xf32> to vector<1x25xf32>
    %103 = vector.extract_strided_slice %11 {offsets = [3, 0], sizes = [1, 25], strides = [1, 1]} : vector<6x25xf32> to vector<1x25xf32>
    %104 = vector.broadcast %103 : vector<1x25xf32> to vector<25x25xf32>
    %105 = arith.mulf %16, %104 : vector<25x25xf32>
    %cst_59 = arith.constant dense<0.000000e+00> : vector<25xf32>
    %106 = vector.multi_reduction <add>, %105, %cst_59 [1] : vector<25x25xf32> to vector<25xf32>
    %107 = vector.shape_cast %106 : vector<25xf32> to vector<25x1xf32>
    %108 = vector.broadcast %102 : vector<1x25xf32> to vector<25x25xf32>
    %109 = vector.broadcast %107 : vector<25x1xf32> to vector<25x25xf32>
    %110 = arith.subf %108, %109 : vector<25x25xf32>
    %111 = math.tanh %110 : vector<25x25xf32>
    %c1_60 = arith.constant 1 : index
    %c1_61 = arith.constant 1 : index
    %c0_62 = arith.constant 0 : index
    %c0_63 = arith.constant 0 : index
    %112 = vector.load %arg9[%c1_60, %c1_61, %c0_62, %c0_63] : memref<3x2x128x1xf32, #tpu.memory_space<vmem>>, vector<1x1x128x1xf32>
    %113 = vector.shape_cast %112 : vector<1x1x128x1xf32> to vector<128x1xf32>
    %114 = vector.broadcast %113 : vector<128x1xf32> to vector<128x25xf32>
    %115 = arith.mulf %114, %74 : vector<128x25xf32>
    %cst_64 = arith.constant dense<0.000000e+00> : vector<128x25xf32>
    %116 = tpu.matmul %115, %111, %cst_64 {dimension_numbers = #tpu.dot_dimension_numbers<[1], [0], [0], [1], [0, 0, 1, 1], [], []>} : vector<128x25xf32>, vector<25x25xf32>, vector<128x25xf32> -> vector<128x25xf32>
    %117 = arith.addf %101, %116 : vector<128x25xf32>
    %c2 = arith.constant 2 : index
    %c0_65 = arith.constant 0 : index
    %c0_66 = arith.constant 0 : index
    %118 = vector.load %arg2[%c2, %c0_65, %c0_66] : memref<3x128x128xf32, #tpu.memory_space<vmem>>, vector<1x128x128xf32>
    %119 = vector.shape_cast %118 : vector<1x128x128xf32> to vector<128x128xf32>
    %cst_67 = arith.constant dense<0.000000e+00> : vector<128x25xf32>
    %120 = tpu.matmul %119, %1, %cst_67 {dimension_numbers = #tpu.dot_dimension_numbers<[1], [0], [0], [1], [0, 0, 1, 1], [], []>} : vector<128x128xf32>, vector<128x25xf32>, vector<128x25xf32> -> vector<128x25xf32>
    %c2_68 = arith.constant 2 : index
    %c0_69 = arith.constant 0 : index
    %c0_70 = arith.constant 0 : index
    %121 = vector.load %arg3[%c2_68, %c0_69, %c0_70] : memref<3x128x1xf32, #tpu.memory_space<vmem>>, vector<1x128x1xf32>
    %122 = vector.shape_cast %121 : vector<1x128x1xf32> to vector<128x1xf32>
    %123 = vector.broadcast %122 : vector<128x1xf32> to vector<128x25xf32>
    %124 = arith.addf %120, %123 : vector<128x25xf32>
    %c2_71 = arith.constant 2 : index
    %c0_72 = arith.constant 0 : index
    %c0_73 = arith.constant 0 : index
    %125 = vector.load %arg8[%c2_71, %c0_72, %c0_73] : memref<3x25x25xf32, #tpu.memory_space<vmem>>, vector<1x25x25xf32>
    %126 = vector.shape_cast %125 : vector<1x25x25xf32> to vector<25x25xf32>
    %cst_74 = arith.constant dense<0.000000e+00> : vector<128x25xf32>
    %127 = tpu.matmul %124, %126, %cst_74 {dimension_numbers = #tpu.dot_dimension_numbers<[1], [0], [0], [1], [0, 0, 1, 1], [], []>} : vector<128x25xf32>, vector<25x25xf32>, vector<128x25xf32> -> vector<128x25xf32>
    %128 = arith.addf %117, %127 : vector<128x25xf32>
    %c2_75 = arith.constant 2 : index
    %c0_76 = arith.constant 0 : index
    %c0_77 = arith.constant 0 : index
    %129 = vector.load %arg10[%c2_75, %c0_76, %c0_77] : memref<3x128x1xf32, #tpu.memory_space<vmem>>, vector<1x128x1xf32>
    %130 = vector.shape_cast %129 : vector<1x128x1xf32> to vector<128x1xf32>
    %cst_78 = arith.constant dense<0.000000e+00> : vector<128xf32>
    %131 = vector.multi_reduction <add>, %124, %cst_78 [1] : vector<128x25xf32> to vector<128xf32>
    %132 = vector.shape_cast %131 : vector<128xf32> to vector<128x1xf32>
    %133 = arith.mulf %130, %132 : vector<128x1xf32>
    %134 = vector.broadcast %133 : vector<128x1xf32> to vector<128x25xf32>
    %135 = arith.addf %128, %134 : vector<128x25xf32>
    %136 = vector.extract_strided_slice %6 {offsets = [4, 0], sizes = [1, 25], strides = [1, 1]} : vector<6x25xf32> to vector<1x25xf32>
    %137 = vector.extract_strided_slice %11 {offsets = [4, 0], sizes = [1, 25], strides = [1, 1]} : vector<6x25xf32> to vector<1x25xf32>
    %138 = vector.broadcast %137 : vector<1x25xf32> to vector<25x25xf32>
    %139 = arith.mulf %16, %138 : vector<25x25xf32>
    %cst_79 = arith.constant dense<0.000000e+00> : vector<25xf32>
    %140 = vector.multi_reduction <add>, %139, %cst_79 [1] : vector<25x25xf32> to vector<25xf32>
    %141 = vector.shape_cast %140 : vector<25xf32> to vector<25x1xf32>
    %142 = vector.broadcast %136 : vector<1x25xf32> to vector<25x25xf32>
    %143 = vector.broadcast %141 : vector<25x1xf32> to vector<25x25xf32>
    %144 = arith.subf %142, %143 : vector<25x25xf32>
    %145 = math.tanh %144 : vector<25x25xf32>
    %c2_80 = arith.constant 2 : index
    %c0_81 = arith.constant 0 : index
    %c0_82 = arith.constant 0 : index
    %c0_83 = arith.constant 0 : index
    %146 = vector.load %arg9[%c2_80, %c0_81, %c0_82, %c0_83] : memref<3x2x128x1xf32, #tpu.memory_space<vmem>>, vector<1x1x128x1xf32>
    %147 = vector.shape_cast %146 : vector<1x1x128x1xf32> to vector<128x1xf32>
    %148 = vector.broadcast %147 : vector<128x1xf32> to vector<128x25xf32>
    %149 = arith.mulf %148, %124 : vector<128x25xf32>
    %cst_84 = arith.constant dense<0.000000e+00> : vector<128x25xf32>
    %150 = tpu.matmul %149, %145, %cst_84 {dimension_numbers = #tpu.dot_dimension_numbers<[1], [0], [0], [1], [0, 0, 1, 1], [], []>} : vector<128x25xf32>, vector<25x25xf32>, vector<128x25xf32> -> vector<128x25xf32>
    %151 = arith.addf %135, %150 : vector<128x25xf32>
    %152 = vector.extract_strided_slice %6 {offsets = [5, 0], sizes = [1, 25], strides = [1, 1]} : vector<6x25xf32> to vector<1x25xf32>
    %153 = vector.extract_strided_slice %11 {offsets = [5, 0], sizes = [1, 25], strides = [1, 1]} : vector<6x25xf32> to vector<1x25xf32>
    %154 = vector.broadcast %153 : vector<1x25xf32> to vector<25x25xf32>
    %155 = arith.mulf %16, %154 : vector<25x25xf32>
    %cst_85 = arith.constant dense<0.000000e+00> : vector<25xf32>
    %156 = vector.multi_reduction <add>, %155, %cst_85 [1] : vector<25x25xf32> to vector<25xf32>
    %157 = vector.shape_cast %156 : vector<25xf32> to vector<25x1xf32>
    %158 = vector.broadcast %152 : vector<1x25xf32> to vector<25x25xf32>
    %159 = vector.broadcast %157 : vector<25x1xf32> to vector<25x25xf32>
    %160 = arith.subf %158, %159 : vector<25x25xf32>
    %161 = math.tanh %160 : vector<25x25xf32>
    %c2_86 = arith.constant 2 : index
    %c1_87 = arith.constant 1 : index
    %c0_88 = arith.constant 0 : index
    %c0_89 = arith.constant 0 : index
    %162 = vector.load %arg9[%c2_86, %c1_87, %c0_88, %c0_89] : memref<3x2x128x1xf32, #tpu.memory_space<vmem>>, vector<1x1x128x1xf32>
    %163 = vector.shape_cast %162 : vector<1x1x128x1xf32> to vector<128x1xf32>
    %164 = vector.broadcast %163 : vector<128x1xf32> to vector<128x25xf32>
    %165 = arith.mulf %164, %124 : vector<128x25xf32>
    %cst_90 = arith.constant dense<0.000000e+00> : vector<128x25xf32>
    %166 = tpu.matmul %165, %161, %cst_90 {dimension_numbers = #tpu.dot_dimension_numbers<[1], [0], [0], [1], [0, 0, 1, 1], [], []>} : vector<128x25xf32>, vector<25x25xf32>, vector<128x25xf32> -> vector<128x25xf32>
    %167 = arith.addf %151, %166 : vector<128x25xf32>
    %c0_91 = arith.constant 0 : index
    %c0_92 = arith.constant 0 : index
    %168 = vector.load %arg11[%c0_91, %c0_92] : memref<128x1xf32, #tpu.memory_space<vmem>>, vector<128x1xf32>
    %169 = vector.broadcast %168 : vector<128x1xf32> to vector<128x25xf32>
    %170 = arith.mulf %167, %169 : vector<128x25xf32>
    %c0_93 = arith.constant 0 : index
    %c0_94 = arith.constant 0 : index
    %171 = vector.load %arg12[%c0_93, %c0_94] : memref<128x1xf32, #tpu.memory_space<vmem>>, vector<128x1xf32>
    %172 = vector.broadcast %171 : vector<128x1xf32> to vector<128x25xf32>
    %173 = arith.addf %170, %172 : vector<128x25xf32>
    %174 = arith.addf %173, %1 : vector<128x25xf32>
    %cst_95 = arith.constant 0.000000e+00 : f32
    %175 = vector.broadcast %cst_95 : f32 to vector<128x25xf32>
    %176 = arith.maximumf %174, %175 : vector<128x25xf32>
    %c0_96 = arith.constant 0 : index
    %c0_97 = arith.constant 0 : index
    %c0_98 = arith.constant 0 : index
    %177 = vector.load %arg13[%c0_96, %c0_97, %c0_98] : memref<1x128x25xf32, #tpu.memory_space<vmem>>, vector<1x128x25xf32>
    %178 = vector.shape_cast %177 : vector<1x128x25xf32> to vector<128x25xf32>
    %179 = vector.shape_cast %176 : vector<128x25xf32> to vector<1x128x25xf32>
    tpu.vector_store %arg13[%c0_96, %c0_97, %c0_98], %179 {strides = array<i32>} : memref<1x128x25xf32, #tpu.memory_space<vmem>>, vector<1x128x25xf32>,
    return
  }
  func.func @transform_0(%arg0: i32) -> (i32, i32, i32) {
    %c0_i32 = arith.constant 0 : i32
    %c0_i32_0 = arith.constant 0 : i32
    %c0_i32_1 = arith.constant 0 : i32
    return %arg0, %c0_i32, %c0_i32_0 : i32, i32, i32
  }
  func.func @transform_1(%arg0: i32) -> (i32, i32, i32) {
    %c0_i32 = arith.constant 0 : i32
    %c0_i32_0 = arith.constant 0 : i32
    %c0_i32_1 = arith.constant 0 : i32
    %c0_i32_2 = arith.constant 0 : i32
    return %c0_i32, %c0_i32_0, %c0_i32_1 : i32, i32, i32
  }
  func.func @transform_2(%arg0: i32) -> (i32, i32, i32) {
    %c0_i32 = arith.constant 0 : i32
    %c0_i32_0 = arith.constant 0 : i32
    %c0_i32_1 = arith.constant 0 : i32
    %c0_i32_2 = arith.constant 0 : i32
    return %c0_i32, %c0_i32_0, %c0_i32_1 : i32, i32, i32
  }
  func.func @transform_3(%arg0: i32) -> (i32, i32) {
    %c0_i32 = arith.constant 0 : i32
    %c0_i32_0 = arith.constant 0 : i32
    %c0_i32_1 = arith.constant 0 : i32
    return %c0_i32, %c0_i32_0 : i32, i32
  }
  func.func @transform_4(%arg0: i32) -> (i32, i32) {
    %c0_i32 = arith.constant 0 : i32
    %c0_i32_0 = arith.constant 0 : i32
    %c0_i32_1 = arith.constant 0 : i32
    return %c0_i32, %c0_i32_0 : i32, i32
  }
  func.func @transform_5(%arg0: i32) -> (i32, i32) {
    %c0_i32 = arith.constant 0 : i32
    %c0_i32_0 = arith.constant 0 : i32
    %c0_i32_1 = arith.constant 0 : i32
    return %c0_i32, %c0_i32_0 : i32, i32
  }
  func.func @transform_6(%arg0: i32) -> (i32, i32) {
    %c0_i32 = arith.constant 0 : i32
    %c0_i32_0 = arith.constant 0 : i32
    %c0_i32_1 = arith.constant 0 : i32
    return %c0_i32, %c0_i32_0 : i32, i32
  }
  func.func @transform_7(%arg0: i32) -> (i32, i32, i32) {
    %c0_i32 = arith.constant 0 : i32
    %c0_i32_0 = arith.constant 0 : i32
    %c0_i32_1 = arith.constant 0 : i32
    %c0_i32_2 = arith.constant 0 : i32
    return %c0_i32, %c0_i32_0, %c0_i32_1 : i32, i32, i32
  }
  func.func @transform_8(%arg0: i32) -> (i32, i32, i32, i32) {
    %c0_i32 = arith.constant 0 : i32
    %c0_i32_0 = arith.constant 0 : i32
    %c0_i32_1 = arith.constant 0 : i32
    %c0_i32_2 = arith.constant 0 : i32
    %c0_i32_3 = arith.constant 0 : i32
    return %c0_i32, %c0_i32_0, %c0_i32_1, %c0_i32_2 : i32, i32, i32, i32
  }
  func.func @transform_9(%arg0: i32) -> (i32, i32, i32) {
    %c0_i32 = arith.constant 0 : i32
    %c0_i32_0 = arith.constant 0 : i32
    %c0_i32_1 = arith.constant 0 : i32
    %c0_i32_2 = arith.constant 0 : i32
    return %c0_i32, %c0_i32_0, %c0_i32_1 : i32, i32, i32
  }
  func.func @transform_10(%arg0: i32) -> (i32, i32) {
    %c0_i32 = arith.constant 0 : i32
    %c0_i32_0 = arith.constant 0 : i32
    %c0_i32_1 = arith.constant 0 : i32
    return %c0_i32, %c0_i32_0 : i32, i32
  }
  func.func @transform_11(%arg0: i32) -> (i32, i32) {
    %c0_i32 = arith.constant 0 : i32
    %c0_i32_0 = arith.constant 0 : i32
    %c0_i32_1 = arith.constant 0 : i32
    return %c0_i32, %c0_i32_0 : i32, i32
  }
  func.func @transform_12(%arg0: i32) -> (i32, i32, i32) {
    %c0_i32 = arith.constant 0 : i32
    %c0_i32_0 = arith.constant 0 : i32
    %c0_i32_1 = arith.constant 0 : i32
    return %arg0, %c0_i32, %c0_i32_0 : i32, i32, i32
  }
}

</mosaic_0001>

<llo_original>
// kernel: tpu_custom_call.1
$region0: #{tpu_custom_call.1}
  #allocation0 [shape = 'u32[]', space=smem, size = 0x4, offset = 0x4, fixed_abs, tag = 'smem constant byte address 0x4 - core index']
  #allocation1 [shape = 'u32[144,128]{1,0:T(1,128)}', space=vmem, size = 0x12000, scoped, tag = 'internal scratch']
  %s0 = inlined_call_operand.vmem [shape: f32[2,128,25], index: 0, kind: input, shape index: {}]
  %s1 = inlined_call_operand.vmem [shape: f32[3,128,128], index: 1, kind: input, shape index: {}]
  %s2 = inlined_call_operand.vmem [shape: f32[3,128,1], index: 2, kind: input, shape index: {}]
  %s3 = inlined_call_operand.vmem [shape: f32[6,128], index: 3, kind: input, shape index: {}]
  %s4 = inlined_call_operand.vmem [shape: f32[6,1], index: 4, kind: input, shape index: {}]
  %s5 = inlined_call_operand.vmem [shape: f32[6,128], index: 5, kind: input, shape index: {}]
  %s6 = inlined_call_operand.vmem [shape: f32[6,1], index: 6, kind: input, shape index: {}]
  %s7 = inlined_call_operand.vmem [shape: f32[3,25,25], index: 7, kind: input, shape index: {}]
  %s8 = inlined_call_operand.vmem [shape: f32[3,2,128,1], index: 8, kind: input, shape index: {}]
  %s9 = inlined_call_operand.vmem [shape: f32[3,128,1], index: 9, kind: input, shape index: {}]
  %s10 = inlined_call_operand.vmem [shape: f32[128,1], index: 10, kind: input, shape index: {}]
  %s11 = inlined_call_operand.vmem [shape: f32[128,1], index: 11, kind: input, shape index: {}]
  %s12 = inlined_call_operand.vmem [shape: f32[2,128,25], index: 12, kind: output, shape index: {}]
  %s13 = sld [smem:[#allocation0]]
  $region81: #{tpu_custom_call.1} parent=0
    _
  %s15 = ssub.s32 1, %s13
  %s16 = scalar_select 0, %s15, %s13
  loop: start=0, step=1, limit=4
  $region2: #{tpu_custom_call.1} parent=0 // loop_pre_header
    _
  $region3: #{tpu_custom_call.1} parent=0 // loop_header
    %s18 = sphi 0, %s22
    %p19 = scmp.ge.s32.totalorder %s18, 4
    %s28 = sphi 0, %s30
    %s31 = sphi 0, %s28
    %s32 = sphi 0, %s31
    %s48 = sphi 0, %s32
    %s52 = sphi 0, %s52
    %s54 = sphi 0, %s52
    %s55 = sphi 0, %s54
    %s69 = sphi 0, %s55
    %s73 = sphi 0, %s73
    %s75 = sphi 0, %s73
    %s76 = sphi 0, %s75
    %s90 = sphi 0, %s76
    %s94 = sphi 0, %s94
    %s96 = sphi 0, %s94
    %s97 = sphi 0, %s96
    %s111 = sphi 0, %s97
    %s115 = sphi 0, %s115
    %s117 = sphi 0, %s115
    %s118 = sphi 0, %s117
    %s132 = sphi 0, %s118
    %s136 = sphi 0, %s136
    %s138 = sphi 0, %s136
    %s139 = sphi 0, %s138
    %s153 = sphi 0, %s139
    %s157 = sphi 0, %s157
    %s159 = sphi 0, %s157
    %s160 = sphi 0, %s159
    %s174 = sphi 0, %s160
    %s178 = sphi 0, %s178
    %s180 = sphi 0, %s178
    %s181 = sphi 0, %s180
    %s195 = sphi 0, %s181
    %s199 = sphi 0, %s199
    %s201 = sphi 0, %s199
    %s202 = sphi 0, %s201
    %s216 = sphi 0, %s202
    %s220 = sphi 0, %s220
    %s222 = sphi 0, %s220
    %s223 = sphi 0, %s222
    %s237 = sphi 0, %s223
    %s241 = sphi 0, %s241
    %s243 = sphi 0, %s241
    %s244 = sphi 0, %s243
    %s258 = sphi 0, %s244
    %s262 = sphi 0, %s262
    %s264 = sphi 0, %s262
    %s265 = sphi 0, %s264
    %s279 = sphi 0, %s265
    %s285 = sphi 0, %s287
    %s288 = sphi 0, %s285
    %s289 = sphi 0, %s288
    %s305 = sphi 0, %s289
  $region4: #{tpu_custom_call.1} parent=0 // loop_header_branch
    %21 = sbr.rel (%p19) target = $region8
  $region5: #{tpu_custom_call.1} parent=0 // loop_body
    %s23 = ssub.s32 %s18, 1
    %s24 = ssub.s32 %s18, 2
    %s25 = sadd.s32 %s18, 1
    %s26 = ssub.s32 %s18, %s25
    %p27 = scmp.eq.s32.totalorder %s26, 0
    %s29 = sadd.s32 %s28, 1
    %s30 = scalar_select %p27, %s28, %s29
    %p33 = pneg %p27
    %p34 = scmp.eq.s32.totalorder %s18, 1
    %p35 = por %p33, %p34
    %p36 = scmp.ne.s32.totalorder %s28, %s31
    %p37 = scmp.eq.s32.totalorder %s18, 0
    %p38 = por %p36, %p37
    %p39 = scmp.ne.s32.totalorder %s28, %s31
    %p40 = scmp.eq.s32.totalorder %s23, 1
    %p41 = por %p39, %p40
    %p42 = scmp.ne.s32.totalorder %s31, %s32
    %p43 = scmp.eq.s32.totalorder %s23, 0
    %p44 = por %p42, %p43
    %p45 = scmp.ne.s32.totalorder %s31, %s32
    %p46 = scmp.eq.s32.totalorder %s24, 1
    %p47 = por %p45, %p46
    %p49 = scmp.ne.s32.totalorder %s32, %s48
    %p50 = scmp.eq.s32.totalorder %s24, 0
    %p51 = por %p49, %p50
    %s53 = sadd.s32 %s52, 1
    %p56 = scmp.eq.s32.totalorder %s18, 1
    %p57 = scmp.ne.s32.totalorder %s52, %s54
    %p58 = scmp.eq.s32.totalorder %s18, 0
    %p59 = por %p57, %p58
    %p60 = scmp.ne.s32.totalorder %s52, %s54
    %p61 = scmp.eq.s32.totalorder %s23, 1
    %p62 = por %p60, %p61
    %p63 = scmp.ne.s32.totalorder %s54, %s55
    %p64 = scmp.eq.s32.totalorder %s23, 0
    %p65 = por %p63, %p64
    %p66 = scmp.ne.s32.totalorder %s54, %s55
    %p67 = scmp.eq.s32.totalorder %s24, 1
    %p68 = por %p66, %p67
    %p70 = scmp.ne.s32.totalorder %s55, %s69
    %p71 = scmp.eq.s32.totalorder %s24, 0
    %p72 = por %p70, %p71
    %s74 = sadd.s32 %s73, 1
    %p77 = scmp.eq.s32.totalorder %s18, 1
    %p78 = scmp.ne.s32.totalorder %s73, %s75
    %p79 = scmp.eq.s32.totalorder %s18, 0
    %p80 = por %p78, %p79
    %p81 = scmp.ne.s32.totalorder %s73, %s75
    %p82 = scmp.eq.s32.totalorder %s23, 1
    %p83 = por %p81, %p82
    %p84 = scmp.ne.s32.totalorder %s75, %s76
    %p85 = scmp.eq.s32.totalorder %s23, 0
    %p86 = por %p84, %p85
    %p87 = scmp.ne.s32.totalorder %s75, %s76
    %p88 = scmp.eq.s32.totalorder %s24, 1
    %p89 = por %p87, %p88
    %p91 = scmp.ne.s32.totalorder %s76, %s90
    %p92 = scmp.eq.s32.totalorder %s24, 0
    %p93 = por %p91, %p92
    %s95 = sadd.s32 %s94, 1
    %p98 = scmp.eq.s32.totalorder %s18, 1
    %p99 = scmp.ne.s32.totalorder %s94, %s96
    %p100 = scmp.eq.s32.totalorder %s18, 0
    %p101 = por %p99, %p100
    %p102 = scmp.ne.s32.totalorder %s94, %s96
    %p103 = scmp.eq.s32.totalorder %s23, 1
    %p104 = por %p102, %p103
    %p105 = scmp.ne.s32.totalorder %s96, %s97
    %p106 = scmp.eq.s32.totalorder %s23, 0
    %p107 = por %p105, %p106
    %p108 = scmp.ne.s32.totalorder %s96, %s97
    %p109 = scmp.eq.s32.totalorder %s24, 1
    %p110 = por %p108, %p109
    %p112 = scmp.ne.s32.totalorder %s97, %s111
    %p113 = scmp.eq.s32.totalorder %s24, 0
    %p114 = por %p112, %p113
    %s116 = sadd.s32 %s115, 1
    %p119 = scmp.eq.s32.totalorder %s18, 1
    %p120 = scmp.ne.s32.totalorder %s115, %s117
    %p121 = scmp.eq.s32.totalorder %s18, 0
    %p122 = por %p120, %p121
    %p123 = scmp.ne.s32.totalorder %s115, %s117
    %p124 = scmp.eq.s32.totalorder %s23, 1
    %p125 = por %p123, %p124
    %p126 = scmp.ne.s32.totalorder %s117, %s118
    %p127 = scmp.eq.s32.totalorder %s23, 0
    %p128 = por %p126, %p127
    %p129 = scmp.ne.s32.totalorder %s117, %s118
    %p130 = scmp.eq.s32.totalorder %s24, 1
    %p131 = por %p129, %p130
    %p133 = scmp.ne.s32.totalorder %s118, %s132
    %p134 = scmp.eq.s32.totalorder %s24, 0
    %p135 = por %p133, %p134
    %s137 = sadd.s32 %s136, 1
    %p140 = scmp.eq.s32.totalorder %s18, 1
    %p141 = scmp.ne.s32.totalorder %s136, %s138
    %p142 = scmp.eq.s32.totalorder %s18, 0
    %p143 = por %p141, %p142
    %p144 = scmp.ne.s32.totalorder %s136, %s138
    %p145 = scmp.eq.s32.totalorder %s23, 1
    %p146 = por %p144, %p145
    %p147 = scmp.ne.s32.totalorder %s138, %s139
    %p148 = scmp.eq.s32.totalorder %s23, 0
    %p149 = por %p147, %p148
    %p150 = scmp.ne.s32.totalorder %s138, %s139
    %p151 = scmp.eq.s32.totalorder %s24, 1
    %p152 = por %p150, %p151
    %p154 = scmp.ne.s32.totalorder %s139, %s153
    %p155 = scmp.eq.s32.totalorder %s24, 0
    %p156 = por %p154, %p155
    %s158 = sadd.s32 %s157, 1
    %p161 = scmp.eq.s32.totalorder %s18, 1
    %p162 = scmp.ne.s32.totalorder %s157, %s159
    %p163 = scmp.eq.s32.totalorder %s18, 0
    %p164 = por %p162, %p163
    %p165 = scmp.ne.s32.totalorder %s157, %s159
    %p166 = scmp.eq.s32.totalorder %s23, 1
    %p167 = por %p165, %p166
    %p168 = scmp.ne.s32.totalorder %s159, %s160
    %p169 = scmp.eq.s32.totalorder %s23, 0
    %p170 = por %p168, %p169
    %p171 = scmp.ne.s32.totalorder %s159, %s160
    %p172 = scmp.eq.s32.totalorder %s24, 1
    %p173 = por %p171, %p172
    %p175 = scmp.ne.s32.totalorder %s160, %s174
    %p176 = scmp.eq.s32.totalorder %s24, 0
    %p177 = por %p175, %p176
    %s179 = sadd.s32 %s178, 1
    %p182 = scmp.eq.s32.totalorder %s18, 1
    %p183 = scmp.ne.s32.totalorder %s178, %s180
    %p184 = scmp.eq.s32.totalorder %s18, 0
    %p185 = por %p183, %p184
    %p186 = scmp.ne.s32.totalorder %s178, %s180
    %p187 = scmp.eq.s32.totalorder %s23, 1
    %p188 = por %p186, %p187
    %p189 = scmp.ne.s32.totalorder %s180, %s181
    %p190 = scmp.eq.s32.totalorder %s23, 0
    %p191 = por %p189, %p190
    %p192 = scmp.ne.s32.totalorder %s180, %s181
    %p193 = scmp.eq.s32.totalorder %s24, 1
    %p194 = por %p192, %p193
    %p196 = scmp.ne.s32.totalorder %s181, %s195
    %p197 = scmp.eq.s32.totalorder %s24, 0
    %p198 = por %p196, %p197
    %s200 = sadd.s32 %s199, 1
    %p203 = scmp.eq.s32.totalorder %s18, 1
    %p204 = scmp.ne.s32.totalorder %s199, %s201
    %p205 = scmp.eq.s32.totalorder %s18, 0
    %p206 = por %p204, %p205
    %p207 = scmp.ne.s32.totalorder %s199, %s201
    %p208 = scmp.eq.s32.totalorder %s23, 1
    %p209 = por %p207, %p208
    %p210 = scmp.ne.s32.totalorder %s201, %s202
    %p211 = scmp.eq.s32.totalorder %s23, 0
    %p212 = por %p210, %p211
    %p213 = scmp.ne.s32.totalorder %s201, %s202
    %p214 = scmp.eq.s32.totalorder %s24, 1
    %p215 = por %p213, %p214
    %p217 = scmp.ne.s32.totalorder %s202, %s216
    %p218 = scmp.eq.s32.totalorder %s24, 0
    %p219 = por %p217, %p218
    %s221 = sadd.s32 %s220, 1
    %p224 = scmp.eq.s32.totalorder %s18, 1
    %p225 = scmp.ne.s32.totalorder %s220, %s222
    %p226 = scmp.eq.s32.totalorder %s18, 0
    %p227 = por %p225, %p226
    %p228 = scmp.ne.s32.totalorder %s220, %s222
    %p229 = scmp.eq.s32.totalorder %s23, 1
    %p230 = por %p228, %p229
    %p231 = scmp.ne.s32.totalorder %s222, %s223
    %p232 = scmp.eq.s32.totalorder %s23, 0
    %p233 = por %p231, %p232
    %p234 = scmp.ne.s32.totalorder %s222, %s223
    %p235 = scmp.eq.s32.totalorder %s24, 1
    %p236 = por %p234, %p235
    %p238 = scmp.ne.s32.totalorder %s223, %s237
    %p239 = scmp.eq.s32.totalorder %s24, 0
    %p240 = por %p238, %p239
    %s242 = sadd.s32 %s241, 1
    %p245 = scmp.eq.s32.totalorder %s18, 1
    %p246 = scmp.ne.s32.totalorder %s241, %s243
    %p247 = scmp.eq.s32.totalorder %s18, 0
    %p248 = por %p246, %p247
    %p249 = scmp.ne.s32.totalorder %s241, %s243
    %p250 = scmp.eq.s32.totalorder %s23, 1
    %p251 = por %p249, %p250
    %p252 = scmp.ne.s32.totalorder %s243, %s244
    %p253 = scmp.eq.s32.totalorder %s23, 0
    %p254 = por %p252, %p253
    %p255 = scmp.ne.s32.totalorder %s243, %s244
    %p256 = scmp.eq.s32.totalorder %s24, 1
    %p257 = por %p255, %p256
    %p259 = scmp.ne.s32.totalorder %s244, %s258
    %p260 = scmp.eq.s32.totalorder %s24, 0
    %p261 = por %p259, %p260
    %s263 = sadd.s32 %s262, 1
    %p266 = scmp.eq.s32.totalorder %s18, 1
    %p267 = scmp.ne.s32.totalorder %s262, %s264
    %p268 = scmp.eq.s32.totalorder %s18, 0
    %p269 = por %p267, %p268
    %p270 = scmp.ne.s32.totalorder %s262, %s264
    %p271 = scmp.eq.s32.totalorder %s23, 1
    %p272 = por %p270, %p271
    %p273 = scmp.ne.s32.totalorder %s264, %s265
    %p274 = scmp.eq.s32.totalorder %s23, 0
    %p275 = por %p273, %p274
    %p276 = scmp.ne.s32.totalorder %s264, %s265
    %p277 = scmp.eq.s32.totalorder %s24, 1
    %p278 = por %p276, %p277
    %p280 = scmp.ne.s32.totalorder %s265, %s279
    %p281 = scmp.eq.s32.totalorder %s24, 0
    %p282 = por %p280, %p281
    %s283 = ssub.s32 %s18, %s25
    %p284 = scmp.eq.s32.totalorder %s283, 0
    %s286 = sadd.s32 %s285, 1
    %s287 = scalar_select %p284, %s285, %s286
    %p290 = pneg %p284
    %p291 = scmp.eq.s32.totalorder %s18, 1
    %p292 = por %p290, %p291
    %p293 = scmp.ne.s32.totalorder %s285, %s288
    %p294 = scmp.eq.s32.totalorder %s18, 0
    %p295 = por %p293, %p294
    %p296 = scmp.ne.s32.totalorder %s285, %s288
    %p297 = scmp.eq.s32.totalorder %s23, 1
    %p298 = por %p296, %p297
    %p299 = scmp.ne.s32.totalorder %s288, %s289
    %p300 = scmp.eq.s32.totalorder %s23, 0
    %p301 = por %p299, %p300
    %p302 = scmp.ne.s32.totalorder %s288, %s289
    %p303 = scmp.eq.s32.totalorder %s24, 1
    %p304 = por %p302, %p303
    %p306 = scmp.ne.s32.totalorder %s289, %s305
    %p307 = scmp.eq.s32.totalorder %s24, 0
    %p308 = por %p306, %p307
    %p309 = scmp.le.s32.totalorder 1, %s18
    %p310 = scmp.lt.s32.totalorder %s18, 3
    %p311 = pnand %p309, %p310
    %p312 = pneg %p311
    // Predicated region
    $region9: #{tpu_custom_call.1} parent=5 // pred_check
      _
    $region10: #{tpu_custom_call.1} parent=5 // pred_check_branch
      %314 = sbr.rel (%p311) target = $region12
    $region11: #{tpu_custom_call.1} parent=5 // pred_region
      %s315 = ssub.s32 %s18, 1
      // Predicated region
      $region13: #{tpu_custom_call.1} parent=11 // pred_check
        %p316 = pneg %p65
      $region14: #{tpu_custom_call.1} parent=11 // pred_check_branch
        %318 = sbr.rel (%p316) target = $region16
      $region15: #{tpu_custom_call.1} parent=11 // pred_region
        _
      $region16: #{tpu_custom_call.1} parent=11 // pred_fallthru
        _
      // Predicated region
      $region17: #{tpu_custom_call.1} parent=11 // pred_check
        %p319 = pneg %p86
      $region18: #{tpu_custom_call.1} parent=11 // pred_check_branch
        %321 = sbr.rel (%p319) target = $region20
      $region19: #{tpu_custom_call.1} parent=11 // pred_region
        _
      $region20: #{tpu_custom_call.1} parent=11 // pred_fallthru
        _
      // Predicated region
      $region21: #{tpu_custom_call.1} parent=11 // pred_check
        %p322 = pneg %p107
      $region22: #{tpu_custom_call.1} parent=11 // pred_check_branch
        %324 = sbr.rel (%p322) target = $region24
      $region23: #{tpu_custom_call.1} parent=11 // pred_region
        _
      $region24: #{tpu_custom_call.1} parent=11 // pred_fallthru
        _
      // Predicated region
      $region25: #{tpu_custom_call.1} parent=11 // pred_check
        %p325 = pneg %p128
      $region26: #{tpu_custom_call.1} parent=11 // pred_check_branch
        %327 = sbr.rel (%p325) target = $region28
      $region27: #{tpu_custom_call.1} parent=11 // pred_region
        _
      $region28: #{tpu_custom_call.1} parent=11 // pred_fallthru
        _
      // Predicated region
      $region29: #{tpu_custom_call.1} parent=11 // pred_check
        %p328 = pneg %p149
      $region30: #{tpu_custom_call.1} parent=11 // pred_check_branch
        %330 = sbr.rel (%p328) target = $region32
      $region31: #{tpu_custom_call.1} parent=11 // pred_region
        _
      $region32: #{tpu_custom_call.1} parent=11 // pred_fallthru
        _
      // Predicated region
      $region33: #{tpu_custom_call.1} parent=11 // pred_check
        %p331 = pneg %p170
      $region34: #{tpu_custom_call.1} parent=11 // pred_check_branch
        %333 = sbr.rel (%p331) target = $region36
      $region35: #{tpu_custom_call.1} parent=11 // pred_region
        _
      $region36: #{tpu_custom_call.1} parent=11 // pred_fallthru
        _
      // Predicated region
      $region37: #{tpu_custom_call.1} parent=11 // pred_check
        %p334 = pneg %p191
      $region38: #{tpu_custom_call.1} parent=11 // pred_check_branch
        %336 = sbr.rel (%p334) target = $region40
      $region39: #{tpu_custom_call.1} parent=11 // pred_region
        _
      $region40: #{tpu_custom_call.1} parent=11 // pred_fallthru
        _
      // Predicated region
      $region41: #{tpu_custom_call.1} parent=11 // pred_check
        %p337 = pneg %p212
      $region42: #{tpu_custom_call.1} parent=11 // pred_check_branch
        %339 = sbr.rel (%p337) target = $region44
      $region43: #{tpu_custom_call.1} parent=11 // pred_region
        _
      $region44: #{tpu_custom_call.1} parent=11 // pred_fallthru
        _
      // Predicated region
      $region45: #{tpu_custom_call.1} parent=11 // pred_check
        %p340 = pneg %p233
      $region46: #{tpu_custom_call.1} parent=11 // pred_check_branch
        %342 = sbr.rel (%p340) target = $region48
      $region47: #{tpu_custom_call.1} parent=11 // pred_region
        _
      $region48: #{tpu_custom_call.1} parent=11 // pred_fallthru
        _
      // Predicated region
      $region49: #{tpu_custom_call.1} parent=11 // pred_check
        %p343 = pneg %p254
      $region50: #{tpu_custom_call.1} parent=11 // pred_check_branch
        %345 = sbr.rel (%p343) target = $region52
      $region51: #{tpu_custom_call.1} parent=11 // pred_region
        _
      $region52: #{tpu_custom_call.1} parent=11 // pred_fallthru
        _
      // Predicated region
      $region53: #{tpu_custom_call.1} parent=11 // pred_check
        %p346 = pneg %p275
      $region54: #{tpu_custom_call.1} parent=11 // pred_check_branch
        %348 = sbr.rel (%p346) target = $region56
      $region55: #{tpu_custom_call.1} parent=11 // pred_region
        _
      $region56: #{tpu_custom_call.1} parent=11 // pred_fallthru
        _
    $region12: #{tpu_custom_call.1} parent=5 // pred_fallthru
      _
    %p349 = scmp.lt.s32.totalorder %s18, 2
    // Predicated region
    $region57: #{tpu_custom_call.1} parent=5 // pred_check
      %p350 = pneg %p349
    $region58: #{tpu_custom_call.1} parent=5 // pred_check_branch
      %352 = sbr.rel (%p350) target = $region60
    $region59: #{tpu_custom_call.1} parent=5 // pred_region
      // Predicated region
      $region61: #{tpu_custom_call.1} parent=59 // pred_check
        %p353 = pneg %p38
      $region62: #{tpu_custom_call.1} parent=59 // pred_check_branch
        %355 = sbr.rel (%p353) target = $region64
      $region63: #{tpu_custom_call.1} parent=59 // pred_region
        %p356 = scmp.lt.s32.totalorder %s18, 1
        %s357 = scalar_select %p356, %s18, 1
        %s358 = smul.addr %s357, 16
        %s359 = smul.addr %s358, 8
        %s360 = scalar_lea.vmem %s0, %s359
      $region64: #{tpu_custom_call.1} parent=59 // pred_fallthru
        _
    $region60: #{tpu_custom_call.1} parent=5 // pred_fallthru
      _
    %p361 = scmp.le.s32.totalorder 1, %s18
    %p362 = scmp.lt.s32.totalorder %s18, 3
    %p363 = pnand %p361, %p362
    %p364 = pneg %p363
    // Predicated region
    $region65: #{tpu_custom_call.1} parent=5 // pred_check
      _
    $region66: #{tpu_custom_call.1} parent=5 // pred_check_branch
      %366 = sbr.rel (%p363) target = $region68
    $region67: #{tpu_custom_call.1} parent=5 // pred_region
      %s367 = ssub.s32 %s18, 1
      %p368 = scmp.lt.s32.totalorder %s23, 1
      %s369 = scalar_select %p368, %s23, 1
      %s370 = smul.addr %s369, 16
      %s371 = smul.addr %s370, 8
      %s372 = scalar_lea.vmem %s0, %s371
      %p373 = pneg %p44
      %p374 = pneg %p41
      %p375 = pneg %p65
      %p376 = pneg %p62
      %p377 = pneg %p86
      %p378 = pneg %p83
      %p379 = pneg %p107
      %p380 = pneg %p104
      %p381 = pneg %p128
      %p382 = pneg %p125
      %p383 = pneg %p149
      %p384 = pneg %p146
      %p385 = pneg %p170
      %p386 = pneg %p167
      %p387 = pneg %p191
      %p388 = pneg %p188
      %p389 = pneg %p212
      %p390 = pneg %p209
      %p391 = pneg %p233
      %p392 = pneg %p230
      %p393 = pneg %p254
      %p394 = pneg %p251
      %p395 = pneg %p275
      %p396 = pneg %p272
      %p397 = pneg %p301
      %p398 = pneg %p298
      %p399 = scmp.lt.s32.totalorder %s23, 1
      %s400 = scalar_select %p399, %s23, 1
      %s401 = smul.addr %s400, 16
      %s402 = smul.addr %s401, 8
      %s403 = scalar_lea.vmem %s12, %s402
      %p404 = scmp.lt.s32.totalorder %s23, 1
      %s405 = scalar_select %p404, %s23, 1
      %s406 = smul.addr %s405, 16
      %s407 = smul.addr %s406, 8
      %s408 = scalar_lea.vmem %s0, %s407
      %p409 = scmp.lt.s32.totalorder %s23, 1
      %s410 = scalar_select %p409, %s23, 1
      %s411 = smul.addr %s410, 16
      %s412 = smul.addr %s411, 8
      %s413 = scalar_lea.vmem %s12, %s412
      %v414 = vld [vmem:[%s408] sm:$0xff]
      %v415 = vld [vmem:[%s408 + $0x8] sm:$0xff]
      %v416 = vld [vmem:[%s408 + $0x10] sm:$0xff]
      %v417 = vld [vmem:[%s408 + $0x18] sm:$0xff]
      %v418 = vld [vmem:[%s408 + $0x20] sm:$0xff]
      %v419 = vld [vmem:[%s408 + $0x28] sm:$0xff]
      %v420 = vld [vmem:[%s408 + $0x30] sm:$0xff]
      %v421 = vld [vmem:[%s408 + $0x38] sm:$0xff]
      %v422 = vld [vmem:[%s408 + $0x40] sm:$0xff]
      %v423 = vld [vmem:[%s408 + $0x48] sm:$0xff]
      %v424 = vld [vmem:[%s408 + $0x50] sm:$0xff]
      %v425 = vld [vmem:[%s408 + $0x58] sm:$0xff]
      %v426 = vld [vmem:[%s408 + $0x60] sm:$0xff]
      %v427 = vld [vmem:[%s408 + $0x68] sm:$0xff]
      %v428 = vld [vmem:[%s408 + $0x70] sm:$0xff]
      %v429 = vld [vmem:[%s408 + $0x78] sm:$0xff]
      %v430 = vld [vmem:[%s3] sm:$0x3f]
      %v431 = vld [vmem:[%s4] sm:$0x3f]
      %433 = vset.pattern.permute.xlu0 0
      %434 = vperm.xlu0 %433, %v431
      %v435 = vpop.permute.xlu0 %434
      %437 = vmatprep.subr.mxu0 0.0
      %438 = vmatpush1.msra.mxu0 %v414
      %439 = vmatprep.subr.mxu0 0.0
      %440 = vmatpush1.msra.mxu0 %v415
      %441 = vmatprep.subr.mxu0 0.0
      %442 = vmatpush1.msra.mxu0 %v416
      %443 = vmatprep.subr.mxu0 0.0
      %444 = vmatpush1.msra.mxu0 %v417
      %445 = vmatprep.subr.mxu0 0.0
      %446 = vmatpush1.msra.mxu0 %v418
      %447 = vmatprep.subr.mxu0 0.0
      %448 = vmatpush1.msra.mxu0 %v419
      %449 = vmatprep.subr.mxu0 0.0
      %450 = vmatpush1.msra.mxu0 %v420
      %451 = vmatprep.subr.mxu0 0.0
      %452 = vmatpush1.msra.mxu0 %v421
      %453 = vmatprep.subr.mxu0 0.0
      %454 = vmatpush1.msra.mxu0 %v422
      %455 = vmatprep.subr.mxu0 0.0
      %456 = vmatpush1.msra.mxu0 %v423
      %457 = vmatprep.subr.mxu0 0.0
      %458 = vmatpush1.msra.mxu0 %v424
      %459 = vmatprep.subr.mxu0 0.0
      %460 = vmatpush1.msra.mxu0 %v425
      %461 = vmatprep.subr.mxu0 0.0
      %462 = vmatpush1.msra.mxu0 %v426
      %463 = vmatprep.subr.mxu0 0.0
      %464 = vmatpush1.msra.mxu0 %v427
      %465 = vmatprep.subr.mxu0 0.0
      %466 = vmatpush1.msra.mxu0 %v428
      %467 = vmatprep.subr.mxu0 0.0
      %468 = vmatpush1.msra.mxu0 %v429
      %469 = vmatprep.subr.mxu0 0.0
      %470 = vmatpush1.msra.mxu0 0.0
      %471 = vmatprep.subr.mxu0 0.0
      %472 = vmatpush1.msra.mxu0 0.0
      %473 = vmatprep.subr.mxu0 0.0
      %474 = vmatpush1.msra.mxu0 0.0
      %475 = vmatprep.subr.mxu0 0.0
      %476 = vmatpush1.msra.mxu0 0.0
      %477 = vmatprep.subr.mxu0 0.0
      %478 = vmatpush1.msra.mxu0 0.0
      %479 = vmatprep.subr.mxu0 0.0
      %480 = vmatpush1.msra.mxu0 0.0
      %481 = vmatprep.subr.mxu0 0.0
      %482 = vmatpush1.msra.mxu0 0.0
      %483 = vmatprep.subr.mxu0 0.0
      %484 = vmatpush1.msra.mxu0 0.0
      %485 = vmatprep.subr.mxu0 0.0
      %486 = vmatpush1.msra.mxu0 0.0
      %487 = vmatprep.subr.mxu0 0.0
      %488 = vmatpush1.msra.mxu0 0.0
      %489 = vmatprep.subr.mxu0 0.0
      %490 = vmatpush1.msra.mxu0 0.0
      %491 = vmatprep.subr.mxu0 0.0
      %492 = vmatpush1.msra.mxu0 0.0
      %493 = vmatprep.subr.mxu0 0.0
      %494 = vmatpush1.msra.mxu0 0.0
      %495 = vmatprep.subr.mxu0 0.0
      %496 = vmatpush1.msra.mxu0 0.0
      %497 = vmatprep.subr.mxu0 0.0
      %498 = vmatpush1.msra.mxu0 0.0
      %499 = vmatprep.subr.mxu0 0.0
      %500 = vmatpush1.msra.mxu0 0.0
      %501 = vmatprep.mubr.f32.mxu0 0.0
      %502 = vmatmul.mubr.f32.gmra.mrb[0].mxu0 %v430
      %v503 = vpop.f32.mrb[0].mxu0
      %v504 = vadd.f32 %v435, %v503
      %v505 = vpop.f32.mrb[0].mxu0
      %506 = vdwg.mxu0
      %v507 = vld [vmem:[%s5] sm:$0x3f]
      %v508 = vld [vmem:[%s6] sm:$0x3f]
      %510 = vset.pattern.permute.xlu0 0
      %511 = vperm.xlu0 %510, %v508
      %v512 = vpop.permute.xlu0 %511
      %514 = vmatprep.subr.mxu0 0.0
      %515 = vmatpush1.msra.mxu0 %v414
      %516 = vmatprep.subr.mxu0 0.0
      %517 = vmatpush1.msra.mxu0 %v415
      %518 = vmatprep.subr.mxu0 0.0
      %519 = vmatpush1.msra.mxu0 %v416
      %520 = vmatprep.subr.mxu0 0.0
      %521 = vmatpush1.msra.mxu0 %v417
      %522 = vmatprep.subr.mxu0 0.0
      %523 = vmatpush1.msra.mxu0 %v418
      %524 = vmatprep.subr.mxu0 0.0
      %525 = vmatpush1.msra.mxu0 %v419
      %526 = vmatprep.subr.mxu0 0.0
      %527 = vmatpush1.msra.mxu0 %v420
      %528 = vmatprep.subr.mxu0 0.0
      %529 = vmatpush1.msra.mxu0 %v421
      %530 = vmatprep.subr.mxu0 0.0
      %531 = vmatpush1.msra.mxu0 %v422
      %532 = vmatprep.subr.mxu0 0.0
      %533 = vmatpush1.msra.mxu0 %v423
      %534 = vmatprep.subr.mxu0 0.0
      %535 = vmatpush1.msra.mxu0 %v424
      %536 = vmatprep.subr.mxu0 0.0
      %537 = vmatpush1.msra.mxu0 %v425
      %538 = vmatprep.subr.mxu0 0.0
      %539 = vmatpush1.msra.mxu0 %v426
      %540 = vmatprep.subr.mxu0 0.0
      %541 = vmatpush1.msra.mxu0 %v427
      %542 = vmatprep.subr.mxu0 0.0
      %543 = vmatpush1.msra.mxu0 %v428
      %544 = vmatprep.subr.mxu0 0.0
      %545 = vmatpush1.msra.mxu0 %v429
      %546 = vmatprep.subr.mxu0 0.0
      %547 = vmatpush1.msra.mxu0 0.0
      %548 = vmatprep.subr.mxu0 0.0
      %549 = vmatpush1.msra.mxu0 0.0
      %550 = vmatprep.subr.mxu0 0.0
      %551 = vmatpush1.msra.mxu0 0.0
      %552 = vmatprep.subr.mxu0 0.0
      %553 = vmatpush1.msra.mxu0 0.0
      %554 = vmatprep.subr.mxu0 0.0
      %555 = vmatpush1.msra.mxu0 0.0
      %556 = vmatprep.subr.mxu0 0.0
      %557 = vmatpush1.msra.mxu0 0.0
      %558 = vmatprep.subr.mxu0 0.0
      %559 = vmatpush1.msra.mxu0 0.0
      %560 = vmatprep.subr.mxu0 0.0
      %561 = vmatpush1.msra.mxu0 0.0
      %562 = vmatprep.subr.mxu0 0.0
      %563 = vmatpush1.msra.mxu0 0.0
      %564 = vmatprep.subr.mxu0 0.0
      %565 = vmatpush1.msra.mxu0 0.0
      %566 = vmatprep.subr.mxu0 0.0
      %567 = vmatpush1.msra.mxu0 0.0
      %568 = vmatprep.subr.mxu0 0.0
      %569 = vmatpush1.msra.mxu0 0.0
      %570 = vmatprep.subr.mxu0 0.0
      %571 = vmatpush1.msra.mxu0 0.0
      %572 = vmatprep.subr.mxu0 0.0
      %573 = vmatpush1.msra.mxu0 0.0
      %574 = vmatprep.subr.mxu0 0.0
      %575 = vmatpush1.msra.mxu0 0.0
      %576 = vmatprep.subr.mxu0 0.0
      %577 = vmatpush1.msra.mxu0 0.0
      %578 = vmatprep.mubr.f32.mxu0 0.0
      %579 = vmatmul.mubr.f32.gmra.mrb[0].mxu0 %v507
      %v580 = vpop.f32.mrb[0].mxu0
      %v581 = vadd.f32 %v512, %v580
      %v582 = vpop.f32.mrb[0].mxu0
      %583 = vdwg.mxu0
      %v584 = vlaneseq
      %v585 = vshrl.u32 %v584, 7
      %v586 = vadd.s32 %v585, 8
      %v587 = vadd.s32 %v585, 16
      %v588 = vadd.s32 %v585, 24
      %v589 = vlaneseq
      %v590 = vand.u32 %v589, 127
      %vm591 = vcmp.eq.s32.totalorder %v585, %v590
      %vm592 = vcmp.eq.s32.totalorder %v586, %v590
      %vm593 = vcmp.eq.s32.totalorder %v587, %v590
      %vm594 = vcmp.eq.s32.totalorder %v588, %v590
      %v595 = vsel %vm591, 1, 0
      %v596 = vsel %vm592, 1, 0
      %v597 = vsel %vm593, 1, 0
      %v598 = vsel %vm594, 1, 0
      %v599 = vcvt.s32.f32 %v595
      %v600 = vcvt.s32.f32 %v596
      %v601 = vcvt.s32.f32 %v597
      %v602 = vcvt.s32.f32 %v598
      %v603 = vld [vmem:[%s1] sm:$0xff]
      %v604 = vld [vmem:[%s1 + $0x8] sm:$0xff]
      %v605 = vld [vmem:[%s1 + $0x10] sm:$0xff]
      %v606 = vld [vmem:[%s1 + $0x18] sm:$0xff]
      %v607 = vld [vmem:[%s1 + $0x20] sm:$0xff]
      %v608 = vld [vmem:[%s1 + $0x28] sm:$0xff]
      %v609 = vld [vmem:[%s1 + $0x30] sm:$0xff]
      %v610 = vld [vmem:[%s1 + $0x38] sm:$0xff]
      %v611 = vld [vmem:[%s1 + $0x40] sm:$0xff]
      %v612 = vld [vmem:[%s1 + $0x48] sm:$0xff]
      %v613 = vld [vmem:[%s1 + $0x50] sm:$0xff]
      %v614 = vld [vmem:[%s1 + $0x58] sm:$0xff]
      %v615 = vld [vmem:[%s1 + $0x60] sm:$0xff]
      %v616 = vld [vmem:[%s1 + $0x68] sm:$0xff]
      %v617 = vld [vmem:[%s1 + $0x70] sm:$0xff]
      %v618 = vld [vmem:[%s1 + $0x78] sm:$0xff]
      %v619 = vld [vmem:[%s2] sm:$0xff]
      %v620 = vld [vmem:[%s2 + $0x8] sm:$0xff]
      %v621 = vld [vmem:[%s2 + $0x10] sm:$0xff]
      %v622 = vld [vmem:[%s2 + $0x18] sm:$0xff]
      %v623 = vld [vmem:[%s2 + $0x20] sm:$0xff]
      %v624 = vld [vmem:[%s2 + $0x28] sm:$0xff]
      %v625 = vld [vmem:[%s2 + $0x30] sm:$0xff]
      %v626 = vld [vmem:[%s2 + $0x38] sm:$0xff]
      %v627 = vld [vmem:[%s2 + $0x40] sm:$0xff]
      %v628 = vld [vmem:[%s2 + $0x48] sm:$0xff]
      %v629 = vld [vmem:[%s2 + $0x50] sm:$0xff]
      %v630 = vld [vmem:[%s2 + $0x58] sm:$0xff]
      %v631 = vld [vmem:[%s2 + $0x60] sm:$0xff]
      %v632 = vld [vmem:[%s2 + $0x68] sm:$0xff]
      %v633 = vld [vmem:[%s2 + $0x70] sm:$0xff]
      %v634 = vld [vmem:[%s2 + $0x78] sm:$0xff]
      %636 = vset.pattern.permute.xlu0 0
      %637 = vperm.xlu0 %636, %v619
      %v638 = vpop.permute.xlu0 %637
      %641 = vset.pattern.permute.xlu0 0
      %642 = vperm.xlu0 %641, %v620
      %v643 = vpop.permute.xlu0 %642
      %646 = vset.pattern.permute.xlu0 0
      %647 = vperm.xlu0 %646, %v621
      %v648 = vpop.permute.xlu0 %647
      %651 = vset.pattern.permute.xlu0 0
      %652 = vperm.xlu0 %651, %v622
      %v653 = vpop.permute.xlu0 %652
      %656 = vset.pattern.permute.xlu0 0
      %657 = vperm.xlu0 %656, %v623
      %v658 = vpop.permute.xlu0 %657
      %661 = vset.pattern.permute.xlu0 0
      %662 = vperm.xlu0 %661, %v624
      %v663 = vpop.permute.xlu0 %662
      %666 = vset.pattern.permute.xlu0 0
      %667 = vperm.xlu0 %666, %v625
      %v668 = vpop.permute.xlu0 %667
      %671 = vset.pattern.permute.xlu0 0
      %672 = vperm.xlu0 %671, %v626
      %v673 = vpop.permute.xlu0 %672
      %676 = vset.pattern.permute.xlu0 0
      %677 = vperm.xlu0 %676, %v627
      %v678 = vpop.permute.xlu0 %677
      %681 = vset.pattern.permute.xlu0 0
      %682 = vperm.xlu0 %681, %v628
      %v683 = vpop.permute.xlu0 %682
      %686 = vset.pattern.permute.xlu0 0
      %687 = vperm.xlu0 %686, %v629
      %v688 = vpop.permute.xlu0 %687
      %691 = vset.pattern.permute.xlu0 0
      %692 = vperm.xlu0 %691, %v630
      %v693 = vpop.permute.xlu0 %692
      %696 = vset.pattern.permute.xlu0 0
      %697 = vperm.xlu0 %696, %v631
      %v698 = vpop.permute.xlu0 %697
      %701 = vset.pattern.permute.xlu0 0
      %702 = vperm.xlu0 %701, %v632
      %v703 = vpop.permute.xlu0 %702
      %706 = vset.pattern.permute.xlu0 0
      %707 = vperm.xlu0 %706, %v633
      %v708 = vpop.permute.xlu0 %707
      %711 = vset.pattern.permute.xlu0 0
      %712 = vperm.xlu0 %711, %v634
      %v713 = vpop.permute.xlu0 %712
      %715 = vmatprep.subr.mxu0 0.0
      %716 = vmatpush1.msra.mxu0 %v414
      %717 = vmatprep.subr.mxu0 0.0
      %718 = vmatpush1.msra.mxu0 %v415
      %719 = vmatprep.subr.mxu0 0.0
      %720 = vmatpush1.msra.mxu0 %v416
      %721 = vmatprep.subr.mxu0 0.0
      %722 = vmatpush1.msra.mxu0 %v417
      %723 = vmatprep.subr.mxu0 0.0
      %724 = vmatpush1.msra.mxu0 %v418
      %725 = vmatprep.subr.mxu0 0.0
      %726 = vmatpush1.msra.mxu0 %v419
      %727 = vmatprep.subr.mxu0 0.0
      %728 = vmatpush1.msra.mxu0 %v420
      %729 = vmatprep.subr.mxu0 0.0
      %730 = vmatpush1.msra.mxu0 %v421
      %731 = vmatprep.subr.mxu0 0.0
      %732 = vmatpush1.msra.mxu0 %v422
      %733 = vmatprep.subr.mxu0 0.0
      %734 = vmatpush1.msra.mxu0 %v423
      %735 = vmatprep.subr.mxu0 0.0
      %736 = vmatpush1.msra.mxu0 %v424
      %737 = vmatprep.subr.mxu0 0.0
      %738 = vmatpush1.msra.mxu0 %v425
      %739 = vmatprep.subr.mxu0 0.0
      %740 = vmatpush1.msra.mxu0 %v426
      %741 = vmatprep.subr.mxu0 0.0
      %742 = vmatpush1.msra.mxu0 %v427
      %743 = vmatprep.subr.mxu0 0.0
      %744 = vmatpush1.msra.mxu0 %v428
      %745 = vmatprep.subr.mxu0 0.0
      %746 = vmatpush1.msra.mxu0 %v429
      %747 = vmatprep.subr.mxu0 0.0
      %748 = vmatpush1.msra.mxu0 0.0
      %749 = vmatprep.subr.mxu0 0.0
      %750 = vmatpush1.msra.mxu0 0.0
      %751 = vmatprep.subr.mxu0 0.0
      %752 = vmatpush1.msra.mxu0 0.0
      %753 = vmatprep.subr.mxu0 0.0
      %754 = vmatpush1.msra.mxu0 0.0
      %755 = vmatprep.subr.mxu0 0.0
      %756 = vmatpush1.msra.mxu0 0.0
      %757 = vmatprep.subr.mxu0 0.0
      %758 = vmatpush1.msra.mxu0 0.0
      %759 = vmatprep.subr.mxu0 0.0
      %760 = vmatpush1.msra.mxu0 0.0
      %761 = vmatprep.subr.mxu0 0.0
      %762 = vmatpush1.msra.mxu0 0.0
      %763 = vmatprep.subr.mxu0 0.0
      %764 = vmatpush1.msra.mxu0 0.0
      %765 = vmatprep.subr.mxu0 0.0
      %766 = vmatpush1.msra.mxu0 0.0
      %767 = vmatprep.subr.mxu0 0.0
      %768 = vmatpush1.msra.mxu0 0.0
      %769 = vmatprep.subr.mxu0 0.0
      %770 = vmatpush1.msra.mxu0 0.0
      %771 = vmatprep.subr.mxu0 0.0
      %772 = vmatpush1.msra.mxu0 0.0
      %773 = vmatprep.subr.mxu0 0.0
      %774 = vmatpush1.msra.mxu0 0.0
      %775 = vmatprep.subr.mxu0 0.0
      %776 = vmatpush1.msra.mxu0 0.0
      %777 = vmatprep.subr.mxu0 0.0
      %778 = vmatpush1.msra.mxu0 0.0
      %779 = vmatprep.mubr.f32.mxu0 0.0
      %780 = vmatmul.mubr.f32.gmra.mrb[0].mxu0 %v603
      %v781 = vpop.f32.mrb[0].mxu0
      %v782 = vadd.f32 %v638, %v781
      %v783 = vpop.f32.mrb[0].mxu0
      %784 = vmatprep.mubr.f32.mxu0 0.0
      %785 = vmatmul.mubr.f32.gmra.mrb[0].mxu0 %v604
      %v786 = vpop.f32.mrb[0].mxu0
      %v787 = vadd.f32 %v643, %v786
      %v788 = vpop.f32.mrb[0].mxu0
      %789 = vmatprep.mubr.f32.mxu0 0.0
      %790 = vmatmul.mubr.f32.gmra.mrb[0].mxu0 %v605
      %v791 = vpop.f32.mrb[0].mxu0
      %v792 = vadd.f32 %v648, %v791
      %v793 = vpop.f32.mrb[0].mxu0
      %794 = vmatprep.mubr.f32.mxu0 0.0
      %795 = vmatmul.mubr.f32.gmra.mrb[0].mxu0 %v606
      %v796 = vpop.f32.mrb[0].mxu0
      %v797 = vadd.f32 %v653, %v796
      %v798 = vpop.f32.mrb[0].mxu0
      %799 = vmatprep.mubr.f32.mxu0 0.0
      %800 = vmatmul.mubr.f32.gmra.mrb[0].mxu0 %v607
      %v801 = vpop.f32.mrb[0].mxu0
      %v802 = vadd.f32 %v658, %v801
      %v803 = vpop.f32.mrb[0].mxu0
      %804 = vmatprep.mubr.f32.mxu0 0.0
      %805 = vmatmul.mubr.f32.gmra.mrb[0].mxu0 %v608
      %v806 = vpop.f32.mrb[0].mxu0
      %v807 = vadd.f32 %v663, %v806
      %v808 = vpop.f32.mrb[0].mxu0
      %809 = vmatprep.mubr.f32.mxu0 0.0
      %810 = vmatmul.mubr.f32.gmra.mrb[0].mxu0 %v609
      %v811 = vpop.f32.mrb[0].mxu0
      %v812 = vadd.f32 %v668, %v811
      %v813 = vpop.f32.mrb[0].mxu0
      %814 = vmatprep.mubr.f32.mxu0 0.0
      %815 = vmatmul.mubr.f32.gmra.mrb[0].mxu0 %v610
      %v816 = vpop.f32.mrb[0].mxu0
      %v817 = vadd.f32 %v673, %v816
      %v818 = vpop.f32.mrb[0].mxu0
      %819 = vmatprep.mubr.f32.mxu0 0.0
      %820 = vmatmul.mubr.f32.gmra.mrb[0].mxu0 %v611
      %v821 = vpop.f32.mrb[0].mxu0
      %v822 = vadd.f32 %v678, %v821
      %v823 = vpop.f32.mrb[0].mxu0
      %824 = vmatprep.mubr.f32.mxu0 0.0
      %825 = vmatmul.mubr.f32.gmra.mrb[0].mxu0 %v612
      %v826 = vpop.f32.mrb[0].mxu0
      %v827 = vadd.f32 %v683, %v826
      %v828 = vpop.f32.mrb[0].mxu0
      %829 = vmatprep.mubr.f32.mxu0 0.0
      %830 = vmatmul.mubr.f32.gmra.mrb[0].mxu0 %v613
      %v831 = vpop.f32.mrb[0].mxu0
      %v832 = vadd.f32 %v688, %v831
      %v833 = vpop.f32.mrb[0].mxu0
      %834 = vmatprep.mubr.f32.mxu0 0.0
      %835 = vmatmul.mubr.f32.gmra.mrb[0].mxu0 %v614
      %v836 = vpop.f32.mrb[0].mxu0
      %v837 = vadd.f32 %v693, %v836
      %v838 = vpop.f32.mrb[0].mxu0
      %839 = vmatprep.mubr.f32.mxu0 0.0
      %840 = vmatmul.mubr.f32.gmra.mrb[0].mxu0 %v615
      %v841 = vpop.f32.mrb[0].mxu0
      %v842 = vadd.f32 %v698, %v841
      %v843 = vpop.f32.mrb[0].mxu0
      %844 = vmatprep.mubr.f32.mxu0 0.0
      %845 = vmatmul.mubr.f32.gmra.mrb[0].mxu0 %v616
      %v846 = vpop.f32.mrb[0].mxu0
      %v847 = vadd.f32 %v703, %v846
      %v848 = vpop.f32.mrb[0].mxu0
      %849 = vmatprep.mubr.f32.mxu0 0.0
      %850 = vmatmul.mubr.f32.gmra.mrb[0].mxu0 %v617
      %v851 = vpop.f32.mrb[0].mxu0
      %v852 = vadd.f32 %v708, %v851
      %v853 = vpop.f32.mrb[0].mxu0
      %854 = vmatprep.mubr.f32.mxu0 0.0
      %855 = vmatmul.mubr.f32.gmra.mrb[0].mxu0 %v618
      %v856 = vpop.f32.mrb[0].mxu0
      %v857 = vadd.f32 %v713, %v856
      %v858 = vpop.f32.mrb[0].mxu0
      %859 = vdwg.mxu0
      %v860 = vld [vmem:[%s7] sm:$0xff]
      %v861 = vld [vmem:[%s7 + $0x8] sm:$0xff]
      %v862 = vld [vmem:[%s7 + $0x10] sm:$0xff]
      %v863 = vld [vmem:[%s7 + $0x18] sm:$0x1]
      %v864 = vld [vmem:[%s9] sm:$0xff]
      %v865 = vld [vmem:[%s9 + $0x8] sm:$0xff]
      %v866 = vld [vmem:[%s9 + $0x10] sm:$0xff]
      %v867 = vld [vmem:[%s9 + $0x18] sm:$0xff]
      %v868 = vld [vmem:[%s9 + $0x20] sm:$0xff]
      %v869 = vld [vmem:[%s9 + $0x28] sm:$0xff]
      %v870 = vld [vmem:[%s9 + $0x30] sm:$0xff]
      %v871 = vld [vmem:[%s9 + $0x38] sm:$0xff]
      %v872 = vld [vmem:[%s9 + $0x40] sm:$0xff]
      %v873 = vld [vmem:[%s9 + $0x48] sm:$0xff]
      %v874 = vld [vmem:[%s9 + $0x50] sm:$0xff]
      %v875 = vld [vmem:[%s9 + $0x58] sm:$0xff]
      %v876 = vld [vmem:[%s9 + $0x60] sm:$0xff]
      %v877 = vld [vmem:[%s9 + $0x68] sm:$0xff]
      %v878 = vld [vmem:[%s9 + $0x70] sm:$0xff]
      %v879 = vld [vmem:[%s9 + $0x78] sm:$0xff]
      %vm880 = vcmask 203776
      %v881 = vsel %vm880, %v782, 0.0
      %882 = vadd.xlane.f32.xlu0 %v881
      %v883 = vpop.xlane.xlu0 %882
      %v884 = vsel %vm880, %v787, 0.0
      %885 = vadd.xlane.f32.xlu0 %v884
      %v886 = vpop.xlane.xlu0 %885
      %v887 = vsel %vm880, %v792, 0.0
      %888 = vadd.xlane.f32.xlu0 %v887
      %v889 = vpop.xlane.xlu0 %888
      %v890 = vsel %vm880, %v797, 0.0
      %891 = vadd.xlane.f32.xlu0 %v890
      %v892 = vpop.xlane.xlu0 %891
      %v893 = vsel %vm880, %v802, 0.0
      %894 = vadd.xlane.f32.xlu0 %v893
      %v895 = vpop.xlane.xlu0 %894
      %v896 = vsel %vm880, %v807, 0.0
      %897 = vadd.xlane.f32.xlu0 %v896
      %v898 = vpop.xlane.xlu0 %897
      %v899 = vsel %vm880, %v812, 0.0
      %900 = vadd.xlane.f32.xlu0 %v899
      %v901 = vpop.xlane.xlu0 %900
      %v902 = vsel %vm880, %v817, 0.0
      %903 = vadd.xlane.f32.xlu0 %v902
      %v904 = vpop.xlane.xlu0 %903
      %v905 = vsel %vm880, %v822, 0.0
      %906 = vadd.xlane.f32.xlu0 %v905
      %v907 = vpop.xlane.xlu0 %906
      %v908 = vsel %vm880, %v827, 0.0
      %909 = vadd.xlane.f32.xlu0 %v908
      %v910 = vpop.xlane.xlu0 %909
      %v911 = vsel %vm880, %v832, 0.0
      %912 = vadd.xlane.f32.xlu0 %v911
      %v913 = vpop.xlane.xlu0 %912
      %v914 = vsel %vm880, %v837, 0.0
      %915 = vadd.xlane.f32.xlu0 %v914
      %v916 = vpop.xlane.xlu0 %915
      %v917 = vsel %vm880, %v842, 0.0
      %918 = vadd.xlane.f32.xlu0 %v917
      %v919 = vpop.xlane.xlu0 %918
      %v920 = vsel %vm880, %v847, 0.0
      %921 = vadd.xlane.f32.xlu0 %v920
      %v922 = vpop.xlane.xlu0 %921
      %v923 = vsel %vm880, %v852, 0.0
      %924 = vadd.xlane.f32.xlu0 %v923
      %v925 = vpop.xlane.xlu0 %924
      %v926 = vsel %vm880, %v857, 0.0
      %927 = vadd.xlane.f32.xlu0 %v926
      %v928 = vpop.xlane.xlu0 %927
      %v929 = vmul.f32 %v864, %v883
      %v930 = vmul.f32 %v865, %v886
      %v931 = vmul.f32 %v866, %v889
      %v932 = vmul.f32 %v867, %v892
      %v933 = vmul.f32 %v868, %v895
      %v934 = vmul.f32 %v869, %v898
      %v935 = vmul.f32 %v870, %v901
      %v936 = vmul.f32 %v871, %v904
      %v937 = vmul.f32 %v872, %v907
      %v938 = vmul.f32 %v873, %v910
      %v939 = vmul.f32 %v874, %v913
      %v940 = vmul.f32 %v875, %v916
      %v941 = vmul.f32 %v876, %v919
      %v942 = vmul.f32 %v877, %v922
      %v943 = vmul.f32 %v878, %v925
      %v944 = vmul.f32 %v879, %v928
      %946 = vset.pattern.permute.xlu0 0
      %947 = vperm.xlu0 %946, %v929
      %v948 = vpop.permute.xlu0 %947
      %951 = vset.pattern.permute.xlu0 0
      %952 = vperm.xlu0 %951, %v930
      %v953 = vpop.permute.xlu0 %952
      %956 = vset.pattern.permute.xlu0 0
      %957 = vperm.xlu0 %956, %v931
      %v958 = vpop.permute.xlu0 %957
      %961 = vset.pattern.permute.xlu0 0
      %962 = vperm.xlu0 %961, %v932
      %v963 = vpop.permute.xlu0 %962
      %966 = vset.pattern.permute.xlu0 0
      %967 = vperm.xlu0 %966, %v933
      %v968 = vpop.permute.xlu0 %967
      %971 = vset.pattern.permute.xlu0 0
      %972 = vperm.xlu0 %971, %v934
      %v973 = vpop.permute.xlu0 %972
      %976 = vset.pattern.permute.xlu0 0
      %977 = vperm.xlu0 %976, %v935
      %v978 = vpop.permute.xlu0 %977
      %981 = vset.pattern.permute.xlu0 0
      %982 = vperm.xlu0 %981, %v936
      %v983 = vpop.permute.xlu0 %982
      %986 = vset.pattern.permute.xlu0 0
      %987 = vperm.xlu0 %986, %v937
      %v988 = vpop.permute.xlu0 %987
      %991 = vset.pattern.permute.xlu0 0
      %992 = vperm.xlu0 %991, %v938
      %v993 = vpop.permute.xlu0 %992
      %996 = vset.pattern.permute.xlu0 0
      %997 = vperm.xlu0 %996, %v939
      %v998 = vpop.permute.xlu0 %997
      %1001 = vset.pattern.permute.xlu0 0
      %1002 = vperm.xlu0 %1001, %v940
      %v1003 = vpop.permute.xlu0 %1002
      %1006 = vset.pattern.permute.xlu0 0
      %1007 = vperm.xlu0 %1006, %v941
      %v1008 = vpop.permute.xlu0 %1007
      %1011 = vset.pattern.permute.xlu0 0
      %1012 = vperm.xlu0 %1011, %v942
      %v1013 = vpop.permute.xlu0 %1012
      %1016 = vset.pattern.permute.xlu0 0
      %1017 = vperm.xlu0 %1016, %v943
      %v1018 = vpop.permute.xlu0 %1017
      %1021 = vset.pattern.permute.xlu0 0
      %1022 = vperm.xlu0 %1021, %v944
      %v1023 = vpop.permute.xlu0 %1022
      %v1026 = vsel %vm880, %v782, 0
      %v1029 = vsel %vm880, %v787, 0
      %v1032 = vsel %vm880, %v792, 0
      %v1035 = vsel %vm880, %v797, 0
      %v1038 = vsel %vm880, %v802, 0
      %v1041 = vsel %vm880, %v807, 0
      %v1044 = vsel %vm880, %v812, 0
      %v1047 = vsel %vm880, %v817, 0
      %v1050 = vsel %vm880, %v822, 0
      %v1053 = vsel %vm880, %v827, 0
      %v1056 = vsel %vm880, %v832, 0
      %v1059 = vsel %vm880, %v837, 0
      %v1062 = vsel %vm880, %v842, 0
      %v1065 = vsel %vm880, %v847, 0
      %v1068 = vsel %vm880, %v852, 0
      %v1071 = vsel %vm880, %v857, 0
      %vm1073 = vcmask 1040384
      %v1075 = vsel %vm1073, %v863, 0
      %1077 = vmatprep.subr.mxu0 0.0
      %1078 = vmatpush1.msra.mxu0 %v860
      %1079 = vmatprep.subr.mxu0 0.0
      %1080 = vmatpush1.msra.mxu0 %v861
      %1081 = vmatprep.subr.mxu0 0.0
      %1082 = vmatpush1.msra.mxu0 %v862
      %1083 = vmatprep.subr.mxu0 0.0
      %1084 = vmatpush1.msra.mxu0 %v1075
      %1085 = vmatprep.subr.mxu0 0.0
      %1086 = vmatpush1.msra.mxu0 0.0
      %1087 = vmatprep.subr.mxu0 0.0
      %1088 = vmatpush1.msra.mxu0 0.0
      %1089 = vmatprep.subr.mxu0 0.0
      %1090 = vmatpush1.msra.mxu0 0.0
      %1091 = vmatprep.subr.mxu0 0.0
      %1092 = vmatpush1.msra.mxu0 0.0
      %1093 = vmatprep.subr.mxu0 0.0
      %1094 = vmatpush1.msra.mxu0 0.0
      %1095 = vmatprep.subr.mxu0 0.0
      %1096 = vmatpush1.msra.mxu0 0.0
      %1097 = vmatprep.subr.mxu0 0.0
      %1098 = vmatpush1.msra.mxu0 0.0
      %1099 = vmatprep.subr.mxu0 0.0
      %1100 = vmatpush1.msra.mxu0 0.0
      %1101 = vmatprep.subr.mxu0 0.0
      %1102 = vmatpush1.msra.mxu0 0.0
      %1103 = vmatprep.subr.mxu0 0.0
      %1104 = vmatpush1.msra.mxu0 0.0
      %1105 = vmatprep.subr.mxu0 0.0
      %1106 = vmatpush1.msra.mxu0 0.0
      %1107 = vmatprep.subr.mxu0 0.0
      %1108 = vmatpush1.msra.mxu0 0.0
      %1109 = vmatprep.subr.mxu0 0.0
      %1110 = vmatpush1.msra.mxu0 0.0
      %1111 = vmatprep.subr.mxu0 0.0
      %1112 = vmatpush1.msra.mxu0 0.0
      %1113 = vmatprep.subr.mxu0 0.0
      %1114 = vmatpush1.msra.mxu0 0.0
      %1115 = vmatprep.subr.mxu0 0.0
      %1116 = vmatpush1.msra.mxu0 0.0
      %1117 = vmatprep.subr.mxu0 0.0
      %1118 = vmatpush1.msra.mxu0 0.0
      %1119 = vmatprep.subr.mxu0 0.0
      %1120 = vmatpush1.msra.mxu0 0.0
      %1121 = vmatprep.subr.mxu0 0.0
      %1122 = vmatpush1.msra.mxu0 0.0
      %1123 = vmatprep.subr.mxu0 0.0
      %1124 = vmatpush1.msra.mxu0 0.0
      %1125 = vmatprep.subr.mxu0 0.0
      %1126 = vmatpush1.msra.mxu0 0.0
      %1127 = vmatprep.subr.mxu0 0.0
      %1128 = vmatpush1.msra.mxu0 0.0
      %1129 = vmatprep.subr.mxu0 0.0
      %1130 = vmatpush1.msra.mxu0 0.0
      %1131 = vmatprep.subr.mxu0 0.0
      %1132 = vmatpush1.msra.mxu0 0.0
      %1133 = vmatprep.subr.mxu0 0.0
      %1134 = vmatpush1.msra.mxu0 0.0
      %1135 = vmatprep.subr.mxu0 0.0
      %1136 = vmatpush1.msra.mxu0 0.0
      %1137 = vmatprep.subr.mxu0 0.0
      %1138 = vmatpush1.msra.mxu0 0.0
      %1139 = vmatprep.subr.mxu0 0.0
      %1140 = vmatpush1.msra.mxu0 0.0
      %1141 = vmatprep.mubr.f32.mxu0 0.0
      %1142 = vmatmul.mubr.f32.gmra.mrb[0].mxu0 %v1026
      %v1143 = vpop.f32.mrb[0].mxu0
      %v1144 = vadd.f32 %v948, %v1143
      %v1145 = vpop.f32.mrb[0].mxu0
      %1146 = vmatprep.mubr.f32.mxu0 0.0
      %1147 = vmatmul.mubr.f32.gmra.mrb[0].mxu0 %v1029
      %v1148 = vpop.f32.mrb[0].mxu0
      %v1149 = vadd.f32 %v953, %v1148
      %v1150 = vpop.f32.mrb[0].mxu0
      %1151 = vmatprep.mubr.f32.mxu0 0.0
      %1152 = vmatmul.mubr.f32.gmra.mrb[0].mxu0 %v1032
      %v1153 = vpop.f32.mrb[0].mxu0
      %v1154 = vadd.f32 %v958, %v1153
      %v1155 = vpop.f32.mrb[0].mxu0
      %1156 = vmatprep.mubr.f32.mxu0 0.0
      %1157 = vmatmul.mubr.f32.gmra.mrb[0].mxu0 %v1035
      %v1158 = vpop.f32.mrb[0].mxu0
      %v1159 = vadd.f32 %v963, %v1158
      %v1160 = vpop.f32.mrb[0].mxu0
      %1161 = vmatprep.mubr.f32.mxu0 0.0
      %1162 = vmatmul.mubr.f32.gmra.mrb[0].mxu0 %v1038
      %v1163 = vpop.f32.mrb[0].mxu0
      %v1164 = vadd.f32 %v968, %v1163
      %v1165 = vpop.f32.mrb[0].mxu0
      %1166 = vmatprep.mubr.f32.mxu0 0.0
      %1167 = vmatmul.mubr.f32.gmra.mrb[0].mxu0 %v1041
      %v1168 = vpop.f32.mrb[0].mxu0
      %v1169 = vadd.f32 %v973, %v1168
      %v1170 = vpop.f32.mrb[0].mxu0
      %1171 = vmatprep.mubr.f32.mxu0 0.0
      %1172 = vmatmul.mubr.f32.gmra.mrb[0].mxu0 %v1044
      %v1173 = vpop.f32.mrb[0].mxu0
      %v1174 = vadd.f32 %v978, %v1173
      %v1175 = vpop.f32.mrb[0].mxu0
      %1176 = vmatprep.mubr.f32.mxu0 0.0
      %1177 = vmatmul.mubr.f32.gmra.mrb[0].mxu0 %v1047
      %v1178 = vpop.f32.mrb[0].mxu0
      %v1179 = vadd.f32 %v983, %v1178
      %v1180 = vpop.f32.mrb[0].mxu0
      %1181 = vmatprep.mubr.f32.mxu0 0.0
      %1182 = vmatmul.mubr.f32.gmra.mrb[0].mxu0 %v1050
      %v1183 = vpop.f32.mrb[0].mxu0
      %v1184 = vadd.f32 %v988, %v1183
      %v1185 = vpop.f32.mrb[0].mxu0
      %1186 = vmatprep.mubr.f32.mxu0 0.0
      %1187 = vmatmul.mubr.f32.gmra.mrb[0].mxu0 %v1053
      %v1188 = vpop.f32.mrb[0].mxu0
      %v1189 = vadd.f32 %v993, %v1188
      %v1190 = vpop.f32.mrb[0].mxu0
      %1191 = vmatprep.mubr.f32.mxu0 0.0
      %1192 = vmatmul.mubr.f32.gmra.mrb[0].mxu0 %v1056
      %v1193 = vpop.f32.mrb[0].mxu0
      %v1194 = vadd.f32 %v998, %v1193
      %v1195 = vpop.f32.mrb[0].mxu0
      %1196 = vmatprep.mubr.f32.mxu0 0.0
      %1197 = vmatmul.mubr.f32.gmra.mrb[0].mxu0 %v1059
      %v1198 = vpop.f32.mrb[0].mxu0
      %v1199 = vadd.f32 %v1003, %v1198
      %v1200 = vpop.f32.mrb[0].mxu0
      %1201 = vmatprep.mubr.f32.mxu0 0.0
      %1202 = vmatmul.mubr.f32.gmra.mrb[0].mxu0 %v1062
      %v1203 = vpop.f32.mrb[0].mxu0
      %v1204 = vadd.f32 %v1008, %v1203
      %v1205 = vpop.f32.mrb[0].mxu0
      %1206 = vmatprep.mubr.f32.mxu0 0.0
      %1207 = vmatmul.mubr.f32.gmra.mrb[0].mxu0 %v1065
      %v1208 = vpop.f32.mrb[0].mxu0
      %v1209 = vadd.f32 %v1013, %v1208
      %v1210 = vpop.f32.mrb[0].mxu0
      %1211 = vmatprep.mubr.f32.mxu0 0.0
      %1212 = vmatmul.mubr.f32.gmra.mrb[0].mxu0 %v1068
      %v1213 = vpop.f32.mrb[0].mxu0
      %v1214 = vadd.f32 %v1018, %v1213
      %v1215 = vpop.f32.mrb[0].mxu0
      %1216 = vmatprep.mubr.f32.mxu0 0.0
      %1217 = vmatmul.mubr.f32.gmra.mrb[0].mxu0 %v1071
      %v1218 = vpop.f32.mrb[0].mxu0
      %v1219 = vadd.f32 %v1023, %v1218
      %v1220 = vpop.f32.mrb[0].mxu0
      %1221 = vdwg.mxu0
      %v1222 = vlaneseq
      %v1223 = vshrl.u32 %v1222, 7
      %v1224 = vsub.s32 0, %v1223
      %v1225 = vrot.slane %v581, %v1224
      %v1226 = vmul.f32 %v599, %v1225
      %v1227 = vmul.f32 %v600, %v1225
      %v1228 = vmul.f32 %v601, %v1225
      %v1229 = vmul.f32 %v602, %v1225
      %v1230 = vsel %vm880, %v1226, 0.0
      %1231 = vadd.xlane.f32.xlu0 %v1230
      %v1232 = vpop.xlane.xlu0 %1231
      %v1233 = vsel %vm880, %v1227, 0.0
      %1234 = vadd.xlane.f32.xlu0 %v1233
      %v1235 = vpop.xlane.xlu0 %1234
      %v1236 = vsel %vm880, %v1228, 0.0
      %1237 = vadd.xlane.f32.xlu0 %v1236
      %v1238 = vpop.xlane.xlu0 %1237
      %vm1239 = vcmask 196608
      %v1240 = vsel %vm1239, %v1229, 0.0
      %1241 = vadd.xlane.f32.xlu0 %v1240
      %v1242 = vpop.xlane.xlu0 %1241
      %v1243 = vlaneseq
      %v1244 = vshrl.u32 %v1243, 7
      %v1245 = vsub.s32 0, %v1244
      %v1246 = vrot.slane %v504, %v1245
      %v1247 = vsub.f32 %v1246, %v1232
      %v1248 = vsub.f32 %v1246, %v1235
      %v1249 = vsub.f32 %v1246, %v1238
      %v1250 = vsub.f32 %v1246, %v1242
      %v1251 = vtanh.pop %v1247
      %v1252 = vtanh.pop %v1248
      %v1253 = vtanh.pop %v1249
      %v1254 = vtanh.pop %v1250
      %v1255 = vld [vmem:[%s8] sm:$0xff]
      %v1256 = vld [vmem:[%s8 + $0x8] sm:$0xff]
      %v1257 = vld [vmem:[%s8 + $0x10] sm:$0xff]
      %v1258 = vld [vmem:[%s8 + $0x18] sm:$0xff]
      %v1259 = vld [vmem:[%s8 + $0x20] sm:$0xff]
      %v1260 = vld [vmem:[%s8 + $0x28] sm:$0xff]
      %v1261 = vld [vmem:[%s8 + $0x30] sm:$0xff]
      %v1262 = vld [vmem:[%s8 + $0x38] sm:$0xff]
      %v1263 = vld [vmem:[%s8 + $0x40] sm:$0xff]
      %v1264 = vld [vmem:[%s8 + $0x48] sm:$0xff]
      %v1265 = vld [vmem:[%s8 + $0x50] sm:$0xff]
      %v1266 = vld [vmem:[%s8 + $0x58] sm:$0xff]
      %v1267 = vld [vmem:[%s8 + $0x60] sm:$0xff]
      %v1268 = vld [vmem:[%s8 + $0x68] sm:$0xff]
      %v1269 = vld [vmem:[%s8 + $0x70] sm:$0xff]
      %v1270 = vld [vmem:[%s8 + $0x78] sm:$0xff]
      %1272 = vset.pattern.permute.xlu0 0
      %1273 = vperm.xlu0 %1272, %v1255
      %v1274 = vpop.permute.xlu0 %1273
      %1277 = vset.pattern.permute.xlu0 0
      %1278 = vperm.xlu0 %1277, %v1256
      %v1279 = vpop.permute.xlu0 %1278
      %1282 = vset.pattern.permute.xlu0 0
      %1283 = vperm.xlu0 %1282, %v1257
      %v1284 = vpop.permute.xlu0 %1283
      %1287 = vset.pattern.permute.xlu0 0
      %1288 = vperm.xlu0 %1287, %v1258
      %v1289 = vpop.permute.xlu0 %1288
      %1292 = vset.pattern.permute.xlu0 0
      %1293 = vperm.xlu0 %1292, %v1259
      %v1294 = vpop.permute.xlu0 %1293
      %1297 = vset.pattern.permute.xlu0 0
      %1298 = vperm.xlu0 %1297, %v1260
      %v1299 = vpop.permute.xlu0 %1298
      %1302 = vset.pattern.permute.xlu0 0
      %1303 = vperm.xlu0 %1302, %v1261
      %v1304 = vpop.permute.xlu0 %1303
      %1307 = vset.pattern.permute.xlu0 0
      %1308 = vperm.xlu0 %1307, %v1262
      %v1309 = vpop.permute.xlu0 %1308
      %1312 = vset.pattern.permute.xlu0 0
      %1313 = vperm.xlu0 %1312, %v1263
      %v1314 = vpop.permute.xlu0 %1313
      %1317 = vset.pattern.permute.xlu0 0
      %1318 = vperm.xlu0 %1317, %v1264
      %v1319 = vpop.permute.xlu0 %1318
      %1322 = vset.pattern.permute.xlu0 0
      %1323 = vperm.xlu0 %1322, %v1265
      %v1324 = vpop.permute.xlu0 %1323
      %1327 = vset.pattern.permute.xlu0 0
      %1328 = vperm.xlu0 %1327, %v1266
      %v1329 = vpop.permute.xlu0 %1328
      %1332 = vset.pattern.permute.xlu0 0
      %1333 = vperm.xlu0 %1332, %v1267
      %v1334 = vpop.permute.xlu0 %1333
      %1337 = vset.pattern.permute.xlu0 0
      %1338 = vperm.xlu0 %1337, %v1268
      %v1339 = vpop.permute.xlu0 %1338
      %1342 = vset.pattern.permute.xlu0 0
      %1343 = vperm.xlu0 %1342, %v1269
      %v1344 = vpop.permute.xlu0 %1343
      %1347 = vset.pattern.permute.xlu0 0
      %1348 = vperm.xlu0 %1347, %v1270
      %v1349 = vpop.permute.xlu0 %1348
      %v1351 = vmul.f32 %v1274, %v782
      %v1352 = vmul.f32 %v1279, %v787
      %v1353 = vmul.f32 %v1284, %v792
      %v1354 = vmul.f32 %v1289, %v797
      %v1355 = vmul.f32 %v1294, %v802
      %v1356 = vmul.f32 %v1299, %v807
      %v1357 = vmul.f32 %v1304, %v812
      %v1358 = vmul.f32 %v1309, %v817
      %v1359 = vmul.f32 %v1314, %v822
      %v1360 = vmul.f32 %v1319, %v827
      %v1361 = vmul.f32 %v1324, %v832
      %v1362 = vmul.f32 %v1329, %v837
      %v1363 = vmul.f32 %v1334, %v842
      %v1364 = vmul.f32 %v1339, %v847
      %v1365 = vmul.f32 %v1344, %v852
      %v1366 = vmul.f32 %v1349, %v857
      %v1368 = vsel %vm880, %v1351, 0
      %v1371 = vsel %vm880, %v1352, 0
      %v1374 = vsel %vm880, %v1353, 0
      %v1377 = vsel %vm880, %v1354, 0
      %v1380 = vsel %vm880, %v1355, 0
      %v1383 = vsel %vm880, %v1356, 0
      %v1386 = vsel %vm880, %v1357, 0
      %v1389 = vsel %vm880, %v1358, 0
      %v1392 = vsel %vm880, %v1359, 0
      %v1395 = vsel %vm880, %v1360, 0
      %v1398 = vsel %vm880, %v1361, 0
      %v1401 = vsel %vm880, %v1362, 0
      %v1404 = vsel %vm880, %v1363, 0
      %v1407 = vsel %vm880, %v1364, 0
      %v1410 = vsel %vm880, %v1365, 0
      %v1413 = vsel %vm880, %v1366, 0
      %v1416 = vsel %vm1073, %v1254, 0
      %1418 = vmatprep.subr.mxu0 0.0
      %1419 = vmatpush1.msra.mxu0 %v1251
      %1420 = vmatprep.subr.mxu0 0.0
      %1421 = vmatpush1.msra.mxu0 %v1252
      %1422 = vmatprep.subr.mxu0 0.0
      %1423 = vmatpush1.msra.mxu0 %v1253
      %1424 = vmatprep.subr.mxu0 0.0
      %1425 = vmatpush1.msra.mxu0 %v1416
      %1426 = vmatprep.subr.mxu0 0.0
      %1427 = vmatpush1.msra.mxu0 0.0
      %1428 = vmatprep.subr.mxu0 0.0
      %1429 = vmatpush1.msra.mxu0 0.0
      %1430 = vmatprep.subr.mxu0 0.0
      %1431 = vmatpush1.msra.mxu0 0.0
      %1432 = vmatprep.subr.mxu0 0.0
      %1433 = vmatpush1.msra.mxu0 0.0
      %1434 = vmatprep.subr.mxu0 0.0
      %1435 = vmatpush1.msra.mxu0 0.0
      %1436 = vmatprep.subr.mxu0 0.0
      %1437 = vmatpush1.msra.mxu0 0.0
      %1438 = vmatprep.subr.mxu0 0.0
      %1439 = vmatpush1.msra.mxu0 0.0
      %1440 = vmatprep.subr.mxu0 0.0
      %1441 = vmatpush1.msra.mxu0 0.0
      %1442 = vmatprep.subr.mxu0 0.0
      %1443 = vmatpush1.msra.mxu0 0.0
      %1444 = vmatprep.subr.mxu0 0.0
      %1445 = vmatpush1.msra.mxu0 0.0
      %1446 = vmatprep.subr.mxu0 0.0
      %1447 = vmatpush1.msra.mxu0 0.0
      %1448 = vmatprep.subr.mxu0 0.0
      %1449 = vmatpush1.msra.mxu0 0.0
      %1450 = vmatprep.subr.mxu0 0.0
      %1451 = vmatpush1.msra.mxu0 0.0
      %1452 = vmatprep.subr.mxu0 0.0
      %1453 = vmatpush1.msra.mxu0 0.0
      %1454 = vmatprep.subr.mxu0 0.0
      %1455 = vmatpush1.msra.mxu0 0.0
      %1456 = vmatprep.subr.mxu0 0.0
      %1457 = vmatpush1.msra.mxu0 0.0
      %1458 = vmatprep.subr.mxu0 0.0
      %1459 = vmatpush1.msra.mxu0 0.0
      %1460 = vmatprep.subr.mxu0 0.0
      %1461 = vmatpush1.msra.mxu0 0.0
      %1462 = vmatprep.subr.mxu0 0.0
      %1463 = vmatpush1.msra.mxu0 0.0
      %1464 = vmatprep.subr.mxu0 0.0
      %1465 = vmatpush1.msra.mxu0 0.0
      %1466 = vmatprep.subr.mxu0 0.0
      %1467 = vmatpush1.msra.mxu0 0.0
      %1468 = vmatprep.subr.mxu0 0.0
      %1469 = vmatpush1.msra.mxu0 0.0
      %1470 = vmatprep.subr.mxu0 0.0
      %1471 = vmatpush1.msra.mxu0 0.0
      %1472 = vmatprep.subr.mxu0 0.0
      %1473 = vmatpush1.msra.mxu0 0.0
      %1474 = vmatprep.subr.mxu0 0.0
      %1475 = vmatpush1.msra.mxu0 0.0
      %1476 = vmatprep.subr.mxu0 0.0
      %1477 = vmatpush1.msra.mxu0 0.0
      %1478 = vmatprep.subr.mxu0 0.0
      %1479 = vmatpush1.msra.mxu0 0.0
      %1480 = vmatprep.subr.mxu0 0.0
      %1481 = vmatpush1.msra.mxu0 0.0
      %1482 = vmatprep.mubr.f32.mxu0 0.0
      %1483 = vmatmul.mubr.f32.gmra.mrb[0].mxu0 %v1368
      %v1484 = vpop.f32.mrb[0].mxu0
      %v1485 = vadd.f32 0.0, %v1484
      %v1486 = vpop.f32.mrb[0].mxu0
      %1487 = vmatprep.mubr.f32.mxu0 0.0
      %1488 = vmatmul.mubr.f32.gmra.mrb[0].mxu0 %v1371
      %v1489 = vpop.f32.mrb[0].mxu0
      %v1490 = vadd.f32 0.0, %v1489
      %v1491 = vpop.f32.mrb[0].mxu0
      %1492 = vmatprep.mubr.f32.mxu0 0.0
      %1493 = vmatmul.mubr.f32.gmra.mrb[0].mxu0 %v1374
      %v1494 = vpop.f32.mrb[0].mxu0
      %v1495 = vadd.f32 0.0, %v1494
      %v1496 = vpop.f32.mrb[0].mxu0
      %1497 = vmatprep.mubr.f32.mxu0 0.0
      %1498 = vmatmul.mubr.f32.gmra.mrb[0].mxu0 %v1377
      %v1499 = vpop.f32.mrb[0].mxu0
      %v1500 = vadd.f32 0.0, %v1499
      %v1501 = vpop.f32.mrb[0].mxu0
      %1502 = vmatprep.mubr.f32.mxu0 0.0
      %1503 = vmatmul.mubr.f32.gmra.mrb[0].mxu0 %v1380
      %v1504 = vpop.f32.mrb[0].mxu0
      %v1505 = vadd.f32 0.0, %v1504
      %v1506 = vpop.f32.mrb[0].mxu0
      %1507 = vmatprep.mubr.f32.mxu0 0.0
      %1508 = vmatmul.mubr.f32.gmra.mrb[0].mxu0 %v1383
      %v1509 = vpop.f32.mrb[0].mxu0
      %v1510 = vadd.f32 0.0, %v1509
      %v1511 = vpop.f32.mrb[0].mxu0
      %1512 = vmatprep.mubr.f32.mxu0 0.0
      %1513 = vmatmul.mubr.f32.gmra.mrb[0].mxu0 %v1386
      %v1514 = vpop.f32.mrb[0].mxu0
      %v1515 = vadd.f32 0.0, %v1514
      %v1516 = vpop.f32.mrb[0].mxu0
      %1517 = vmatprep.mubr.f32.mxu0 0.0
      %1518 = vmatmul.mubr.f32.gmra.mrb[0].mxu0 %v1389
      %v1519 = vpop.f32.mrb[0].mxu0
      %v1520 = vadd.f32 0.0, %v1519
      %v1521 = vpop.f32.mrb[0].mxu0
      %1522 = vmatprep.mubr.f32.mxu0 0.0
      %1523 = vmatmul.mubr.f32.gmra.mrb[0].mxu0 %v1392
      %v1524 = vpop.f32.mrb[0].mxu0
      %v1525 = vadd.f32 0.0, %v1524
      %v1526 = vpop.f32.mrb[0].mxu0
      %1527 = vmatprep.mubr.f32.mxu0 0.0
      %1528 = vmatmul.mubr.f32.gmra.mrb[0].mxu0 %v1395
      %v1529 = vpop.f32.mrb[0].mxu0
      %v1530 = vadd.f32 0.0, %v1529
      %v1531 = vpop.f32.mrb[0].mxu0
      %1532 = vmatprep.mubr.f32.mxu0 0.0
      %1533 = vmatmul.mubr.f32.gmra.mrb[0].mxu0 %v1398
      %v1534 = vpop.f32.mrb[0].mxu0
      %v1535 = vadd.f32 0.0, %v1534
      %v1536 = vpop.f32.mrb[0].mxu0
      %1537 = vmatprep.mubr.f32.mxu0 0.0
      %1538 = vmatmul.mubr.f32.gmra.mrb[0].mxu0 %v1401
      %v1539 = vpop.f32.mrb[0].mxu0
      %v1540 = vadd.f32 0.0, %v1539
      %v1541 = vpop.f32.mrb[0].mxu0
      %1542 = vmatprep.mubr.f32.mxu0 0.0
      %1543 = vmatmul.mubr.f32.gmra.mrb[0].mxu0 %v1404
      %v1544 = vpop.f32.mrb[0].mxu0
      %v1545 = vadd.f32 0.0, %v1544
      %v1546 = vpop.f32.mrb[0].mxu0
      %1547 = vmatprep.mubr.f32.mxu0 0.0
      %1548 = vmatmul.mubr.f32.gmra.mrb[0].mxu0 %v1407
      %v1549 = vpop.f32.mrb[0].mxu0
      %v1550 = vadd.f32 0.0, %v1549
      %v1551 = vpop.f32.mrb[0].mxu0
      %1552 = vmatprep.mubr.f32.mxu0 0.0
      %1553 = vmatmul.mubr.f32.gmra.mrb[0].mxu0 %v1410
      %v1554 = vpop.f32.mrb[0].mxu0
      %v1555 = vadd.f32 0.0, %v1554
      %v1556 = vpop.f32.mrb[0].mxu0
      %1557 = vmatprep.mubr.f32.mxu0 0.0
      %1558 = vmatmul.mubr.f32.gmra.mrb[0].mxu0 %v1413
      %v1559 = vpop.f32.mrb[0].mxu0
      %v1560 = vadd.f32 0.0, %v1559
      %v1561 = vpop.f32.mrb[0].mxu0
      %1562 = vdwg.mxu0
      %v1563 = vadd.f32 %v1144, %v1485
      %v1564 = vadd.f32 %v1149, %v1490
      %v1565 = vadd.f32 %v1154, %v1495
      %v1566 = vadd.f32 %v1159, %v1500
      %v1567 = vadd.f32 %v1164, %v1505
      %v1568 = vadd.f32 %v1169, %v1510
      %v1569 = vadd.f32 %v1174, %v1515
      %v1570 = vadd.f32 %v1179, %v1520
      %v1571 = vadd.f32 %v1184, %v1525
      %v1572 = vadd.f32 %v1189, %v1530
      %v1573 = vadd.f32 %v1194, %v1535
      %v1574 = vadd.f32 %v1199, %v1540
      %v1575 = vadd.f32 %v1204, %v1545
      %v1576 = vadd.f32 %v1209, %v1550
      %v1577 = vadd.f32 %v1214, %v1555
      %v1578 = vadd.f32 %v1219, %v1560
      %v1579 = vlaneseq
      %v1580 = vshrl.u32 %v1579, 7
      %v1581 = vsub.s32 1, %v1580
      %v1582 = vrot.slane %v581, %v1581
      %v1583 = vmul.f32 %v599, %v1582
      %v1584 = vmul.f32 %v600, %v1582
      %v1585 = vmul.f32 %v601, %v1582
      %v1586 = vmul.f32 %v602, %v1582
      %v1587 = vsel %vm880, %v1583, 0.0
      %1588 = vadd.xlane.f32.xlu0 %v1587
      %v1589 = vpop.xlane.xlu0 %1588
      %v1590 = vsel %vm880, %v1584, 0.0
      %1591 = vadd.xlane.f32.xlu0 %v1590
      %v1592 = vpop.xlane.xlu0 %1591
      %v1593 = vsel %vm880, %v1585, 0.0
      %1594 = vadd.xlane.f32.xlu0 %v1593
      %v1595 = vpop.xlane.xlu0 %1594
      %v1596 = vsel %vm1239, %v1586, 0.0
      %1597 = vadd.xlane.f32.xlu0 %v1596
      %v1598 = vpop.xlane.xlu0 %1597
      %v1599 = vlaneseq
      %v1600 = vshrl.u32 %v1599, 7
      %v1601 = vsub.s32 1, %v1600
      %v1602 = vrot.slane %v504, %v1601
      %v1603 = vsub.f32 %v1602, %v1589
      %v1604 = vsub.f32 %v1602, %v1592
      %v1605 = vsub.f32 %v1602, %v1595
      %v1606 = vsub.f32 %v1602, %v1598
      %v1607 = vtanh.pop %v1603
      %v1608 = vtanh.pop %v1604
      %v1609 = vtanh.pop %v1605
      %v1610 = vtanh.pop %v1606
      %s1611 = scalar_lea.vmem %s8, 128
      %v1612 = vld [vmem:[%s1611] sm:$0xff]
      %v1613 = vld [vmem:[%s1611 + $0x8] sm:$0xff]
      %v1614 = vld [vmem:[%s1611 + $0x10] sm:$0xff]
      %v1615 = vld [vmem:[%s1611 + $0x18] sm:$0xff]
      %v1616 = vld [vmem:[%s1611 + $0x20] sm:$0xff]
      %v1617 = vld [vmem:[%s1611 + $0x28] sm:$0xff]
      %v1618 = vld [vmem:[%s1611 + $0x30] sm:$0xff]
      %v1619 = vld [vmem:[%s1611 + $0x38] sm:$0xff]
      %v1620 = vld [vmem:[%s1611 + $0x40] sm:$0xff]
      %v1621 = vld [vmem:[%s1611 + $0x48] sm:$0xff]
      %v1622 = vld [vmem:[%s1611 + $0x50] sm:$0xff]
      %v1623 = vld [vmem:[%s1611 + $0x58] sm:$0xff]
      %v1624 = vld [vmem:[%s1611 + $0x60] sm:$0xff]
      %v1625 = vld [vmem:[%s1611 + $0x68] sm:$0xff]
      %v1626 = vld [vmem:[%s1611 + $0x70] sm:$0xff]
      %v1627 = vld [vmem:[%s1611 + $0x78] sm:$0xff]
      %1629 = vset.pattern.permute.xlu0 0
      %1630 = vperm.xlu0 %1629, %v1612
      %v1631 = vpop.permute.xlu0 %1630
      %1634 = vset.pattern.permute.xlu0 0
      %1635 = vperm.xlu0 %1634, %v1613
      %v1636 = vpop.permute.xlu0 %1635
      %1639 = vset.pattern.permute.xlu0 0
      %1640 = vperm.xlu0 %1639, %v1614
      %v1641 = vpop.permute.xlu0 %1640
      %1644 = vset.pattern.permute.xlu0 0
      %1645 = vperm.xlu0 %1644, %v1615
      %v1646 = vpop.permute.xlu0 %1645
      %1649 = vset.pattern.permute.xlu0 0
      %1650 = vperm.xlu0 %1649, %v1616
      %v1651 = vpop.permute.xlu0 %1650
      %1654 = vset.pattern.permute.xlu0 0
      %1655 = vperm.xlu0 %1654, %v1617
      %v1656 = vpop.permute.xlu0 %1655
      %1659 = vset.pattern.permute.xlu0 0
      %1660 = vperm.xlu0 %1659, %v1618
      %v1661 = vpop.permute.xlu0 %1660
      %1664 = vset.pattern.permute.xlu0 0
      %1665 = vperm.xlu0 %1664, %v1619
      %v1666 = vpop.permute.xlu0 %1665
      %1669 = vset.pattern.permute.xlu0 0
      %1670 = vperm.xlu0 %1669, %v1620
      %v1671 = vpop.permute.xlu0 %1670
      %1674 = vset.pattern.permute.xlu0 0
      %1675 = vperm.xlu0 %1674, %v1621
      %v1676 = vpop.permute.xlu0 %1675
      %1679 = vset.pattern.permute.xlu0 0
      %1680 = vperm.xlu0 %1679, %v1622
      %v1681 = vpop.permute.xlu0 %1680
      %1684 = vset.pattern.permute.xlu0 0
      %1685 = vperm.xlu0 %1684, %v1623
      %v1686 = vpop.permute.xlu0 %1685
      %1689 = vset.pattern.permute.xlu0 0
      %1690 = vperm.xlu0 %1689, %v1624
      %v1691 = vpop.permute.xlu0 %1690
      %1694 = vset.pattern.permute.xlu0 0
      %1695 = vperm.xlu0 %1694, %v1625
      %v1696 = vpop.permute.xlu0 %1695
      %1699 = vset.pattern.permute.xlu0 0
      %1700 = vperm.xlu0 %1699, %v1626
      %v1701 = vpop.permute.xlu0 %1700
      %1704 = vset.pattern.permute.xlu0 0
      %1705 = vperm.xlu0 %1704, %v1627
      %v1706 = vpop.permute.xlu0 %1705
      %v1708 = vmul.f32 %v1631, %v782
      %v1709 = vmul.f32 %v1636, %v787
      %v1710 = vmul.f32 %v1641, %v792
      %v1711 = vmul.f32 %v1646, %v797
      %v1712 = vmul.f32 %v1651, %v802
      %v1713 = vmul.f32 %v1656, %v807
      %v1714 = vmul.f32 %v1661, %v812
      %v1715 = vmul.f32 %v1666, %v817
      %v1716 = vmul.f32 %v1671, %v822
      %v1717 = vmul.f32 %v1676, %v827
      %v1718 = vmul.f32 %v1681, %v832
      %v1719 = vmul.f32 %v1686, %v837
      %v1720 = vmul.f32 %v1691, %v842
      %v1721 = vmul.f32 %v1696, %v847
      %v1722 = vmul.f32 %v1701, %v852
      %v1723 = vmul.f32 %v1706, %v857
      %v1725 = vsel %vm880, %v1708, 0
      %v1728 = vsel %vm880, %v1709, 0
      %v1731 = vsel %vm880, %v1710, 0
      %v1734 = vsel %vm880, %v1711, 0
      %v1737 = vsel %vm880, %v1712, 0
      %v1740 = vsel %vm880, %v1713, 0
      %v1743 = vsel %vm880, %v1714, 0
      %v1746 = vsel %vm880, %v1715, 0
      %v1749 = vsel %vm880, %v1716, 0
      %v1752 = vsel %vm880, %v1717, 0
      %v1755 = vsel %vm880, %v1718, 0
      %v1758 = vsel %vm880, %v1719, 0
      %v1761 = vsel %vm880, %v1720, 0
      %v1764 = vsel %vm880, %v1721, 0
      %v1767 = vsel %vm880, %v1722, 0
      %v1770 = vsel %vm880, %v1723, 0
      %v1773 = vsel %vm1073, %v1610, 0
      %1775 = vmatprep.subr.mxu0 0.0
      %1776 = vmatpush1.msra.mxu0 %v1607
      %1777 = vmatprep.subr.mxu0 0.0
      %1778 = vmatpush1.msra.mxu0 %v1608
      %1779 = vmatprep.subr.mxu0 0.0
      %1780 = vmatpush1.msra.mxu0 %v1609
      %1781 = vmatprep.subr.mxu0 0.0
      %1782 = vmatpush1.msra.mxu0 %v1773
      %1783 = vmatprep.subr.mxu0 0.0
      %1784 = vmatpush1.msra.mxu0 0.0
      %1785 = vmatprep.subr.mxu0 0.0
      %1786 = vmatpush1.msra.mxu0 0.0
      %1787 = vmatprep.subr.mxu0 0.0
      %1788 = vmatpush1.msra.mxu0 0.0
      %1789 = vmatprep.subr.mxu0 0.0
      %1790 = vmatpush1.msra.mxu0 0.0
      %1791 = vmatprep.subr.mxu0 0.0
      %1792 = vmatpush1.msra.mxu0 0.0
      %1793 = vmatprep.subr.mxu0 0.0
      %1794 = vmatpush1.msra.mxu0 0.0
      %1795 = vmatprep.subr.mxu0 0.0
      %1796 = vmatpush1.msra.mxu0 0.0
      %1797 = vmatprep.subr.mxu0 0.0
      %1798 = vmatpush1.msra.mxu0 0.0
      %1799 = vmatprep.subr.mxu0 0.0
      %1800 = vmatpush1.msra.mxu0 0.0
      %1801 = vmatprep.subr.mxu0 0.0
      %1802 = vmatpush1.msra.mxu0 0.0
      %1803 = vmatprep.subr.mxu0 0.0
      %1804 = vmatpush1.msra.mxu0 0.0
      %1805 = vmatprep.subr.mxu0 0.0
      %1806 = vmatpush1.msra.mxu0 0.0
      %1807 = vmatprep.subr.mxu0 0.0
      %1808 = vmatpush1.msra.mxu0 0.0
      %1809 = vmatprep.subr.mxu0 0.0
      %1810 = vmatpush1.msra.mxu0 0.0
      %1811 = vmatprep.subr.mxu0 0.0
      %1812 = vmatpush1.msra.mxu0 0.0
      %1813 = vmatprep.subr.mxu0 0.0
      %1814 = vmatpush1.msra.mxu0 0.0
      %1815 = vmatprep.subr.mxu0 0.0
      %1816 = vmatpush1.msra.mxu0 0.0
      %1817 = vmatprep.subr.mxu0 0.0
      %1818 = vmatpush1.msra.mxu0 0.0
      %1819 = vmatprep.subr.mxu0 0.0
      %1820 = vmatpush1.msra.mxu0 0.0
      %1821 = vmatprep.subr.mxu0 0.0
      %1822 = vmatpush1.msra.mxu0 0.0
      %1823 = vmatprep.subr.mxu0 0.0
      %1824 = vmatpush1.msra.mxu0 0.0
      %1825 = vmatprep.subr.mxu0 0.0
      %1826 = vmatpush1.msra.mxu0 0.0
      %1827 = vmatprep.subr.mxu0 0.0
      %1828 = vmatpush1.msra.mxu0 0.0
      %1829 = vmatprep.subr.mxu0 0.0
      %1830 = vmatpush1.msra.mxu0 0.0
      %1831 = vmatprep.subr.mxu0 0.0
      %1832 = vmatpush1.msra.mxu0 0.0
      %1833 = vmatprep.subr.mxu0 0.0
      %1834 = vmatpush1.msra.mxu0 0.0
      %1835 = vmatprep.subr.mxu0 0.0
      %1836 = vmatpush1.msra.mxu0 0.0
      %1837 = vmatprep.subr.mxu0 0.0
      %1838 = vmatpush1.msra.mxu0 0.0
      %1839 = vmatprep.mubr.f32.mxu0 0.0
      %1840 = vmatmul.mubr.f32.gmra.mrb[0].mxu0 %v1725
      %v1841 = vpop.f32.mrb[0].mxu0
      %v1842 = vadd.f32 0.0, %v1841
      %v1843 = vpop.f32.mrb[0].mxu0
      %1844 = vmatprep.mubr.f32.mxu0 0.0
      %1845 = vmatmul.mubr.f32.gmra.mrb[0].mxu0 %v1728
      %v1846 = vpop.f32.mrb[0].mxu0
      %v1847 = vadd.f32 0.0, %v1846
      %v1848 = vpop.f32.mrb[0].mxu0
      %1849 = vmatprep.mubr.f32.mxu0 0.0
      %1850 = vmatmul.mubr.f32.gmra.mrb[0].mxu0 %v1731
      %v1851 = vpop.f32.mrb[0].mxu0
      %v1852 = vadd.f32 0.0, %v1851
      %v1853 = vpop.f32.mrb[0].mxu0
      %1854 = vmatprep.mubr.f32.mxu0 0.0
      %1855 = vmatmul.mubr.f32.gmra.mrb[0].mxu0 %v1734
      %v1856 = vpop.f32.mrb[0].mxu0
      %v1857 = vadd.f32 0.0, %v1856
      %v1858 = vpop.f32.mrb[0].mxu0
      %1859 = vmatprep.mubr.f32.mxu0 0.0
      %1860 = vmatmul.mubr.f32.gmra.mrb[0].mxu0 %v1737
      %v1861 = vpop.f32.mrb[0].mxu0
      %v1862 = vadd.f32 0.0, %v1861
      %v1863 = vpop.f32.mrb[0].mxu0
      %1864 = vmatprep.mubr.f32.mxu0 0.0
      %1865 = vmatmul.mubr.f32.gmra.mrb[0].mxu0 %v1740
      %v1866 = vpop.f32.mrb[0].mxu0
      %v1867 = vadd.f32 0.0, %v1866
      %v1868 = vpop.f32.mrb[0].mxu0
      %1869 = vmatprep.mubr.f32.mxu0 0.0
      %1870 = vmatmul.mubr.f32.gmra.mrb[0].mxu0 %v1743
      %v1871 = vpop.f32.mrb[0].mxu0
      %v1872 = vadd.f32 0.0, %v1871
      %v1873 = vpop.f32.mrb[0].mxu0
      %1874 = vmatprep.mubr.f32.mxu0 0.0
      %1875 = vmatmul.mubr.f32.gmra.mrb[0].mxu0 %v1746
      %v1876 = vpop.f32.mrb[0].mxu0
      %v1877 = vadd.f32 0.0, %v1876
      %v1878 = vpop.f32.mrb[0].mxu0
      %1879 = vmatprep.mubr.f32.mxu0 0.0
      %1880 = vmatmul.mubr.f32.gmra.mrb[0].mxu0 %v1749
      %v1881 = vpop.f32.mrb[0].mxu0
      %v1882 = vadd.f32 0.0, %v1881
      %v1883 = vpop.f32.mrb[0].mxu0
      %1884 = vmatprep.mubr.f32.mxu0 0.0
      %1885 = vmatmul.mubr.f32.gmra.mrb[0].mxu0 %v1752
      %v1886 = vpop.f32.mrb[0].mxu0
      %v1887 = vadd.f32 0.0, %v1886
      %v1888 = vpop.f32.mrb[0].mxu0
      %1889 = vmatprep.mubr.f32.mxu0 0.0
      %1890 = vmatmul.mubr.f32.gmra.mrb[0].mxu0 %v1755
      %v1891 = vpop.f32.mrb[0].mxu0
      %v1892 = vadd.f32 0.0, %v1891
      %v1893 = vpop.f32.mrb[0].mxu0
      %1894 = vmatprep.mubr.f32.mxu0 0.0
      %1895 = vmatmul.mubr.f32.gmra.mrb[0].mxu0 %v1758
      %v1896 = vpop.f32.mrb[0].mxu0
      %v1897 = vadd.f32 0.0, %v1896
      %v1898 = vpop.f32.mrb[0].mxu0
      %1899 = vmatprep.mubr.f32.mxu0 0.0
      %1900 = vmatmul.mubr.f32.gmra.mrb[0].mxu0 %v1761
      %v1901 = vpop.f32.mrb[0].mxu0
      %v1902 = vadd.f32 0.0, %v1901
      %v1903 = vpop.f32.mrb[0].mxu0
      %1904 = vmatprep.mubr.f32.mxu0 0.0
      %1905 = vmatmul.mubr.f32.gmra.mrb[0].mxu0 %v1764
      %v1906 = vpop.f32.mrb[0].mxu0
      %v1907 = vadd.f32 0.0, %v1906
      %v1908 = vpop.f32.mrb[0].mxu0
      %1909 = vmatprep.mubr.f32.mxu0 0.0
      %1910 = vmatmul.mubr.f32.gmra.mrb[0].mxu0 %v1767
      %v1911 = vpop.f32.mrb[0].mxu0
      %v1912 = vadd.f32 0.0, %v1911
      %v1913 = vpop.f32.mrb[0].mxu0
      %1914 = vmatprep.mubr.f32.mxu0 0.0
      %1915 = vmatmul.mubr.f32.gmra.mrb[0].mxu0 %v1770
      %v1916 = vpop.f32.mrb[0].mxu0
      %v1917 = vadd.f32 0.0, %v1916
      %v1918 = vpop.f32.mrb[0].mxu0
      %1919 = vdwg.mxu0
      %v1920 = vadd.f32 %v1563, %v1842
      %v1921 = vadd.f32 %v1564, %v1847
      %v1922 = vadd.f32 %v1565, %v1852
      %v1923 = vadd.f32 %v1566, %v1857
      %v1924 = vadd.f32 %v1567, %v1862
      %v1925 = vadd.f32 %v1568, %v1867
      %v1926 = vadd.f32 %v1569, %v1872
      %v1927 = vadd.f32 %v1570, %v1877
      %v1928 = vadd.f32 %v1571, %v1882
      %v1929 = vadd.f32 %v1572, %v1887
      %v1930 = vadd.f32 %v1573, %v1892
      %v1931 = vadd.f32 %v1574, %v1897
      %v1932 = vadd.f32 %v1575, %v1902
      %v1933 = vadd.f32 %v1576, %v1907
      %v1934 = vadd.f32 %v1577, %v1912
      %v1935 = vadd.f32 %v1578, %v1917
      %s1936 = scalar_lea.vmem %s1, 128
      %v1937 = vld [vmem:[%s1936] sm:$0xff]
      %v1938 = vld [vmem:[%s1936 + $0x8] sm:$0xff]
      %v1939 = vld [vmem:[%s1936 + $0x10] sm:$0xff]
      %v1940 = vld [vmem:[%s1936 + $0x18] sm:$0xff]
      %v1941 = vld [vmem:[%s1936 + $0x20] sm:$0xff]
      %v1942 = vld [vmem:[%s1936 + $0x28] sm:$0xff]
      %v1943 = vld [vmem:[%s1936 + $0x30] sm:$0xff]
      %v1944 = vld [vmem:[%s1936 + $0x38] sm:$0xff]
      %v1945 = vld [vmem:[%s1936 + $0x40] sm:$0xff]
      %v1946 = vld [vmem:[%s1936 + $0x48] sm:$0xff]
      %v1947 = vld [vmem:[%s1936 + $0x50] sm:$0xff]
      %v1948 = vld [vmem:[%s1936 + $0x58] sm:$0xff]
      %v1949 = vld [vmem:[%s1936 + $0x60] sm:$0xff]
      %v1950 = vld [vmem:[%s1936 + $0x68] sm:$0xff]
      %v1951 = vld [vmem:[%s1936 + $0x70] sm:$0xff]
      %v1952 = vld [vmem:[%s1936 + $0x78] sm:$0xff]
      %s1953 = scalar_lea.vmem %s2, 128
      %v1954 = vld [vmem:[%s1953] sm:$0xff]
      %v1955 = vld [vmem:[%s1953 + $0x8] sm:$0xff]
      %v1956 = vld [vmem:[%s1953 + $0x10] sm:$0xff]
      %v1957 = vld [vmem:[%s1953 + $0x18] sm:$0xff]
      %v1958 = vld [vmem:[%s1953 + $0x20] sm:$0xff]
      %v1959 = vld [vmem:[%s1953 + $0x28] sm:$0xff]
      %v1960 = vld [vmem:[%s1953 + $0x30] sm:$0xff]
      %v1961 = vld [vmem:[%s1953 + $0x38] sm:$0xff]
      %v1962 = vld [vmem:[%s1953 + $0x40] sm:$0xff]
      %v1963 = vld [vmem:[%s1953 + $0x48] sm:$0xff]
      %v1964 = vld [vmem:[%s1953 + $0x50] sm:$0xff]
      %v1965 = vld [vmem:[%s1953 + $0x58] sm:$0xff]
      %v1966 = vld [vmem:[%s1953 + $0x60] sm:$0xff]
      %v1967 = vld [vmem:[%s1953 + $0x68] sm:$0xff]
      %v1968 = vld [vmem:[%s1953 + $0x70] sm:$0xff]
      %v1969 = vld [vmem:[%s1953 + $0x78] sm:$0xff]
      %1971 = vset.pattern.permute.xlu0 0
      %1972 = vperm.xlu0 %1971, %v1954
      %v1973 = vpop.permute.xlu0 %1972
      %1976 = vset.pattern.permute.xlu0 0
      %1977 = vperm.xlu0 %1976, %v1955
      %v1978 = vpop.permute.xlu0 %1977
      %1981 = vset.pattern.permute.xlu0 0
      %1982 = vperm.xlu0 %1981, %v1956
      %v1983 = vpop.permute.xlu0 %1982
      %1986 = vset.pattern.permute.xlu0 0
      %1987 = vperm.xlu0 %1986, %v1957
      %v1988 = vpop.permute.xlu0 %1987
      %1991 = vset.pattern.permute.xlu0 0
      %1992 = vperm.xlu0 %1991, %v1958
      %v1993 = vpop.permute.xlu0 %1992
      %1996 = vset.pattern.permute.xlu0 0
      %1997 = vperm.xlu0 %1996, %v1959
      %v1998 = vpop.permute.xlu0 %1997
      %2001 = vset.pattern.permute.xlu0 0
      %2002 = vperm.xlu0 %2001, %v1960
      %v2003 = vpop.permute.xlu0 %2002
      %2006 = vset.pattern.permute.xlu0 0
      %2007 = vperm.xlu0 %2006, %v1961
      %v2008 = vpop.permute.xlu0 %2007
      %2011 = vset.pattern.permute.xlu0 0
      %2012 = vperm.xlu0 %2011, %v1962
      %v2013 = vpop.permute.xlu0 %2012
      %2016 = vset.pattern.permute.xlu0 0
      %2017 = vperm.xlu0 %2016, %v1963
      %v2018 = vpop.permute.xlu0 %2017
      %2021 = vset.pattern.permute.xlu0 0
      %2022 = vperm.xlu0 %2021, %v1964
      %v2023 = vpop.permute.xlu0 %2022
      %2026 = vset.pattern.permute.xlu0 0
      %2027 = vperm.xlu0 %2026, %v1965
      %v2028 = vpop.permute.xlu0 %2027
      %2031 = vset.pattern.permute.xlu0 0
      %2032 = vperm.xlu0 %2031, %v1966
      %v2033 = vpop.permute.xlu0 %2032
      %2036 = vset.pattern.permute.xlu0 0
      %2037 = vperm.xlu0 %2036, %v1967
      %v2038 = vpop.permute.xlu0 %2037
      %2041 = vset.pattern.permute.xlu0 0
      %2042 = vperm.xlu0 %2041, %v1968
      %v2043 = vpop.permute.xlu0 %2042
      %2046 = vset.pattern.permute.xlu0 0
      %2047 = vperm.xlu0 %2046, %v1969
      %v2048 = vpop.permute.xlu0 %2047
      %2050 = vmatprep.subr.mxu0 0.0
      %2051 = vmatpush1.msra.mxu0 %v414
      %2052 = vmatprep.subr.mxu0 0.0
      %2053 = vmatpush1.msra.mxu0 %v415
      %2054 = vmatprep.subr.mxu0 0.0
      %2055 = vmatpush1.msra.mxu0 %v416
      %2056 = vmatprep.subr.mxu0 0.0
      %2057 = vmatpush1.msra.mxu0 %v417
      %2058 = vmatprep.subr.mxu0 0.0
      %2059 = vmatpush1.msra.mxu0 %v418
      %2060 = vmatprep.subr.mxu0 0.0
      %2061 = vmatpush1.msra.mxu0 %v419
      %2062 = vmatprep.subr.mxu0 0.0
      %2063 = vmatpush1.msra.mxu0 %v420
      %2064 = vmatprep.subr.mxu0 0.0
      %2065 = vmatpush1.msra.mxu0 %v421
      %2066 = vmatprep.subr.mxu0 0.0
      %2067 = vmatpush1.msra.mxu0 %v422
      %2068 = vmatprep.subr.mxu0 0.0
      %2069 = vmatpush1.msra.mxu0 %v423
      %2070 = vmatprep.subr.mxu0 0.0
      %2071 = vmatpush1.msra.mxu0 %v424
      %2072 = vmatprep.subr.mxu0 0.0
      %2073 = vmatpush1.msra.mxu0 %v425
      %2074 = vmatprep.subr.mxu0 0.0
      %2075 = vmatpush1.msra.mxu0 %v426
      %2076 = vmatprep.subr.mxu0 0.0
      %2077 = vmatpush1.msra.mxu0 %v427
      %2078 = vmatprep.subr.mxu0 0.0
      %2079 = vmatpush1.msra.mxu0 %v428
      %2080 = vmatprep.subr.mxu0 0.0
      %2081 = vmatpush1.msra.mxu0 %v429
      %2082 = vmatprep.subr.mxu0 0.0
      %2083 = vmatpush1.msra.mxu0 0.0
      %2084 = vmatprep.subr.mxu0 0.0
      %2085 = vmatpush1.msra.mxu0 0.0
      %2086 = vmatprep.subr.mxu0 0.0
      %2087 = vmatpush1.msra.mxu0 0.0
      %2088 = vmatprep.subr.mxu0 0.0
      %2089 = vmatpush1.msra.mxu0 0.0
      %2090 = vmatprep.subr.mxu0 0.0
      %2091 = vmatpush1.msra.mxu0 0.0
      %2092 = vmatprep.subr.mxu0 0.0
      %2093 = vmatpush1.msra.mxu0 0.0
      %2094 = vmatprep.subr.mxu0 0.0
      %2095 = vmatpush1.msra.mxu0 0.0
      %2096 = vmatprep.subr.mxu0 0.0
      %2097 = vmatpush1.msra.mxu0 0.0
      %2098 = vmatprep.subr.mxu0 0.0
      %2099 = vmatpush1.msra.mxu0 0.0
      %2100 = vmatprep.subr.mxu0 0.0
      %2101 = vmatpush1.msra.mxu0 0.0
      %2102 = vmatprep.subr.mxu0 0.0
      %2103 = vmatpush1.msra.mxu0 0.0
      %2104 = vmatprep.subr.mxu0 0.0
      %2105 = vmatpush1.msra.mxu0 0.0
      %2106 = vmatprep.subr.mxu0 0.0
      %2107 = vmatpush1.msra.mxu0 0.0
      %2108 = vmatprep.subr.mxu0 0.0
      %2109 = vmatpush1.msra.mxu0 0.0
      %2110 = vmatprep.subr.mxu0 0.0
      %2111 = vmatpush1.msra.mxu0 0.0
      %2112 = vmatprep.subr.mxu0 0.0
      %2113 = vmatpush1.msra.mxu0 0.0
      %2114 = vmatprep.mubr.f32.mxu0 0.0
      %2115 = vmatmul.mubr.f32.gmra.mrb[0].mxu0 %v1937
      %v2116 = vpop.f32.mrb[0].mxu0
      %v2117 = vadd.f32 %v1973, %v2116
      %v2118 = vpop.f32.mrb[0].mxu0
      %2119 = vmatprep.mubr.f32.mxu0 0.0
      %2120 = vmatmul.mubr.f32.gmra.mrb[0].mxu0 %v1938
      %v2121 = vpop.f32.mrb[0].mxu0
      %v2122 = vadd.f32 %v1978, %v2121
      %v2123 = vpop.f32.mrb[0].mxu0
      %2124 = vmatprep.mubr.f32.mxu0 0.0
      %2125 = vmatmul.mubr.f32.gmra.mrb[0].mxu0 %v1939
      %v2126 = vpop.f32.mrb[0].mxu0
      %v2127 = vadd.f32 %v1983, %v2126
      %v2128 = vpop.f32.mrb[0].mxu0
      %2129 = vmatprep.mubr.f32.mxu0 0.0
      %2130 = vmatmul.mubr.f32.gmra.mrb[0].mxu0 %v1940
      %v2131 = vpop.f32.mrb[0].mxu0
      %v2132 = vadd.f32 %v1988, %v2131
      %v2133 = vpop.f32.mrb[0].mxu0
      %2134 = vmatprep.mubr.f32.mxu0 0.0
      %2135 = vmatmul.mubr.f32.gmra.mrb[0].mxu0 %v1941
      %v2136 = vpop.f32.mrb[0].mxu0
      %v2137 = vadd.f32 %v1993, %v2136
      %v2138 = vpop.f32.mrb[0].mxu0
      %2139 = vmatprep.mubr.f32.mxu0 0.0
      %2140 = vmatmul.mubr.f32.gmra.mrb[0].mxu0 %v1942
      %v2141 = vpop.f32.mrb[0].mxu0
      %v2142 = vadd.f32 %v1998, %v2141
      %v2143 = vpop.f32.mrb[0].mxu0
      %2144 = vmatprep.mubr.f32.mxu0 0.0
      %2145 = vmatmul.mubr.f32.gmra.mrb[0].mxu0 %v1943
      %v2146 = vpop.f32.mrb[0].mxu0
      %v2147 = vadd.f32 %v2003, %v2146
      %v2148 = vpop.f32.mrb[0].mxu0
      %2149 = vmatprep.mubr.f32.mxu0 0.0
      %2150 = vmatmul.mubr.f32.gmra.mrb[0].mxu0 %v1944
      %v2151 = vpop.f32.mrb[0].mxu0
      %v2152 = vadd.f32 %v2008, %v2151
      %v2153 = vpop.f32.mrb[0].mxu0
      %2154 = vmatprep.mubr.f32.mxu0 0.0
      %2155 = vmatmul.mubr.f32.gmra.mrb[0].mxu0 %v1945
      %v2156 = vpop.f32.mrb[0].mxu0
      %v2157 = vadd.f32 %v2013, %v2156
      %v2158 = vpop.f32.mrb[0].mxu0
      %2159 = vmatprep.mubr.f32.mxu0 0.0
      %2160 = vmatmul.mubr.f32.gmra.mrb[0].mxu0 %v1946
      %v2161 = vpop.f32.mrb[0].mxu0
      %v2162 = vadd.f32 %v2018, %v2161
      %v2163 = vpop.f32.mrb[0].mxu0
      %2164 = vmatprep.mubr.f32.mxu0 0.0
      %2165 = vmatmul.mubr.f32.gmra.mrb[0].mxu0 %v1947
      %v2166 = vpop.f32.mrb[0].mxu0
      %v2167 = vadd.f32 %v2023, %v2166
      %v2168 = vpop.f32.mrb[0].mxu0
      %2169 = vmatprep.mubr.f32.mxu0 0.0
      %2170 = vmatmul.mubr.f32.gmra.mrb[0].mxu0 %v1948
      %v2171 = vpop.f32.mrb[0].mxu0
      %v2172 = vadd.f32 %v2028, %v2171
      %v2173 = vpop.f32.mrb[0].mxu0
      %2174 = vmatprep.mubr.f32.mxu0 0.0
      %2175 = vmatmul.mubr.f32.gmra.mrb[0].mxu0 %v1949
      %v2176 = vpop.f32.mrb[0].mxu0
      %v2177 = vadd.f32 %v2033, %v2176
      %v2178 = vpop.f32.mrb[0].mxu0
      %2179 = vmatprep.mubr.f32.mxu0 0.0
      %2180 = vmatmul.mubr.f32.gmra.mrb[0].mxu0 %v1950
      %v2181 = vpop.f32.mrb[0].mxu0
      %v2182 = vadd.f32 %v2038, %v2181
      %v2183 = vpop.f32.mrb[0].mxu0
      %2184 = vmatprep.mubr.f32.mxu0 0.0
      %2185 = vmatmul.mubr.f32.gmra.mrb[0].mxu0 %v1951
      %v2186 = vpop.f32.mrb[0].mxu0
      %v2187 = vadd.f32 %v2043, %v2186
      %v2188 = vpop.f32.mrb[0].mxu0
      %2189 = vmatprep.mubr.f32.mxu0 0.0
      %2190 = vmatmul.mubr.f32.gmra.mrb[0].mxu0 %v1952
      %v2191 = vpop.f32.mrb[0].mxu0
      %v2192 = vadd.f32 %v2048, %v2191
      %v2193 = vpop.f32.mrb[0].mxu0
      %2194 = vdwg.mxu0
      %s2195 = scalar_lea.vmem %s7, 32
      %v2196 = vld [vmem:[%s2195] sm:$0xff]
      %v2197 = vld [vmem:[%s2195 + $0x8] sm:$0xff]
      %v2198 = vld [vmem:[%s2195 + $0x10] sm:$0xff]
      %v2199 = vld [vmem:[%s2195 + $0x18] sm:$0x1]
      %v2201 = vsel %vm880, %v2117, 0
      %v2204 = vsel %vm880, %v2122, 0
      %v2207 = vsel %vm880, %v2127, 0
      %v2210 = vsel %vm880, %v2132, 0
      %v2213 = vsel %vm880, %v2137, 0
      %v2216 = vsel %vm880, %v2142, 0
      %v2219 = vsel %vm880, %v2147, 0
      %v2222 = vsel %vm880, %v2152, 0
      %v2225 = vsel %vm880, %v2157, 0
      %v2228 = vsel %vm880, %v2162, 0
      %v2231 = vsel %vm880, %v2167, 0
      %v2234 = vsel %vm880, %v2172, 0
      %v2237 = vsel %vm880, %v2177, 0
      %v2240 = vsel %vm880, %v2182, 0
      %v2243 = vsel %vm880, %v2187, 0
      %v2246 = vsel %vm880, %v2192, 0
      %v2249 = vsel %vm1073, %v2199, 0
      %2251 = vmatprep.subr.mxu0 0.0
      %2252 = vmatpush1.msra.mxu0 %v2196
      %2253 = vmatprep.subr.mxu0 0.0
      %2254 = vmatpush1.msra.mxu0 %v2197
      %2255 = vmatprep.subr.mxu0 0.0
      %2256 = vmatpush1.msra.mxu0 %v2198
      %2257 = vmatprep.subr.mxu0 0.0
      %2258 = vmatpush1.msra.mxu0 %v2249
      %2259 = vmatprep.subr.mxu0 0.0
      %2260 = vmatpush1.msra.mxu0 0.0
      %2261 = vmatprep.subr.mxu0 0.0
      %2262 = vmatpush1.msra.mxu0 0.0
      %2263 = vmatprep.subr.mxu0 0.0
      %2264 = vmatpush1.msra.mxu0 0.0
      %2265 = vmatprep.subr.mxu0 0.0
      %2266 = vmatpush1.msra.mxu0 0.0
      %2267 = vmatprep.subr.mxu0 0.0
      %2268 = vmatpush1.msra.mxu0 0.0
      %2269 = vmatprep.subr.mxu0 0.0
      %2270 = vmatpush1.msra.mxu0 0.0
      %2271 = vmatprep.subr.mxu0 0.0
      %2272 = vmatpush1.msra.mxu0 0.0
      %2273 = vmatprep.subr.mxu0 0.0
      %2274 = vmatpush1.msra.mxu0 0.0
      %2275 = vmatprep.subr.mxu0 0.0
      %2276 = vmatpush1.msra.mxu0 0.0
      %2277 = vmatprep.subr.mxu0 0.0
      %2278 = vmatpush1.msra.mxu0 0.0
      %2279 = vmatprep.subr.mxu0 0.0
      %2280 = vmatpush1.msra.mxu0 0.0
      %2281 = vmatprep.subr.mxu0 0.0
      %2282 = vmatpush1.msra.mxu0 0.0
      %2283 = vmatprep.subr.mxu0 0.0
      %2284 = vmatpush1.msra.mxu0 0.0
      %2285 = vmatprep.subr.mxu0 0.0
      %2286 = vmatpush1.msra.mxu0 0.0
      %2287 = vmatprep.subr.mxu0 0.0
      %2288 = vmatpush1.msra.mxu0 0.0
      %2289 = vmatprep.subr.mxu0 0.0
      %2290 = vmatpush1.msra.mxu0 0.0
      %2291 = vmatprep.subr.mxu0 0.0
      %2292 = vmatpush1.msra.mxu0 0.0
      %2293 = vmatprep.subr.mxu0 0.0
      %2294 = vmatpush1.msra.mxu0 0.0
      %2295 = vmatprep.subr.mxu0 0.0
      %2296 = vmatpush1.msra.mxu0 0.0
      %2297 = vmatprep.subr.mxu0 0.0
      %2298 = vmatpush1.msra.mxu0 0.0
      %2299 = vmatprep.subr.mxu0 0.0
      %2300 = vmatpush1.msra.mxu0 0.0
      %2301 = vmatprep.subr.mxu0 0.0
      %2302 = vmatpush1.msra.mxu0 0.0
      %2303 = vmatprep.subr.mxu0 0.0
      %2304 = vmatpush1.msra.mxu0 0.0
      %2305 = vmatprep.subr.mxu0 0.0
      %2306 = vmatpush1.msra.mxu0 0.0
      %2307 = vmatprep.subr.mxu0 0.0
      %2308 = vmatpush1.msra.mxu0 0.0
      %2309 = vmatprep.subr.mxu0 0.0
      %2310 = vmatpush1.msra.mxu0 0.0
      %2311 = vmatprep.subr.mxu0 0.0
      %2312 = vmatpush1.msra.mxu0 0.0
      %2313 = vmatprep.subr.mxu0 0.0
      %2314 = vmatpush1.msra.mxu0 0.0
      %2315 = vmatprep.mubr.f32.mxu0 0.0
      %2316 = vmatmul.mubr.f32.gmra.mrb[0].mxu0 %v2201
      %v2317 = vpop.f32.mrb[0].mxu0
      %v2318 = vadd.f32 0.0, %v2317
      %v2319 = vpop.f32.mrb[0].mxu0
      %2320 = vmatprep.mubr.f32.mxu0 0.0
      %2321 = vmatmul.mubr.f32.gmra.mrb[0].mxu0 %v2204
      %v2322 = vpop.f32.mrb[0].mxu0
      %v2323 = vadd.f32 0.0, %v2322
      %v2324 = vpop.f32.mrb[0].mxu0
      %2325 = vmatprep.mubr.f32.mxu0 0.0
      %2326 = vmatmul.mubr.f32.gmra.mrb[0].mxu0 %v2207
      %v2327 = vpop.f32.mrb[0].mxu0
      %v2328 = vadd.f32 0.0, %v2327
      %v2329 = vpop.f32.mrb[0].mxu0
      %2330 = vmatprep.mubr.f32.mxu0 0.0
      %2331 = vmatmul.mubr.f32.gmra.mrb[0].mxu0 %v2210
      %v2332 = vpop.f32.mrb[0].mxu0
      %v2333 = vadd.f32 0.0, %v2332
      %v2334 = vpop.f32.mrb[0].mxu0
      %2335 = vmatprep.mubr.f32.mxu0 0.0
      %2336 = vmatmul.mubr.f32.gmra.mrb[0].mxu0 %v2213
      %v2337 = vpop.f32.mrb[0].mxu0
      %v2338 = vadd.f32 0.0, %v2337
      %v2339 = vpop.f32.mrb[0].mxu0
      %2340 = vmatprep.mubr.f32.mxu0 0.0
      %2341 = vmatmul.mubr.f32.gmra.mrb[0].mxu0 %v2216
      %v2342 = vpop.f32.mrb[0].mxu0
      %v2343 = vadd.f32 0.0, %v2342
      %v2344 = vpop.f32.mrb[0].mxu0
      %2345 = vmatprep.mubr.f32.mxu0 0.0
      %2346 = vmatmul.mubr.f32.gmra.mrb[0].mxu0 %v2219
      %v2347 = vpop.f32.mrb[0].mxu0
      %v2348 = vadd.f32 0.0, %v2347
      %v2349 = vpop.f32.mrb[0].mxu0
      %2350 = vmatprep.mubr.f32.mxu0 0.0
      %2351 = vmatmul.mubr.f32.gmra.mrb[0].mxu0 %v2222
      %v2352 = vpop.f32.mrb[0].mxu0
      %v2353 = vadd.f32 0.0, %v2352
      %v2354 = vpop.f32.mrb[0].mxu0
      %2355 = vmatprep.mubr.f32.mxu0 0.0
      %2356 = vmatmul.mubr.f32.gmra.mrb[0].mxu0 %v2225
      %v2357 = vpop.f32.mrb[0].mxu0
      %v2358 = vadd.f32 0.0, %v2357
      %v2359 = vpop.f32.mrb[0].mxu0
      %2360 = vmatprep.mubr.f32.mxu0 0.0
      %2361 = vmatmul.mubr.f32.gmra.mrb[0].mxu0 %v2228
      %v2362 = vpop.f32.mrb[0].mxu0
      %v2363 = vadd.f32 0.0, %v2362
      %v2364 = vpop.f32.mrb[0].mxu0
      %2365 = vmatprep.mubr.f32.mxu0 0.0
      %2366 = vmatmul.mubr.f32.gmra.mrb[0].mxu0 %v2231
      %v2367 = vpop.f32.mrb[0].mxu0
      %v2368 = vadd.f32 0.0, %v2367
      %v2369 = vpop.f32.mrb[0].mxu0
      %2370 = vmatprep.mubr.f32.mxu0 0.0
      %2371 = vmatmul.mubr.f32.gmra.mrb[0].mxu0 %v2234
      %v2372 = vpop.f32.mrb[0].mxu0
      %v2373 = vadd.f32 0.0, %v2372
      %v2374 = vpop.f32.mrb[0].mxu0
      %2375 = vmatprep.mubr.f32.mxu0 0.0
      %2376 = vmatmul.mubr.f32.gmra.mrb[0].mxu0 %v2237
      %v2377 = vpop.f32.mrb[0].mxu0
      %v2378 = vadd.f32 0.0, %v2377
      %v2379 = vpop.f32.mrb[0].mxu0
      %2380 = vmatprep.mubr.f32.mxu0 0.0
      %2381 = vmatmul.mubr.f32.gmra.mrb[0].mxu0 %v2240
      %v2382 = vpop.f32.mrb[0].mxu0
      %v2383 = vadd.f32 0.0, %v2382
      %v2384 = vpop.f32.mrb[0].mxu0
      %2385 = vmatprep.mubr.f32.mxu0 0.0
      %2386 = vmatmul.mubr.f32.gmra.mrb[0].mxu0 %v2243
      %v2387 = vpop.f32.mrb[0].mxu0
      %v2388 = vadd.f32 0.0, %v2387
      %v2389 = vpop.f32.mrb[0].mxu0
      %2390 = vmatprep.mubr.f32.mxu0 0.0
      %2391 = vmatmul.mubr.f32.gmra.mrb[0].mxu0 %v2246
      %v2392 = vpop.f32.mrb[0].mxu0
      %v2393 = vadd.f32 0.0, %v2392
      %v2394 = vpop.f32.mrb[0].mxu0
      %2395 = vdwg.mxu0
      %v2396 = vadd.f32 %v1920, %v2318
      %v2397 = vadd.f32 %v1921, %v2323
      %v2398 = vadd.f32 %v1922, %v2328
      %v2399 = vadd.f32 %v1923, %v2333
      %v2400 = vadd.f32 %v1924, %v2338
      %v2401 = vadd.f32 %v1925, %v2343
      %v2402 = vadd.f32 %v1926, %v2348
      %v2403 = vadd.f32 %v1927, %v2353
      %v2404 = vadd.f32 %v1928, %v2358
      %v2405 = vadd.f32 %v1929, %v2363
      %v2406 = vadd.f32 %v1930, %v2368
      %v2407 = vadd.f32 %v1931, %v2373
      %v2408 = vadd.f32 %v1932, %v2378
      %v2409 = vadd.f32 %v1933, %v2383
      %v2410 = vadd.f32 %v1934, %v2388
      %v2411 = vadd.f32 %v1935, %v2393
      %s2412 = scalar_lea.vmem %s9, 128
      %v2413 = vld [vmem:[%s2412] sm:$0xff]
      %v2414 = vld [vmem:[%s2412 + $0x8] sm:$0xff]
      %v2415 = vld [vmem:[%s2412 + $0x10] sm:$0xff]
      %v2416 = vld [vmem:[%s2412 + $0x18] sm:$0xff]
      %v2417 = vld [vmem:[%s2412 + $0x20] sm:$0xff]
      %v2418 = vld [vmem:[%s2412 + $0x28] sm:$0xff]
      %v2419 = vld [vmem:[%s2412 + $0x30] sm:$0xff]
      %v2420 = vld [vmem:[%s2412 + $0x38] sm:$0xff]
      %v2421 = vld [vmem:[%s2412 + $0x40] sm:$0xff]
      %v2422 = vld [vmem:[%s2412 + $0x48] sm:$0xff]
      %v2423 = vld [vmem:[%s2412 + $0x50] sm:$0xff]
      %v2424 = vld [vmem:[%s2412 + $0x58] sm:$0xff]
      %v2425 = vld [vmem:[%s2412 + $0x60] sm:$0xff]
      %v2426 = vld [vmem:[%s2412 + $0x68] sm:$0xff]
      %v2427 = vld [vmem:[%s2412 + $0x70] sm:$0xff]
      %v2428 = vld [vmem:[%s2412 + $0x78] sm:$0xff]
      %v2429 = vsel %vm880, %v2117, 0.0
      %2430 = vadd.xlane.f32.xlu0 %v2429
      %v2431 = vpop.xlane.xlu0 %2430
      %v2432 = vsel %vm880, %v2122, 0.0
      %2433 = vadd.xlane.f32.xlu0 %v2432
      %v2434 = vpop.xlane.xlu0 %2433
      %v2435 = vsel %vm880, %v2127, 0.0
      %2436 = vadd.xlane.f32.xlu0 %v2435
      %v2437 = vpop.xlane.xlu0 %2436
      %v2438 = vsel %vm880, %v2132, 0.0
      %2439 = vadd.xlane.f32.xlu0 %v2438
      %v2440 = vpop.xlane.xlu0 %2439
      %v2441 = vsel %vm880, %v2137, 0.0
      %2442 = vadd.xlane.f32.xlu0 %v2441
      %v2443 = vpop.xlane.xlu0 %2442
      %v2444 = vsel %vm880, %v2142, 0.0
      %2445 = vadd.xlane.f32.xlu0 %v2444
      %v2446 = vpop.xlane.xlu0 %2445
      %v2447 = vsel %vm880, %v2147, 0.0
      %2448 = vadd.xlane.f32.xlu0 %v2447
      %v2449 = vpop.xlane.xlu0 %2448
      %v2450 = vsel %vm880, %v2152, 0.0
      %2451 = vadd.xlane.f32.xlu0 %v2450
      %v2452 = vpop.xlane.xlu0 %2451
      %v2453 = vsel %vm880, %v2157, 0.0
      %2454 = vadd.xlane.f32.xlu0 %v2453
      %v2455 = vpop.xlane.xlu0 %2454
      %v2456 = vsel %vm880, %v2162, 0.0
      %2457 = vadd.xlane.f32.xlu0 %v2456
      %v2458 = vpop.xlane.xlu0 %2457
      %v2459 = vsel %vm880, %v2167, 0.0
      %2460 = vadd.xlane.f32.xlu0 %v2459
      %v2461 = vpop.xlane.xlu0 %2460
      %v2462 = vsel %vm880, %v2172, 0.0
      %2463 = vadd.xlane.f32.xlu0 %v2462
      %v2464 = vpop.xlane.xlu0 %2463
      %v2465 = vsel %vm880, %v2177, 0.0
      %2466 = vadd.xlane.f32.xlu0 %v2465
      %v2467 = vpop.xlane.xlu0 %2466
      %v2468 = vsel %vm880, %v2182, 0.0
      %2469 = vadd.xlane.f32.xlu0 %v2468
      %v2470 = vpop.xlane.xlu0 %2469
      %v2471 = vsel %vm880, %v2187, 0.0
      %2472 = vadd.xlane.f32.xlu0 %v2471
      %v2473 = vpop.xlane.xlu0 %2472
      %v2474 = vsel %vm880, %v2192, 0.0
      %2475 = vadd.xlane.f32.xlu0 %v2474
      %v2476 = vpop.xlane.xlu0 %2475
      %v2477 = vmul.f32 %v2413, %v2431
      %v2478 = vmul.f32 %v2414, %v2434
      %v2479 = vmul.f32 %v2415, %v2437
      %v2480 = vmul.f32 %v2416, %v2440
      %v2481 = vmul.f32 %v2417, %v2443
      %v2482 = vmul.f32 %v2418, %v2446
      %v2483 = vmul.f32 %v2419, %v2449
      %v2484 = vmul.f32 %v2420, %v2452
      %v2485 = vmul.f32 %v2421, %v2455
      %v2486 = vmul.f32 %v2422, %v2458
      %v2487 = vmul.f32 %v2423, %v2461
      %v2488 = vmul.f32 %v2424, %v2464
      %v2489 = vmul.f32 %v2425, %v2467
      %v2490 = vmul.f32 %v2426, %v2470
      %v2491 = vmul.f32 %v2427, %v2473
      %v2492 = vmul.f32 %v2428, %v2476
      %2494 = vset.pattern.permute.xlu0 0
      %2495 = vperm.xlu0 %2494, %v2477
      %v2496 = vpop.permute.xlu0 %2495
      %2499 = vset.pattern.permute.xlu0 0
      %2500 = vperm.xlu0 %2499, %v2478
      %v2501 = vpop.permute.xlu0 %2500
      %2504 = vset.pattern.permute.xlu0 0
      %2505 = vperm.xlu0 %2504, %v2479
      %v2506 = vpop.permute.xlu0 %2505
      %2509 = vset.pattern.permute.xlu0 0
      %2510 = vperm.xlu0 %2509, %v2480
      %v2511 = vpop.permute.xlu0 %2510
      %2514 = vset.pattern.permute.xlu0 0
      %2515 = vperm.xlu0 %2514, %v2481
      %v2516 = vpop.permute.xlu0 %2515
      %2519 = vset.pattern.permute.xlu0 0
      %2520 = vperm.xlu0 %2519, %v2482
      %v2521 = vpop.permute.xlu0 %2520
      %2524 = vset.pattern.permute.xlu0 0
      %2525 = vperm.xlu0 %2524, %v2483
      %v2526 = vpop.permute.xlu0 %2525
      %2529 = vset.pattern.permute.xlu0 0
      %2530 = vperm.xlu0 %2529, %v2484
      %v2531 = vpop.permute.xlu0 %2530
      %2534 = vset.pattern.permute.xlu0 0
      %2535 = vperm.xlu0 %2534, %v2485
      %v2536 = vpop.permute.xlu0 %2535
      %2539 = vset.pattern.permute.xlu0 0
      %2540 = vperm.xlu0 %2539, %v2486
      %v2541 = vpop.permute.xlu0 %2540
      %2544 = vset.pattern.permute.xlu0 0
      %2545 = vperm.xlu0 %2544, %v2487
      %v2546 = vpop.permute.xlu0 %2545
      %2549 = vset.pattern.permute.xlu0 0
      %2550 = vperm.xlu0 %2549, %v2488
      %v2551 = vpop.permute.xlu0 %2550
      %2554 = vset.pattern.permute.xlu0 0
      %2555 = vperm.xlu0 %2554, %v2489
      %v2556 = vpop.permute.xlu0 %2555
      %2559 = vset.pattern.permute.xlu0 0
      %2560 = vperm.xlu0 %2559, %v2490
      %v2561 = vpop.permute.xlu0 %2560
      %2564 = vset.pattern.permute.xlu0 0
      %2565 = vperm.xlu0 %2564, %v2491
      %v2566 = vpop.permute.xlu0 %2565
      %2569 = vset.pattern.permute.xlu0 0
      %2570 = vperm.xlu0 %2569, %v2492
      %v2571 = vpop.permute.xlu0 %2570
      %v2573 = vadd.f32 %v2396, %v2496
      %v2574 = vadd.f32 %v2397, %v2501
      %v2575 = vadd.f32 %v2398, %v2506
      %v2576 = vadd.f32 %v2399, %v2511
      %v2577 = vadd.f32 %v2400, %v2516
      %v2578 = vadd.f32 %v2401, %v2521
      %v2579 = vadd.f32 %v2402, %v2526
      %v2580 = vadd.f32 %v2403, %v2531
      %v2581 = vadd.f32 %v2404, %v2536
      %v2582 = vadd.f32 %v2405, %v2541
      %v2583 = vadd.f32 %v2406, %v2546
      %v2584 = vadd.f32 %v2407, %v2551
      %v2585 = vadd.f32 %v2408, %v2556
      %v2586 = vadd.f32 %v2409, %v2561
      %v2587 = vadd.f32 %v2410, %v2566
      %v2588 = vadd.f32 %v2411, %v2571
      %v2589 = vlaneseq
      %v2590 = vshrl.u32 %v2589, 7
      %v2591 = vsub.s32 2, %v2590
      %v2592 = vrot.slane %v581, %v2591
      %v2593 = vmul.f32 %v599, %v2592
      %v2594 = vmul.f32 %v600, %v2592
      %v2595 = vmul.f32 %v601, %v2592
      %v2596 = vmul.f32 %v602, %v2592
      %v2597 = vsel %vm880, %v2593, 0.0
      %2598 = vadd.xlane.f32.xlu0 %v2597
      %v2599 = vpop.xlane.xlu0 %2598
      %v2600 = vsel %vm880, %v2594, 0.0
      %2601 = vadd.xlane.f32.xlu0 %v2600
      %v2602 = vpop.xlane.xlu0 %2601
      %v2603 = vsel %vm880, %v2595, 0.0
      %2604 = vadd.xlane.f32.xlu0 %v2603
      %v2605 = vpop.xlane.xlu0 %2604
      %v2606 = vsel %vm1239, %v2596, 0.0
      %2607 = vadd.xlane.f32.xlu0 %v2606
      %v2608 = vpop.xlane.xlu0 %2607
      %v2609 = vlaneseq
      %v2610 = vshrl.u32 %v2609, 7
      %v2611 = vsub.s32 2, %v2610
      %v2612 = vrot.slane %v504, %v2611
      %v2613 = vsub.f32 %v2612, %v2599
      %v2614 = vsub.f32 %v2612, %v2602
      %v2615 = vsub.f32 %v2612, %v2605
      %v2616 = vsub.f32 %v2612, %v2608
      %v2617 = vtanh.pop %v2613
      %v2618 = vtanh.pop %v2614
      %v2619 = vtanh.pop %v2615
      %v2620 = vtanh.pop %v2616
      %s2621 = scalar_lea.vmem %s8, 256
      %v2622 = vld [vmem:[%s2621] sm:$0xff]
      %v2623 = vld [vmem:[%s2621 + $0x8] sm:$0xff]
      %v2624 = vld [vmem:[%s2621 + $0x10] sm:$0xff]
      %v2625 = vld [vmem:[%s2621 + $0x18] sm:$0xff]
      %v2626 = vld [vmem:[%s2621 + $0x20] sm:$0xff]
      %v2627 = vld [vmem:[%s2621 + $0x28] sm:$0xff]
      %v2628 = vld [vmem:[%s2621 + $0x30] sm:$0xff]
      %v2629 = vld [vmem:[%s2621 + $0x38] sm:$0xff]
      %v2630 = vld [vmem:[%s2621 + $0x40] sm:$0xff]
      %v2631 = vld [vmem:[%s2621 + $0x48] sm:$0xff]
      %v2632 = vld [vmem:[%s2621 + $0x50] sm:$0xff]
      %v2633 = vld [vmem:[%s2621 + $0x58] sm:$0xff]
      %v2634 = vld [vmem:[%s2621 + $0x60] sm:$0xff]
      %v2635 = vld [vmem:[%s2621 + $0x68] sm:$0xff]
      %v2636 = vld [vmem:[%s2621 + $0x70] sm:$0xff]
      %v2637 = vld [vmem:[%s2621 + $0x78] sm:$0xff]
      %2639 = vset.pattern.permute.xlu0 0
      %2640 = vperm.xlu0 %2639, %v2622
      %v2641 = vpop.permute.xlu0 %2640
      %2644 = vset.pattern.permute.xlu0 0
      %2645 = vperm.xlu0 %2644, %v2623
      %v2646 = vpop.permute.xlu0 %2645
      %2649 = vset.pattern.permute.xlu0 0
      %2650 = vperm.xlu0 %2649, %v2624
      %v2651 = vpop.permute.xlu0 %2650
      %2654 = vset.pattern.permute.xlu0 0
      %2655 = vperm.xlu0 %2654, %v2625
      %v2656 = vpop.permute.xlu0 %2655
      %2659 = vset.pattern.permute.xlu0 0
      %2660 = vperm.xlu0 %2659, %v2626
      %v2661 = vpop.permute.xlu0 %2660
      %2664 = vset.pattern.permute.xlu0 0
      %2665 = vperm.xlu0 %2664, %v2627
      %v2666 = vpop.permute.xlu0 %2665
      %2669 = vset.pattern.permute.xlu0 0
      %2670 = vperm.xlu0 %2669, %v2628
      %v2671 = vpop.permute.xlu0 %2670
      %2674 = vset.pattern.permute.xlu0 0
      %2675 = vperm.xlu0 %2674, %v2629
      %v2676 = vpop.permute.xlu0 %2675
      %2679 = vset.pattern.permute.xlu0 0
      %2680 = vperm.xlu0 %2679, %v2630
      %v2681 = vpop.permute.xlu0 %2680
      %2684 = vset.pattern.permute.xlu0 0
      %2685 = vperm.xlu0 %2684, %v2631
      %v2686 = vpop.permute.xlu0 %2685
      %2689 = vset.pattern.permute.xlu0 0
      %2690 = vperm.xlu0 %2689, %v2632
      %v2691 = vpop.permute.xlu0 %2690
      %2694 = vset.pattern.permute.xlu0 0
      %2695 = vperm.xlu0 %2694, %v2633
      %v2696 = vpop.permute.xlu0 %2695
      %2699 = vset.pattern.permute.xlu0 0
      %2700 = vperm.xlu0 %2699, %v2634
      %v2701 = vpop.permute.xlu0 %2700
      %2704 = vset.pattern.permute.xlu0 0
      %2705 = vperm.xlu0 %2704, %v2635
      %v2706 = vpop.permute.xlu0 %2705
      %2709 = vset.pattern.permute.xlu0 0
      %2710 = vperm.xlu0 %2709, %v2636
      %v2711 = vpop.permute.xlu0 %2710
      %2714 = vset.pattern.permute.xlu0 0
      %2715 = vperm.xlu0 %2714, %v2637
      %v2716 = vpop.permute.xlu0 %2715
      %v2718 = vmul.f32 %v2641, %v2117
      %v2719 = vmul.f32 %v2646, %v2122
      %v2720 = vmul.f32 %v2651, %v2127
      %v2721 = vmul.f32 %v2656, %v2132
      %v2722 = vmul.f32 %v2661, %v2137
      %v2723 = vmul.f32 %v2666, %v2142
      %v2724 = vmul.f32 %v2671, %v2147
      %v2725 = vmul.f32 %v2676, %v2152
      %v2726 = vmul.f32 %v2681, %v2157
      %v2727 = vmul.f32 %v2686, %v2162
      %v2728 = vmul.f32 %v2691, %v2167
      %v2729 = vmul.f32 %v2696, %v2172
      %v2730 = vmul.f32 %v2701, %v2177
      %v2731 = vmul.f32 %v2706, %v2182
      %v2732 = vmul.f32 %v2711, %v2187
      %v2733 = vmul.f32 %v2716, %v2192
      %v2735 = vsel %vm880, %v2718, 0
      %v2738 = vsel %vm880, %v2719, 0
      %v2741 = vsel %vm880, %v2720, 0
      %v2744 = vsel %vm880, %v2721, 0
      %v2747 = vsel %vm880, %v2722, 0
      %v2750 = vsel %vm880, %v2723, 0
      %v2753 = vsel %vm880, %v2724, 0
      %v2756 = vsel %vm880, %v2725, 0
      %v2759 = vsel %vm880, %v2726, 0
      %v2762 = vsel %vm880, %v2727, 0
      %v2765 = vsel %vm880, %v2728, 0
      %v2768 = vsel %vm880, %v2729, 0
      %v2771 = vsel %vm880, %v2730, 0
      %v2774 = vsel %vm880, %v2731, 0
      %v2777 = vsel %vm880, %v2732, 0
      %v2780 = vsel %vm880, %v2733, 0
      %v2783 = vsel %vm1073, %v2620, 0
      %2785 = vmatprep.subr.mxu0 0.0
      %2786 = vmatpush1.msra.mxu0 %v2617
      %2787 = vmatprep.subr.mxu0 0.0
      %2788 = vmatpush1.msra.mxu0 %v2618
      %2789 = vmatprep.subr.mxu0 0.0
      %2790 = vmatpush1.msra.mxu0 %v2619
      %2791 = vmatprep.subr.mxu0 0.0
      %2792 = vmatpush1.msra.mxu0 %v2783
      %2793 = vmatprep.subr.mxu0 0.0
      %2794 = vmatpush1.msra.mxu0 0.0
      %2795 = vmatprep.subr.mxu0 0.0
      %2796 = vmatpush1.msra.mxu0 0.0
      %2797 = vmatprep.subr.mxu0 0.0
      %2798 = vmatpush1.msra.mxu0 0.0
      %2799 = vmatprep.subr.mxu0 0.0
      %2800 = vmatpush1.msra.mxu0 0.0
      %2801 = vmatprep.subr.mxu0 0.0
      %2802 = vmatpush1.msra.mxu0 0.0
      %2803 = vmatprep.subr.mxu0 0.0
      %2804 = vmatpush1.msra.mxu0 0.0
      %2805 = vmatprep.subr.mxu0 0.0
      %2806 = vmatpush1.msra.mxu0 0.0
      %2807 = vmatprep.subr.mxu0 0.0
      %2808 = vmatpush1.msra.mxu0 0.0
      %2809 = vmatprep.subr.mxu0 0.0
      %2810 = vmatpush1.msra.mxu0 0.0
      %2811 = vmatprep.subr.mxu0 0.0
      %2812 = vmatpush1.msra.mxu0 0.0
      %2813 = vmatprep.subr.mxu0 0.0
      %2814 = vmatpush1.msra.mxu0 0.0
      %2815 = vmatprep.subr.mxu0 0.0
      %2816 = vmatpush1.msra.mxu0 0.0
      %2817 = vmatprep.subr.mxu0 0.0
      %2818 = vmatpush1.msra.mxu0 0.0
      %2819 = vmatprep.subr.mxu0 0.0
      %2820 = vmatpush1.msra.mxu0 0.0
      %2821 = vmatprep.subr.mxu0 0.0
      %2822 = vmatpush1.msra.mxu0 0.0
      %2823 = vmatprep.subr.mxu0 0.0
      %2824 = vmatpush1.msra.mxu0 0.0
      %2825 = vmatprep.subr.mxu0 0.0
      %2826 = vmatpush1.msra.mxu0 0.0
      %2827 = vmatprep.subr.mxu0 0.0
      %2828 = vmatpush1.msra.mxu0 0.0
      %2829 = vmatprep.subr.mxu0 0.0
      %2830 = vmatpush1.msra.mxu0 0.0
      %2831 = vmatprep.subr.mxu0 0.0
      %2832 = vmatpush1.msra.mxu0 0.0
      %2833 = vmatprep.subr.mxu0 0.0
      %2834 = vmatpush1.msra.mxu0 0.0
      %2835 = vmatprep.subr.mxu0 0.0
      %2836 = vmatpush1.msra.mxu0 0.0
      %2837 = vmatprep.subr.mxu0 0.0
      %2838 = vmatpush1.msra.mxu0 0.0
      %2839 = vmatprep.subr.mxu0 0.0
      %2840 = vmatpush1.msra.mxu0 0.0
      %2841 = vmatprep.subr.mxu0 0.0
      %2842 = vmatpush1.msra.mxu0 0.0
      %2843 = vmatprep.subr.mxu0 0.0
      %2844 = vmatpush1.msra.mxu0 0.0
      %2845 = vmatprep.subr.mxu0 0.0
      %2846 = vmatpush1.msra.mxu0 0.0
      %2847 = vmatprep.subr.mxu0 0.0
      %2848 = vmatpush1.msra.mxu0 0.0
      %2849 = vmatprep.mubr.f32.mxu0 0.0
      %2850 = vmatmul.mubr.f32.gmra.mrb[0].mxu0 %v2735
      %v2851 = vpop.f32.mrb[0].mxu0
      %v2852 = vadd.f32 0.0, %v2851
      %v2853 = vpop.f32.mrb[0].mxu0
      %2854 = vmatprep.mubr.f32.mxu0 0.0
      %2855 = vmatmul.mubr.f32.gmra.mrb[0].mxu0 %v2738
      %v2856 = vpop.f32.mrb[0].mxu0
      %v2857 = vadd.f32 0.0, %v2856
      %v2858 = vpop.f32.mrb[0].mxu0
      %2859 = vmatprep.mubr.f32.mxu0 0.0
      %2860 = vmatmul.mubr.f32.gmra.mrb[0].mxu0 %v2741
      %v2861 = vpop.f32.mrb[0].mxu0
      %v2862 = vadd.f32 0.0, %v2861
      %v2863 = vpop.f32.mrb[0].mxu0
      %2864 = vmatprep.mubr.f32.mxu0 0.0
      %2865 = vmatmul.mubr.f32.gmra.mrb[0].mxu0 %v2744
      %v2866 = vpop.f32.mrb[0].mxu0
      %v2867 = vadd.f32 0.0, %v2866
      %v2868 = vpop.f32.mrb[0].mxu0
      %2869 = vmatprep.mubr.f32.mxu0 0.0
      %2870 = vmatmul.mubr.f32.gmra.mrb[0].mxu0 %v2747
      %v2871 = vpop.f32.mrb[0].mxu0
      %v2872 = vadd.f32 0.0, %v2871
      %v2873 = vpop.f32.mrb[0].mxu0
      %2874 = vmatprep.mubr.f32.mxu0 0.0
      %2875 = vmatmul.mubr.f32.gmra.mrb[0].mxu0 %v2750
      %v2876 = vpop.f32.mrb[0].mxu0
      %v2877 = vadd.f32 0.0, %v2876
      %v2878 = vpop.f32.mrb[0].mxu0
      %2879 = vmatprep.mubr.f32.mxu0 0.0
      %2880 = vmatmul.mubr.f32.gmra.mrb[0].mxu0 %v2753
      %v2881 = vpop.f32.mrb[0].mxu0
      %v2882 = vadd.f32 0.0, %v2881
      %v2883 = vpop.f32.mrb[0].mxu0
      %2884 = vmatprep.mubr.f32.mxu0 0.0
      %2885 = vmatmul.mubr.f32.gmra.mrb[0].mxu0 %v2756
      %v2886 = vpop.f32.mrb[0].mxu0
      %v2887 = vadd.f32 0.0, %v2886
      %v2888 = vpop.f32.mrb[0].mxu0
      %2889 = vmatprep.mubr.f32.mxu0 0.0
      %2890 = vmatmul.mubr.f32.gmra.mrb[0].mxu0 %v2759
      %v2891 = vpop.f32.mrb[0].mxu0
      %v2892 = vadd.f32 0.0, %v2891
      %v2893 = vpop.f32.mrb[0].mxu0
      %2894 = vmatprep.mubr.f32.mxu0 0.0
      %2895 = vmatmul.mubr.f32.gmra.mrb[0].mxu0 %v2762
      %v2896 = vpop.f32.mrb[0].mxu0
      %v2897 = vadd.f32 0.0, %v2896
      %v2898 = vpop.f32.mrb[0].mxu0
      %2899 = vmatprep.mubr.f32.mxu0 0.0
      %2900 = vmatmul.mubr.f32.gmra.mrb[0].mxu0 %v2765
      %v2901 = vpop.f32.mrb[0].mxu0
      %v2902 = vadd.f32 0.0, %v2901
      %v2903 = vpop.f32.mrb[0].mxu0
      %2904 = vmatprep.mubr.f32.mxu0 0.0
      %2905 = vmatmul.mubr.f32.gmra.mrb[0].mxu0 %v2768
      %v2906 = vpop.f32.mrb[0].mxu0
      %v2907 = vadd.f32 0.0, %v2906
      %v2908 = vpop.f32.mrb[0].mxu0
      %2909 = vmatprep.mubr.f32.mxu0 0.0
      %2910 = vmatmul.mubr.f32.gmra.mrb[0].mxu0 %v2771
      %v2911 = vpop.f32.mrb[0].mxu0
      %v2912 = vadd.f32 0.0, %v2911
      %v2913 = vpop.f32.mrb[0].mxu0
      %2914 = vmatprep.mubr.f32.mxu0 0.0
      %2915 = vmatmul.mubr.f32.gmra.mrb[0].mxu0 %v2774
      %v2916 = vpop.f32.mrb[0].mxu0
      %v2917 = vadd.f32 0.0, %v2916
      %v2918 = vpop.f32.mrb[0].mxu0
      %2919 = vmatprep.mubr.f32.mxu0 0.0
      %2920 = vmatmul.mubr.f32.gmra.mrb[0].mxu0 %v2777
      %v2921 = vpop.f32.mrb[0].mxu0
      %v2922 = vadd.f32 0.0, %v2921
      %v2923 = vpop.f32.mrb[0].mxu0
      %2924 = vmatprep.mubr.f32.mxu0 0.0
      %2925 = vmatmul.mubr.f32.gmra.mrb[0].mxu0 %v2780
      %v2926 = vpop.f32.mrb[0].mxu0
      %v2927 = vadd.f32 0.0, %v2926
      %v2928 = vpop.f32.mrb[0].mxu0
      %2929 = vdwg.mxu0
      %v2930 = vadd.f32 %v2573, %v2852
      %v2931 = vadd.f32 %v2574, %v2857
      %v2932 = vadd.f32 %v2575, %v2862
      %v2933 = vadd.f32 %v2576, %v2867
      %v2934 = vadd.f32 %v2577, %v2872
      %v2935 = vadd.f32 %v2578, %v2877
      %v2936 = vadd.f32 %v2579, %v2882
      %v2937 = vadd.f32 %v2580, %v2887
      %v2938 = vadd.f32 %v2581, %v2892
      %v2939 = vadd.f32 %v2582, %v2897
      %v2940 = vadd.f32 %v2583, %v2902
      %v2941 = vadd.f32 %v2584, %v2907
      %v2942 = vadd.f32 %v2585, %v2912
      %v2943 = vadd.f32 %v2586, %v2917
      %v2944 = vadd.f32 %v2587, %v2922
      %v2945 = vadd.f32 %v2588, %v2927
      %v2946 = vlaneseq
      %v2947 = vshrl.u32 %v2946, 7
      %v2948 = vsub.s32 3, %v2947
      %v2949 = vrot.slane %v581, %v2948
      %v2950 = vmul.f32 %v599, %v2949
      %v2951 = vmul.f32 %v600, %v2949
      %v2952 = vmul.f32 %v601, %v2949
      %v2953 = vmul.f32 %v602, %v2949
      %v2954 = vsel %vm880, %v2950, 0.0
      %2955 = vadd.xlane.f32.xlu0 %v2954
      %v2956 = vpop.xlane.xlu0 %2955
      %v2957 = vsel %vm880, %v2951, 0.0
      %2958 = vadd.xlane.f32.xlu0 %v2957
      %v2959 = vpop.xlane.xlu0 %2958
      %v2960 = vsel %vm880, %v2952, 0.0
      %2961 = vadd.xlane.f32.xlu0 %v2960
      %v2962 = vpop.xlane.xlu0 %2961
      %v2963 = vsel %vm1239, %v2953, 0.0
      %2964 = vadd.xlane.f32.xlu0 %v2963
      %v2965 = vpop.xlane.xlu0 %2964
      %v2966 = vlaneseq
      %v2967 = vshrl.u32 %v2966, 7
      %v2968 = vsub.s32 3, %v2967
      %v2969 = vrot.slane %v504, %v2968
      %v2970 = vsub.f32 %v2969, %v2956
      %v2971 = vsub.f32 %v2969, %v2959
      %v2972 = vsub.f32 %v2969, %v2962
      %v2973 = vsub.f32 %v2969, %v2965
      %v2974 = vtanh.pop %v2970
      %v2975 = vtanh.pop %v2971
      %v2976 = vtanh.pop %v2972
      %v2977 = vtanh.pop %v2973
      %s2978 = scalar_lea.vmem %s8, 384
      %v2979 = vld [vmem:[%s2978] sm:$0xff]
      %v2980 = vld [vmem:[%s2978 + $0x8] sm:$0xff]
      %v2981 = vld [vmem:[%s2978 + $0x10] sm:$0xff]
      %v2982 = vld [vmem:[%s2978 + $0x18] sm:$0xff]
      %v2983 = vld [vmem:[%s2978 + $0x20] sm:$0xff]
      %v2984 = vld [vmem:[%s2978 + $0x28] sm:$0xff]
      %v2985 = vld [vmem:[%s2978 + $0x30] sm:$0xff]
      %v2986 = vld [vmem:[%s2978 + $0x38] sm:$0xff]
      %v2987 = vld [vmem:[%s2978 + $0x40] sm:$0xff]
      %v2988 = vld [vmem:[%s2978 + $0x48] sm:$0xff]
      %v2989 = vld [vmem:[%s2978 + $0x50] sm:$0xff]
      %v2990 = vld [vmem:[%s2978 + $0x58] sm:$0xff]
      %v2991 = vld [vmem:[%s2978 + $0x60] sm:$0xff]
      %v2992 = vld [vmem:[%s2978 + $0x68] sm:$0xff]
      %v2993 = vld [vmem:[%s2978 + $0x70] sm:$0xff]
      %v2994 = vld [vmem:[%s2978 + $0x78] sm:$0xff]
      %2996 = vset.pattern.permute.xlu0 0
      %2997 = vperm.xlu0 %2996, %v2979
      %v2998 = vpop.permute.xlu0 %2997
      %3001 = vset.pattern.permute.xlu0 0
      %3002 = vperm.xlu0 %3001, %v2980
      %v3003 = vpop.permute.xlu0 %3002
      %3006 = vset.pattern.permute.xlu0 0
      %3007 = vperm.xlu0 %3006, %v2981
      %v3008 = vpop.permute.xlu0 %3007
      %3011 = vset.pattern.permute.xlu0 0
      %3012 = vperm.xlu0 %3011, %v2982
      %v3013 = vpop.permute.xlu0 %3012
      %3016 = vset.pattern.permute.xlu0 0
      %3017 = vperm.xlu0 %3016, %v2983
      %v3018 = vpop.permute.xlu0 %3017
      %3021 = vset.pattern.permute.xlu0 0
      %3022 = vperm.xlu0 %3021, %v2984
      %v3023 = vpop.permute.xlu0 %3022
      %3026 = vset.pattern.permute.xlu0 0
      %3027 = vperm.xlu0 %3026, %v2985
      %v3028 = vpop.permute.xlu0 %3027
      %3031 = vset.pattern.permute.xlu0 0
      %3032 = vperm.xlu0 %3031, %v2986
      %v3033 = vpop.permute.xlu0 %3032
      %3036 = vset.pattern.permute.xlu0 0
      %3037 = vperm.xlu0 %3036, %v2987
      %v3038 = vpop.permute.xlu0 %3037
      %3041 = vset.pattern.permute.xlu0 0
      %3042 = vperm.xlu0 %3041, %v2988
      %v3043 = vpop.permute.xlu0 %3042
      %3046 = vset.pattern.permute.xlu0 0
      %3047 = vperm.xlu0 %3046, %v2989
      %v3048 = vpop.permute.xlu0 %3047
      %3051 = vset.pattern.permute.xlu0 0
      %3052 = vperm.xlu0 %3051, %v2990
      %v3053 = vpop.permute.xlu0 %3052
      %3056 = vset.pattern.permute.xlu0 0
      %3057 = vperm.xlu0 %3056, %v2991
      %v3058 = vpop.permute.xlu0 %3057
      %3061 = vset.pattern.permute.xlu0 0
      %3062 = vperm.xlu0 %3061, %v2992
      %v3063 = vpop.permute.xlu0 %3062
      %3066 = vset.pattern.permute.xlu0 0
      %3067 = vperm.xlu0 %3066, %v2993
      %v3068 = vpop.permute.xlu0 %3067
      %3071 = vset.pattern.permute.xlu0 0
      %3072 = vperm.xlu0 %3071, %v2994
      %v3073 = vpop.permute.xlu0 %3072
      %v3075 = vmul.f32 %v2998, %v2117
      %v3076 = vmul.f32 %v3003, %v2122
      %v3077 = vmul.f32 %v3008, %v2127
      %v3078 = vmul.f32 %v3013, %v2132
      %v3079 = vmul.f32 %v3018, %v2137
      %v3080 = vmul.f32 %v3023, %v2142
      %v3081 = vmul.f32 %v3028, %v2147
      %v3082 = vmul.f32 %v3033, %v2152
      %v3083 = vmul.f32 %v3038, %v2157
      %v3084 = vmul.f32 %v3043, %v2162
      %v3085 = vmul.f32 %v3048, %v2167
      %v3086 = vmul.f32 %v3053, %v2172
      %v3087 = vmul.f32 %v3058, %v2177
      %v3088 = vmul.f32 %v3063, %v2182
      %v3089 = vmul.f32 %v3068, %v2187
      %v3090 = vmul.f32 %v3073, %v2192
      %v3092 = vsel %vm880, %v3075, 0
      %v3095 = vsel %vm880, %v3076, 0
      %v3098 = vsel %vm880, %v3077, 0
      %v3101 = vsel %vm880, %v3078, 0
      %v3104 = vsel %vm880, %v3079, 0
      %v3107 = vsel %vm880, %v3080, 0
      %v3110 = vsel %vm880, %v3081, 0
      %v3113 = vsel %vm880, %v3082, 0
      %v3116 = vsel %vm880, %v3083, 0
      %v3119 = vsel %vm880, %v3084, 0
      %v3122 = vsel %vm880, %v3085, 0
      %v3125 = vsel %vm880, %v3086, 0
      %v3128 = vsel %vm880, %v3087, 0
      %v3131 = vsel %vm880, %v3088, 0
      %v3134 = vsel %vm880, %v3089, 0
      %v3137 = vsel %vm880, %v3090, 0
      %v3140 = vsel %vm1073, %v2977, 0
      %3142 = vmatprep.subr.mxu0 0.0
      %3143 = vmatpush1.msra.mxu0 %v2974
      %3144 = vmatprep.subr.mxu0 0.0
      %3145 = vmatpush1.msra.mxu0 %v2975
      %3146 = vmatprep.subr.mxu0 0.0
      %3147 = vmatpush1.msra.mxu0 %v2976
      %3148 = vmatprep.subr.mxu0 0.0
      %3149 = vmatpush1.msra.mxu0 %v3140
      %3150 = vmatprep.subr.mxu0 0.0
      %3151 = vmatpush1.msra.mxu0 0.0
      %3152 = vmatprep.subr.mxu0 0.0
      %3153 = vmatpush1.msra.mxu0 0.0
      %3154 = vmatprep.subr.mxu0 0.0
      %3155 = vmatpush1.msra.mxu0 0.0
      %3156 = vmatprep.subr.mxu0 0.0
      %3157 = vmatpush1.msra.mxu0 0.0
      %3158 = vmatprep.subr.mxu0 0.0
      %3159 = vmatpush1.msra.mxu0 0.0
      %3160 = vmatprep.subr.mxu0 0.0
      %3161 = vmatpush1.msra.mxu0 0.0
      %3162 = vmatprep.subr.mxu0 0.0
      %3163 = vmatpush1.msra.mxu0 0.0
      %3164 = vmatprep.subr.mxu0 0.0
      %3165 = vmatpush1.msra.mxu0 0.0
      %3166 = vmatprep.subr.mxu0 0.0
      %3167 = vmatpush1.msra.mxu0 0.0
      %3168 = vmatprep.subr.mxu0 0.0
      %3169 = vmatpush1.msra.mxu0 0.0
      %3170 = vmatprep.subr.mxu0 0.0
      %3171 = vmatpush1.msra.mxu0 0.0
      %3172 = vmatprep.subr.mxu0 0.0
      %3173 = vmatpush1.msra.mxu0 0.0
      %3174 = vmatprep.subr.mxu0 0.0
      %3175 = vmatpush1.msra.mxu0 0.0
      %3176 = vmatprep.subr.mxu0 0.0
      %3177 = vmatpush1.msra.mxu0 0.0
      %3178 = vmatprep.subr.mxu0 0.0
      %3179 = vmatpush1.msra.mxu0 0.0
      %3180 = vmatprep.subr.mxu0 0.0
      %3181 = vmatpush1.msra.mxu0 0.0
      %3182 = vmatprep.subr.mxu0 0.0
      %3183 = vmatpush1.msra.mxu0 0.0
      %3184 = vmatprep.subr.mxu0 0.0
      %3185 = vmatpush1.msra.mxu0 0.0
      %3186 = vmatprep.subr.mxu0 0.0
      %3187 = vmatpush1.msra.mxu0 0.0
      %3188 = vmatprep.subr.mxu0 0.0
      %3189 = vmatpush1.msra.mxu0 0.0
      %3190 = vmatprep.subr.mxu0 0.0
      %3191 = vmatpush1.msra.mxu0 0.0
      %3192 = vmatprep.subr.mxu0 0.0
      %3193 = vmatpush1.msra.mxu0 0.0
      %3194 = vmatprep.subr.mxu0 0.0
      %3195 = vmatpush1.msra.mxu0 0.0
      %3196 = vmatprep.subr.mxu0 0.0
      %3197 = vmatpush1.msra.mxu0 0.0
      %3198 = vmatprep.subr.mxu0 0.0
      %3199 = vmatpush1.msra.mxu0 0.0
      %3200 = vmatprep.subr.mxu0 0.0
      %3201 = vmatpush1.msra.mxu0 0.0
      %3202 = vmatprep.subr.mxu0 0.0
      %3203 = vmatpush1.msra.mxu0 0.0
      %3204 = vmatprep.subr.mxu0 0.0
      %3205 = vmatpush1.msra.mxu0 0.0
      %3206 = vmatprep.mubr.f32.mxu0 0.0
      %3207 = vmatmul.mubr.f32.gmra.mrb[0].mxu0 %v3092
      %v3208 = vpop.f32.mrb[0].mxu0
      %v3209 = vadd.f32 0.0, %v3208
      %v3210 = vpop.f32.mrb[0].mxu0
      %3211 = vmatprep.mubr.f32.mxu0 0.0
      %3212 = vmatmul.mubr.f32.gmra.mrb[0].mxu0 %v3095
      %v3213 = vpop.f32.mrb[0].mxu0
      %v3214 = vadd.f32 0.0, %v3213
      %v3215 = vpop.f32.mrb[0].mxu0
      %3216 = vmatprep.mubr.f32.mxu0 0.0
      %3217 = vmatmul.mubr.f32.gmra.mrb[0].mxu0 %v3098
      %v3218 = vpop.f32.mrb[0].mxu0
      %v3219 = vadd.f32 0.0, %v3218
      %v3220 = vpop.f32.mrb[0].mxu0
      %3221 = vmatprep.mubr.f32.mxu0 0.0
      %3222 = vmatmul.mubr.f32.gmra.mrb[0].mxu0 %v3101
      %v3223 = vpop.f32.mrb[0].mxu0
      %v3224 = vadd.f32 0.0, %v3223
      %v3225 = vpop.f32.mrb[0].mxu0
      %3226 = vmatprep.mubr.f32.mxu0 0.0
      %3227 = vmatmul.mubr.f32.gmra.mrb[0].mxu0 %v3104
      %v3228 = vpop.f32.mrb[0].mxu0
      %v3229 = vadd.f32 0.0, %v3228
      %v3230 = vpop.f32.mrb[0].mxu0
      %3231 = vmatprep.mubr.f32.mxu0 0.0
      %3232 = vmatmul.mubr.f32.gmra.mrb[0].mxu0 %v3107
      %v3233 = vpop.f32.mrb[0].mxu0
      %v3234 = vadd.f32 0.0, %v3233
      %v3235 = vpop.f32.mrb[0].mxu0
      %3236 = vmatprep.mubr.f32.mxu0 0.0
      %3237 = vmatmul.mubr.f32.gmra.mrb[0].mxu0 %v3110
      %v3238 = vpop.f32.mrb[0].mxu0
      %v3239 = vadd.f32 0.0, %v3238
      %v3240 = vpop.f32.mrb[0].mxu0
      %3241 = vmatprep.mubr.f32.mxu0 0.0
      %3242 = vmatmul.mubr.f32.gmra.mrb[0].mxu0 %v3113
      %v3243 = vpop.f32.mrb[0].mxu0
      %v3244 = vadd.f32 0.0, %v3243
      %v3245 = vpop.f32.mrb[0].mxu0
      %3246 = vmatprep.mubr.f32.mxu0 0.0
      %3247 = vmatmul.mubr.f32.gmra.mrb[0].mxu0 %v3116
      %v3248 = vpop.f32.mrb[0].mxu0
      %v3249 = vadd.f32 0.0, %v3248
      %v3250 = vpop.f32.mrb[0].mxu0
      %3251 = vmatprep.mubr.f32.mxu0 0.0
      %3252 = vmatmul.mubr.f32.gmra.mrb[0].mxu0 %v3119
      %v3253 = vpop.f32.mrb[0].mxu0
      %v3254 = vadd.f32 0.0, %v3253
      %v3255 = vpop.f32.mrb[0].mxu0
      %3256 = vmatprep.mubr.f32.mxu0 0.0
      %3257 = vmatmul.mubr.f32.gmra.mrb[0].mxu0 %v3122
      %v3258 = vpop.f32.mrb[0].mxu0
      %v3259 = vadd.f32 0.0, %v3258
      %v3260 = vpop.f32.mrb[0].mxu0
      %3261 = vmatprep.mubr.f32.mxu0 0.0
      %3262 = vmatmul.mubr.f32.gmra.mrb[0].mxu0 %v3125
      %v3263 = vpop.f32.mrb[0].mxu0
      %v3264 = vadd.f32 0.0, %v3263
      %v3265 = vpop.f32.mrb[0].mxu0
      %3266 = vmatprep.mubr.f32.mxu0 0.0
      %3267 = vmatmul.mubr.f32.gmra.mrb[0].mxu0 %v3128
      %v3268 = vpop.f32.mrb[0].mxu0
      %v3269 = vadd.f32 0.0, %v3268
      %v3270 = vpop.f32.mrb[0].mxu0
      %3271 = vmatprep.mubr.f32.mxu0 0.0
      %3272 = vmatmul.mubr.f32.gmra.mrb[0].mxu0 %v3131
      %v3273 = vpop.f32.mrb[0].mxu0
      %v3274 = vadd.f32 0.0, %v3273
      %v3275 = vpop.f32.mrb[0].mxu0
      %3276 = vmatprep.mubr.f32.mxu0 0.0
      %3277 = vmatmul.mubr.f32.gmra.mrb[0].mxu0 %v3134
      %v3278 = vpop.f32.mrb[0].mxu0
      %v3279 = vadd.f32 0.0, %v3278
      %v3280 = vpop.f32.mrb[0].mxu0
      %3281 = vmatprep.mubr.f32.mxu0 0.0
      %3282 = vmatmul.mubr.f32.gmra.mrb[0].mxu0 %v3137
      %v3283 = vpop.f32.mrb[0].mxu0
      %v3284 = vadd.f32 0.0, %v3283
      %v3285 = vpop.f32.mrb[0].mxu0
      %3286 = vdwg.mxu0
      %v3287 = vadd.f32 %v2930, %v3209
      %v3288 = vadd.f32 %v2931, %v3214
      %v3289 = vadd.f32 %v2932, %v3219
      %v3290 = vadd.f32 %v2933, %v3224
      %v3291 = vadd.f32 %v2934, %v3229
      %v3292 = vadd.f32 %v2935, %v3234
      %v3293 = vadd.f32 %v2936, %v3239
      %v3294 = vadd.f32 %v2937, %v3244
      %v3295 = vadd.f32 %v2938, %v3249
      %v3296 = vadd.f32 %v2939, %v3254
      %v3297 = vadd.f32 %v2940, %v3259
      %v3298 = vadd.f32 %v2941, %v3264
      %v3299 = vadd.f32 %v2942, %v3269
      %v3300 = vadd.f32 %v2943, %v3274
      %v3301 = vadd.f32 %v2944, %v3279
      %v3302 = vadd.f32 %v2945, %v3284
      %s3303 = scalar_lea.vmem %s1, 256
      %v3304 = vld [vmem:[%s3303] sm:$0xff]
      %v3305 = vld [vmem:[%s3303 + $0x8] sm:$0xff]
      %v3306 = vld [vmem:[%s3303 + $0x10] sm:$0xff]
      %v3307 = vld [vmem:[%s3303 + $0x18] sm:$0xff]
      %v3308 = vld [vmem:[%s3303 + $0x20] sm:$0xff]
      %v3309 = vld [vmem:[%s3303 + $0x28] sm:$0xff]
      %v3310 = vld [vmem:[%s3303 + $0x30] sm:$0xff]
      %v3311 = vld [vmem:[%s3303 + $0x38] sm:$0xff]
      %v3312 = vld [vmem:[%s3303 + $0x40] sm:$0xff]
      %v3313 = vld [vmem:[%s3303 + $0x48] sm:$0xff]
      %v3314 = vld [vmem:[%s3303 + $0x50] sm:$0xff]
      %v3315 = vld [vmem:[%s3303 + $0x58] sm:$0xff]
      %v3316 = vld [vmem:[%s3303 + $0x60] sm:$0xff]
      %v3317 = vld [vmem:[%s3303 + $0x68] sm:$0xff]
      %v3318 = vld [vmem:[%s3303 + $0x70] sm:$0xff]
      %v3319 = vld [vmem:[%s3303 + $0x78] sm:$0xff]
      %s3320 = scalar_lea.vmem %s2, 256
      %v3321 = vld [vmem:[%s3320] sm:$0xff]
      %v3322 = vld [vmem:[%s3320 + $0x8] sm:$0xff]
      %v3323 = vld [vmem:[%s3320 + $0x10] sm:$0xff]
      %v3324 = vld [vmem:[%s3320 + $0x18] sm:$0xff]
      %v3325 = vld [vmem:[%s3320 + $0x20] sm:$0xff]
      %v3326 = vld [vmem:[%s3320 + $0x28] sm:$0xff]
      %v3327 = vld [vmem:[%s3320 + $0x30] sm:$0xff]
      %v3328 = vld [vmem:[%s3320 + $0x38] sm:$0xff]
      %v3329 = vld [vmem:[%s3320 + $0x40] sm:$0xff]
      %v3330 = vld [vmem:[%s3320 + $0x48] sm:$0xff]
      %v3331 = vld [vmem:[%s3320 + $0x50] sm:$0xff]
      %v3332 = vld [vmem:[%s3320 + $0x58] sm:$0xff]
      %v3333 = vld [vmem:[%s3320 + $0x60] sm:$0xff]
      %v3334 = vld [vmem:[%s3320 + $0x68] sm:$0xff]
      %v3335 = vld [vmem:[%s3320 + $0x70] sm:$0xff]
      %v3336 = vld [vmem:[%s3320 + $0x78] sm:$0xff]
      %3338 = vset.pattern.permute.xlu0 0
      %3339 = vperm.xlu0 %3338, %v3321
      %v3340 = vpop.permute.xlu0 %3339
      %3343 = vset.pattern.permute.xlu0 0
      %3344 = vperm.xlu0 %3343, %v3322
      %v3345 = vpop.permute.xlu0 %3344
      %3348 = vset.pattern.permute.xlu0 0
      %3349 = vperm.xlu0 %3348, %v3323
      %v3350 = vpop.permute.xlu0 %3349
      %3353 = vset.pattern.permute.xlu0 0
      %3354 = vperm.xlu0 %3353, %v3324
      %v3355 = vpop.permute.xlu0 %3354
      %3358 = vset.pattern.permute.xlu0 0
      %3359 = vperm.xlu0 %3358, %v3325
      %v3360 = vpop.permute.xlu0 %3359
      %3363 = vset.pattern.permute.xlu0 0
      %3364 = vperm.xlu0 %3363, %v3326
      %v3365 = vpop.permute.xlu0 %3364
      %3368 = vset.pattern.permute.xlu0 0
      %3369 = vperm.xlu0 %3368, %v3327
      %v3370 = vpop.permute.xlu0 %3369
      %3373 = vset.pattern.permute.xlu0 0
      %3374 = vperm.xlu0 %3373, %v3328
      %v3375 = vpop.permute.xlu0 %3374
      %3378 = vset.pattern.permute.xlu0 0
      %3379 = vperm.xlu0 %3378, %v3329
      %v3380 = vpop.permute.xlu0 %3379
      %3383 = vset.pattern.permute.xlu0 0
      %3384 = vperm.xlu0 %3383, %v3330
      %v3385 = vpop.permute.xlu0 %3384
      %3388 = vset.pattern.permute.xlu0 0
      %3389 = vperm.xlu0 %3388, %v3331
      %v3390 = vpop.permute.xlu0 %3389
      %3393 = vset.pattern.permute.xlu0 0
      %3394 = vperm.xlu0 %3393, %v3332
      %v3395 = vpop.permute.xlu0 %3394
      %3398 = vset.pattern.permute.xlu0 0
      %3399 = vperm.xlu0 %3398, %v3333
      %v3400 = vpop.permute.xlu0 %3399
      %3403 = vset.pattern.permute.xlu0 0
      %3404 = vperm.xlu0 %3403, %v3334
      %v3405 = vpop.permute.xlu0 %3404
      %3408 = vset.pattern.permute.xlu0 0
      %3409 = vperm.xlu0 %3408, %v3335
      %v3410 = vpop.permute.xlu0 %3409
      %3413 = vset.pattern.permute.xlu0 0
      %3414 = vperm.xlu0 %3413, %v3336
      %v3415 = vpop.permute.xlu0 %3414
      %3417 = vmatprep.subr.mxu0 0.0
      %3418 = vmatpush1.msra.mxu0 %v414
      %3419 = vmatprep.subr.mxu0 0.0
      %3420 = vmatpush1.msra.mxu0 %v415
      %3421 = vmatprep.subr.mxu0 0.0
      %3422 = vmatpush1.msra.mxu0 %v416
      %3423 = vmatprep.subr.mxu0 0.0
      %3424 = vmatpush1.msra.mxu0 %v417
      %3425 = vmatprep.subr.mxu0 0.0
      %3426 = vmatpush1.msra.mxu0 %v418
      %3427 = vmatprep.subr.mxu0 0.0
      %3428 = vmatpush1.msra.mxu0 %v419
      %3429 = vmatprep.subr.mxu0 0.0
      %3430 = vmatpush1.msra.mxu0 %v420
      %3431 = vmatprep.subr.mxu0 0.0
      %3432 = vmatpush1.msra.mxu0 %v421
      %3433 = vmatprep.subr.mxu0 0.0
      %3434 = vmatpush1.msra.mxu0 %v422
      %3435 = vmatprep.subr.mxu0 0.0
      %3436 = vmatpush1.msra.mxu0 %v423
      %3437 = vmatprep.subr.mxu0 0.0
      %3438 = vmatpush1.msra.mxu0 %v424
      %3439 = vmatprep.subr.mxu0 0.0
      %3440 = vmatpush1.msra.mxu0 %v425
      %3441 = vmatprep.subr.mxu0 0.0
      %3442 = vmatpush1.msra.mxu0 %v426
      %3443 = vmatprep.subr.mxu0 0.0
      %3444 = vmatpush1.msra.mxu0 %v427
      %3445 = vmatprep.subr.mxu0 0.0
      %3446 = vmatpush1.msra.mxu0 %v428
      %3447 = vmatprep.subr.mxu0 0.0
      %3448 = vmatpush1.msra.mxu0 %v429
      %3449 = vmatprep.subr.mxu0 0.0
      %3450 = vmatpush1.msra.mxu0 0.0
      %3451 = vmatprep.subr.mxu0 0.0
      %3452 = vmatpush1.msra.mxu0 0.0
      %3453 = vmatprep.subr.mxu0 0.0
      %3454 = vmatpush1.msra.mxu0 0.0
      %3455 = vmatprep.subr.mxu0 0.0
      %3456 = vmatpush1.msra.mxu0 0.0
      %3457 = vmatprep.subr.mxu0 0.0
      %3458 = vmatpush1.msra.mxu0 0.0
      %3459 = vmatprep.subr.mxu0 0.0
      %3460 = vmatpush1.msra.mxu0 0.0
      %3461 = vmatprep.subr.mxu0 0.0
      %3462 = vmatpush1.msra.mxu0 0.0
      %3463 = vmatprep.subr.mxu0 0.0
      %3464 = vmatpush1.msra.mxu0 0.0
      %3465 = vmatprep.subr.mxu0 0.0
      %3466 = vmatpush1.msra.mxu0 0.0
      %3467 = vmatprep.subr.mxu0 0.0
      %3468 = vmatpush1.msra.mxu0 0.0
      %3469 = vmatprep.subr.mxu0 0.0
      %3470 = vmatpush1.msra.mxu0 0.0
      %3471 = vmatprep.subr.mxu0 0.0
      %3472 = vmatpush1.msra.mxu0 0.0
      %3473 = vmatprep.subr.mxu0 0.0
      %3474 = vmatpush1.msra.mxu0 0.0
      %3475 = vmatprep.subr.mxu0 0.0
      %3476 = vmatpush1.msra.mxu0 0.0
      %3477 = vmatprep.subr.mxu0 0.0
      %3478 = vmatpush1.msra.mxu0 0.0
      %3479 = vmatprep.subr.mxu0 0.0
      %3480 = vmatpush1.msra.mxu0 0.0
      %3481 = vmatprep.mubr.f32.mxu0 0.0
      %3482 = vmatmul.mubr.f32.gmra.mrb[0].mxu0 %v3304
      %v3483 = vpop.f32.mrb[0].mxu0
      %v3484 = vadd.f32 %v3340, %v3483
      %v3485 = vpop.f32.mrb[0].mxu0
      %3486 = vmatprep.mubr.f32.mxu0 0.0
      %3487 = vmatmul.mubr.f32.gmra.mrb[0].mxu0 %v3305
      %v3488 = vpop.f32.mrb[0].mxu0
      %v3489 = vadd.f32 %v3345, %v3488
      %v3490 = vpop.f32.mrb[0].mxu0
      %3491 = vmatprep.mubr.f32.mxu0 0.0
      %3492 = vmatmul.mubr.f32.gmra.mrb[0].mxu0 %v3306
      %v3493 = vpop.f32.mrb[0].mxu0
      %v3494 = vadd.f32 %v3350, %v3493
      %v3495 = vpop.f32.mrb[0].mxu0
      %3496 = vmatprep.mubr.f32.mxu0 0.0
      %3497 = vmatmul.mubr.f32.gmra.mrb[0].mxu0 %v3307
      %v3498 = vpop.f32.mrb[0].mxu0
      %v3499 = vadd.f32 %v3355, %v3498
      %v3500 = vpop.f32.mrb[0].mxu0
      %3501 = vmatprep.mubr.f32.mxu0 0.0
      %3502 = vmatmul.mubr.f32.gmra.mrb[0].mxu0 %v3308
      %v3503 = vpop.f32.mrb[0].mxu0
      %v3504 = vadd.f32 %v3360, %v3503
      %v3505 = vpop.f32.mrb[0].mxu0
      %3506 = vmatprep.mubr.f32.mxu0 0.0
      %3507 = vmatmul.mubr.f32.gmra.mrb[0].mxu0 %v3309
      %v3508 = vpop.f32.mrb[0].mxu0
      %v3509 = vadd.f32 %v3365, %v3508
      %v3510 = vpop.f32.mrb[0].mxu0
      %3511 = vmatprep.mubr.f32.mxu0 0.0
      %3512 = vmatmul.mubr.f32.gmra.mrb[0].mxu0 %v3310
      %v3513 = vpop.f32.mrb[0].mxu0
      %v3514 = vadd.f32 %v3370, %v3513
      %v3515 = vpop.f32.mrb[0].mxu0
      %3516 = vmatprep.mubr.f32.mxu0 0.0
      %3517 = vmatmul.mubr.f32.gmra.mrb[0].mxu0 %v3311
      %v3518 = vpop.f32.mrb[0].mxu0
      %v3519 = vadd.f32 %v3375, %v3518
      %v3520 = vpop.f32.mrb[0].mxu0
      %3521 = vmatprep.mubr.f32.mxu0 0.0
      %3522 = vmatmul.mubr.f32.gmra.mrb[0].mxu0 %v3312
      %v3523 = vpop.f32.mrb[0].mxu0
      %v3524 = vadd.f32 %v3380, %v3523
      %v3525 = vpop.f32.mrb[0].mxu0
      %3526 = vmatprep.mubr.f32.mxu0 0.0
      %3527 = vmatmul.mubr.f32.gmra.mrb[0].mxu0 %v3313
      %v3528 = vpop.f32.mrb[0].mxu0
      %v3529 = vadd.f32 %v3385, %v3528
      %v3530 = vpop.f32.mrb[0].mxu0
      %3531 = vmatprep.mubr.f32.mxu0 0.0
      %3532 = vmatmul.mubr.f32.gmra.mrb[0].mxu0 %v3314
      %v3533 = vpop.f32.mrb[0].mxu0
      %v3534 = vadd.f32 %v3390, %v3533
      %v3535 = vpop.f32.mrb[0].mxu0
      %3536 = vmatprep.mubr.f32.mxu0 0.0
      %3537 = vmatmul.mubr.f32.gmra.mrb[0].mxu0 %v3315
      %v3538 = vpop.f32.mrb[0].mxu0
      %v3539 = vadd.f32 %v3395, %v3538
      %v3540 = vpop.f32.mrb[0].mxu0
      %3541 = vmatprep.mubr.f32.mxu0 0.0
      %3542 = vmatmul.mubr.f32.gmra.mrb[0].mxu0 %v3316
      %v3543 = vpop.f32.mrb[0].mxu0
      %v3544 = vadd.f32 %v3400, %v3543
      %v3545 = vpop.f32.mrb[0].mxu0
      %3546 = vmatprep.mubr.f32.mxu0 0.0
      %3547 = vmatmul.mubr.f32.gmra.mrb[0].mxu0 %v3317
      %v3548 = vpop.f32.mrb[0].mxu0
      %v3549 = vadd.f32 %v3405, %v3548
      %v3550 = vpop.f32.mrb[0].mxu0
      %3551 = vmatprep.mubr.f32.mxu0 0.0
      %3552 = vmatmul.mubr.f32.gmra.mrb[0].mxu0 %v3318
      %v3553 = vpop.f32.mrb[0].mxu0
      %v3554 = vadd.f32 %v3410, %v3553
      %v3555 = vpop.f32.mrb[0].mxu0
      %3556 = vmatprep.mubr.f32.mxu0 0.0
      %3557 = vmatmul.mubr.f32.gmra.mrb[0].mxu0 %v3319
      %v3558 = vpop.f32.mrb[0].mxu0
      %v3559 = vadd.f32 %v3415, %v3558
      %v3560 = vpop.f32.mrb[0].mxu0
      %3561 = vdwg.mxu0
      %s3562 = scalar_lea.vmem %s7, 64
      %v3563 = vld [vmem:[%s3562] sm:$0xff]
      %v3564 = vld [vmem:[%s3562 + $0x8] sm:$0xff]
      %v3565 = vld [vmem:[%s3562 + $0x10] sm:$0xff]
      %v3566 = vld [vmem:[%s3562 + $0x18] sm:$0x1]
      %v3568 = vsel %vm880, %v3484, 0
      %v3571 = vsel %vm880, %v3489, 0
      %v3574 = vsel %vm880, %v3494, 0
      %v3577 = vsel %vm880, %v3499, 0
      %v3580 = vsel %vm880, %v3504, 0
      %v3583 = vsel %vm880, %v3509, 0
      %v3586 = vsel %vm880, %v3514, 0
      %v3589 = vsel %vm880, %v3519, 0
      %v3592 = vsel %vm880, %v3524, 0
      %v3595 = vsel %vm880, %v3529, 0
      %v3598 = vsel %vm880, %v3534, 0
      %v3601 = vsel %vm880, %v3539, 0
      %v3604 = vsel %vm880, %v3544, 0
      %v3607 = vsel %vm880, %v3549, 0
      %v3610 = vsel %vm880, %v3554, 0
      %v3613 = vsel %vm880, %v3559, 0
      %v3616 = vsel %vm1073, %v3566, 0
      %3618 = vmatprep.subr.mxu0 0.0
      %3619 = vmatpush1.msra.mxu0 %v3563
      %3620 = vmatprep.subr.mxu0 0.0
      %3621 = vmatpush1.msra.mxu0 %v3564
      %3622 = vmatprep.subr.mxu0 0.0
      %3623 = vmatpush1.msra.mxu0 %v3565
      %3624 = vmatprep.subr.mxu0 0.0
      %3625 = vmatpush1.msra.mxu0 %v3616
      %3626 = vmatprep.subr.mxu0 0.0
      %3627 = vmatpush1.msra.mxu0 0.0
      %3628 = vmatprep.subr.mxu0 0.0
      %3629 = vmatpush1.msra.mxu0 0.0
      %3630 = vmatprep.subr.mxu0 0.0
      %3631 = vmatpush1.msra.mxu0 0.0
      %3632 = vmatprep.subr.mxu0 0.0
      %3633 = vmatpush1.msra.mxu0 0.0
      %3634 = vmatprep.subr.mxu0 0.0
      %3635 = vmatpush1.msra.mxu0 0.0
      %3636 = vmatprep.subr.mxu0 0.0
      %3637 = vmatpush1.msra.mxu0 0.0
      %3638 = vmatprep.subr.mxu0 0.0
      %3639 = vmatpush1.msra.mxu0 0.0
      %3640 = vmatprep.subr.mxu0 0.0
      %3641 = vmatpush1.msra.mxu0 0.0
      %3642 = vmatprep.subr.mxu0 0.0
      %3643 = vmatpush1.msra.mxu0 0.0
      %3644 = vmatprep.subr.mxu0 0.0
      %3645 = vmatpush1.msra.mxu0 0.0
      %3646 = vmatprep.subr.mxu0 0.0
      %3647 = vmatpush1.msra.mxu0 0.0
      %3648 = vmatprep.subr.mxu0 0.0
      %3649 = vmatpush1.msra.mxu0 0.0
      %3650 = vmatprep.subr.mxu0 0.0
      %3651 = vmatpush1.msra.mxu0 0.0
      %3652 = vmatprep.subr.mxu0 0.0
      %3653 = vmatpush1.msra.mxu0 0.0
      %3654 = vmatprep.subr.mxu0 0.0
      %3655 = vmatpush1.msra.mxu0 0.0
      %3656 = vmatprep.subr.mxu0 0.0
      %3657 = vmatpush1.msra.mxu0 0.0
      %3658 = vmatprep.subr.mxu0 0.0
      %3659 = vmatpush1.msra.mxu0 0.0
      %3660 = vmatprep.subr.mxu0 0.0
      %3661 = vmatpush1.msra.mxu0 0.0
      %3662 = vmatprep.subr.mxu0 0.0
      %3663 = vmatpush1.msra.mxu0 0.0
      %3664 = vmatprep.subr.mxu0 0.0
      %3665 = vmatpush1.msra.mxu0 0.0
      %3666 = vmatprep.subr.mxu0 0.0
      %3667 = vmatpush1.msra.mxu0 0.0
      %3668 = vmatprep.subr.mxu0 0.0
      %3669 = vmatpush1.msra.mxu0 0.0
      %3670 = vmatprep.subr.mxu0 0.0
      %3671 = vmatpush1.msra.mxu0 0.0
      %3672 = vmatprep.subr.mxu0 0.0
      %3673 = vmatpush1.msra.mxu0 0.0
      %3674 = vmatprep.subr.mxu0 0.0
      %3675 = vmatpush1.msra.mxu0 0.0
      %3676 = vmatprep.subr.mxu0 0.0
      %3677 = vmatpush1.msra.mxu0 0.0
      %3678 = vmatprep.subr.mxu0 0.0
      %3679 = vmatpush1.msra.mxu0 0.0
      %3680 = vmatprep.subr.mxu0 0.0
      %3681 = vmatpush1.msra.mxu0 0.0
      %3682 = vmatprep.mubr.f32.mxu0 0.0
      %3683 = vmatmul.mubr.f32.gmra.mrb[0].mxu0 %v3568
      %v3684 = vpop.f32.mrb[0].mxu0
      %v3685 = vadd.f32 0.0, %v3684
      %v3686 = vpop.f32.mrb[0].mxu0
      %3687 = vmatprep.mubr.f32.mxu0 0.0
      %3688 = vmatmul.mubr.f32.gmra.mrb[0].mxu0 %v3571
      %v3689 = vpop.f32.mrb[0].mxu0
      %v3690 = vadd.f32 0.0, %v3689
      %v3691 = vpop.f32.mrb[0].mxu0
      %3692 = vmatprep.mubr.f32.mxu0 0.0
      %3693 = vmatmul.mubr.f32.gmra.mrb[0].mxu0 %v3574
      %v3694 = vpop.f32.mrb[0].mxu0
      %v3695 = vadd.f32 0.0, %v3694
      %v3696 = vpop.f32.mrb[0].mxu0
      %3697 = vmatprep.mubr.f32.mxu0 0.0
      %3698 = vmatmul.mubr.f32.gmra.mrb[0].mxu0 %v3577
      %v3699 = vpop.f32.mrb[0].mxu0
      %v3700 = vadd.f32 0.0, %v3699
      %v3701 = vpop.f32.mrb[0].mxu0
      %3702 = vmatprep.mubr.f32.mxu0 0.0
      %3703 = vmatmul.mubr.f32.gmra.mrb[0].mxu0 %v3580
      %v3704 = vpop.f32.mrb[0].mxu0
      %v3705 = vadd.f32 0.0, %v3704
      %v3706 = vpop.f32.mrb[0].mxu0
      %3707 = vmatprep.mubr.f32.mxu0 0.0
      %3708 = vmatmul.mubr.f32.gmra.mrb[0].mxu0 %v3583
      %v3709 = vpop.f32.mrb[0].mxu0
      %v3710 = vadd.f32 0.0, %v3709
      %v3711 = vpop.f32.mrb[0].mxu0
      %3712 = vmatprep.mubr.f32.mxu0 0.0
      %3713 = vmatmul.mubr.f32.gmra.mrb[0].mxu0 %v3586
      %v3714 = vpop.f32.mrb[0].mxu0
      %v3715 = vadd.f32 0.0, %v3714
      %v3716 = vpop.f32.mrb[0].mxu0
      %3717 = vmatprep.mubr.f32.mxu0 0.0
      %3718 = vmatmul.mubr.f32.gmra.mrb[0].mxu0 %v3589
      %v3719 = vpop.f32.mrb[0].mxu0
      %v3720 = vadd.f32 0.0, %v3719
      %v3721 = vpop.f32.mrb[0].mxu0
      %3722 = vmatprep.mubr.f32.mxu0 0.0
      %3723 = vmatmul.mubr.f32.gmra.mrb[0].mxu0 %v3592
      %v3724 = vpop.f32.mrb[0].mxu0
      %v3725 = vadd.f32 0.0, %v3724
      %v3726 = vpop.f32.mrb[0].mxu0
      %3727 = vmatprep.mubr.f32.mxu0 0.0
      %3728 = vmatmul.mubr.f32.gmra.mrb[0].mxu0 %v3595
      %v3729 = vpop.f32.mrb[0].mxu0
      %v3730 = vadd.f32 0.0, %v3729
      %v3731 = vpop.f32.mrb[0].mxu0
      %3732 = vmatprep.mubr.f32.mxu0 0.0
      %3733 = vmatmul.mubr.f32.gmra.mrb[0].mxu0 %v3598
      %v3734 = vpop.f32.mrb[0].mxu0
      %v3735 = vadd.f32 0.0, %v3734
      %v3736 = vpop.f32.mrb[0].mxu0
      %3737 = vmatprep.mubr.f32.mxu0 0.0
      %3738 = vmatmul.mubr.f32.gmra.mrb[0].mxu0 %v3601
      %v3739 = vpop.f32.mrb[0].mxu0
      %v3740 = vadd.f32 0.0, %v3739
      %v3741 = vpop.f32.mrb[0].mxu0
      %3742 = vmatprep.mubr.f32.mxu0 0.0
      %3743 = vmatmul.mubr.f32.gmra.mrb[0].mxu0 %v3604
      %v3744 = vpop.f32.mrb[0].mxu0
      %v3745 = vadd.f32 0.0, %v3744
      %v3746 = vpop.f32.mrb[0].mxu0
      %3747 = vmatprep.mubr.f32.mxu0 0.0
      %3748 = vmatmul.mubr.f32.gmra.mrb[0].mxu0 %v3607
      %v3749 = vpop.f32.mrb[0].mxu0
      %v3750 = vadd.f32 0.0, %v3749
      %v3751 = vpop.f32.mrb[0].mxu0
      %3752 = vmatprep.mubr.f32.mxu0 0.0
      %3753 = vmatmul.mubr.f32.gmra.mrb[0].mxu0 %v3610
      %v3754 = vpop.f32.mrb[0].mxu0
      %v3755 = vadd.f32 0.0, %v3754
      %v3756 = vpop.f32.mrb[0].mxu0
      %3757 = vmatprep.mubr.f32.mxu0 0.0
      %3758 = vmatmul.mubr.f32.gmra.mrb[0].mxu0 %v3613
      %v3759 = vpop.f32.mrb[0].mxu0
      %v3760 = vadd.f32 0.0, %v3759
      %v3761 = vpop.f32.mrb[0].mxu0
      %3762 = vdwg.mxu0
      %v3763 = vadd.f32 %v3287, %v3685
      %v3764 = vadd.f32 %v3288, %v3690
      %v3765 = vadd.f32 %v3289, %v3695
      %v3766 = vadd.f32 %v3290, %v3700
      %v3767 = vadd.f32 %v3291, %v3705
      %v3768 = vadd.f32 %v3292, %v3710
      %v3769 = vadd.f32 %v3293, %v3715
      %v3770 = vadd.f32 %v3294, %v3720
      %v3771 = vadd.f32 %v3295, %v3725
      %v3772 = vadd.f32 %v3296, %v3730
      %v3773 = vadd.f32 %v3297, %v3735
      %v3774 = vadd.f32 %v3298, %v3740
      %v3775 = vadd.f32 %v3299, %v3745
      %v3776 = vadd.f32 %v3300, %v3750
      %v3777 = vadd.f32 %v3301, %v3755
      %v3778 = vadd.f32 %v3302, %v3760
      %s3779 = scalar_lea.vmem %s9, 256
      %v3780 = vld [vmem:[%s3779] sm:$0xff]
      %v3781 = vld [vmem:[%s3779 + $0x8] sm:$0xff]
      %v3782 = vld [vmem:[%s3779 + $0x10] sm:$0xff]
      %v3783 = vld [vmem:[%s3779 + $0x18] sm:$0xff]
      %v3784 = vld [vmem:[%s3779 + $0x20] sm:$0xff]
      %v3785 = vld [vmem:[%s3779 + $0x28] sm:$0xff]
      %v3786 = vld [vmem:[%s3779 + $0x30] sm:$0xff]
      %v3787 = vld [vmem:[%s3779 + $0x38] sm:$0xff]
      %v3788 = vld [vmem:[%s3779 + $0x40] sm:$0xff]
      %v3789 = vld [vmem:[%s3779 + $0x48] sm:$0xff]
      %v3790 = vld [vmem:[%s3779 + $0x50] sm:$0xff]
      %v3791 = vld [vmem:[%s3779 + $0x58] sm:$0xff]
      %v3792 = vld [vmem:[%s3779 + $0x60] sm:$0xff]
      %v3793 = vld [vmem:[%s3779 + $0x68] sm:$0xff]
      %v3794 = vld [vmem:[%s3779 + $0x70] sm:$0xff]
      %v3795 = vld [vmem:[%s3779 + $0x78] sm:$0xff]
      %v3796 = vsel %vm880, %v3484, 0.0
      %3797 = vadd.xlane.f32.xlu0 %v3796
      %v3798 = vpop.xlane.xlu0 %3797
      %v3799 = vsel %vm880, %v3489, 0.0
      %3800 = vadd.xlane.f32.xlu0 %v3799
      %v3801 = vpop.xlane.xlu0 %3800
      %v3802 = vsel %vm880, %v3494, 0.0
      %3803 = vadd.xlane.f32.xlu0 %v3802
      %v3804 = vpop.xlane.xlu0 %3803
      %v3805 = vsel %vm880, %v3499, 0.0
      %3806 = vadd.xlane.f32.xlu0 %v3805
      %v3807 = vpop.xlane.xlu0 %3806
      %v3808 = vsel %vm880, %v3504, 0.0
      %3809 = vadd.xlane.f32.xlu0 %v3808
      %v3810 = vpop.xlane.xlu0 %3809
      %v3811 = vsel %vm880, %v3509, 0.0
      %3812 = vadd.xlane.f32.xlu0 %v3811
      %v3813 = vpop.xlane.xlu0 %3812
      %v3814 = vsel %vm880, %v3514, 0.0
      %3815 = vadd.xlane.f32.xlu0 %v3814
      %v3816 = vpop.xlane.xlu0 %3815
      %v3817 = vsel %vm880, %v3519, 0.0
      %3818 = vadd.xlane.f32.xlu0 %v3817
      %v3819 = vpop.xlane.xlu0 %3818
      %v3820 = vsel %vm880, %v3524, 0.0
      %3821 = vadd.xlane.f32.xlu0 %v3820
      %v3822 = vpop.xlane.xlu0 %3821
      %v3823 = vsel %vm880, %v3529, 0.0
      %3824 = vadd.xlane.f32.xlu0 %v3823
      %v3825 = vpop.xlane.xlu0 %3824
      %v3826 = vsel %vm880, %v3534, 0.0
      %3827 = vadd.xlane.f32.xlu0 %v3826
      %v3828 = vpop.xlane.xlu0 %3827
      %v3829 = vsel %vm880, %v3539, 0.0
      %3830 = vadd.xlane.f32.xlu0 %v3829
      %v3831 = vpop.xlane.xlu0 %3830
      %v3832 = vsel %vm880, %v3544, 0.0
      %3833 = vadd.xlane.f32.xlu0 %v3832
      %v3834 = vpop.xlane.xlu0 %3833
      %v3835 = vsel %vm880, %v3549, 0.0
      %3836 = vadd.xlane.f32.xlu0 %v3835
      %v3837 = vpop.xlane.xlu0 %3836
      %v3838 = vsel %vm880, %v3554, 0.0
      %3839 = vadd.xlane.f32.xlu0 %v3838
      %v3840 = vpop.xlane.xlu0 %3839
      %v3841 = vsel %vm880, %v3559, 0.0
      %3842 = vadd.xlane.f32.xlu0 %v3841
      %v3843 = vpop.xlane.xlu0 %3842
      %v3844 = vmul.f32 %v3780, %v3798
      %v3845 = vmul.f32 %v3781, %v3801
      %v3846 = vmul.f32 %v3782, %v3804
      %v3847 = vmul.f32 %v3783, %v3807
      %v3848 = vmul.f32 %v3784, %v3810
      %v3849 = vmul.f32 %v3785, %v3813
      %v3850 = vmul.f32 %v3786, %v3816
      %v3851 = vmul.f32 %v3787, %v3819
      %v3852 = vmul.f32 %v3788, %v3822
      %v3853 = vmul.f32 %v3789, %v3825
      %v3854 = vmul.f32 %v3790, %v3828
      %v3855 = vmul.f32 %v3791, %v3831
      %v3856 = vmul.f32 %v3792, %v3834
      %v3857 = vmul.f32 %v3793, %v3837
      %v3858 = vmul.f32 %v3794, %v3840
      %v3859 = vmul.f32 %v3795, %v3843
      %3861 = vset.pattern.permute.xlu0 0
      %3862 = vperm.xlu0 %3861, %v3844
      %v3863 = vpop.permute.xlu0 %3862
      %3866 = vset.pattern.permute.xlu0 0
      %3867 = vperm.xlu0 %3866, %v3845
      %v3868 = vpop.permute.xlu0 %3867
      %3871 = vset.pattern.permute.xlu0 0
      %3872 = vperm.xlu0 %3871, %v3846
      %v3873 = vpop.permute.xlu0 %3872
      %3876 = vset.pattern.permute.xlu0 0
      %3877 = vperm.xlu0 %3876, %v3847
      %v3878 = vpop.permute.xlu0 %3877
      %3881 = vset.pattern.permute.xlu0 0
      %3882 = vperm.xlu0 %3881, %v3848
      %v3883 = vpop.permute.xlu0 %3882
      %3886 = vset.pattern.permute.xlu0 0
      %3887 = vperm.xlu0 %3886, %v3849
      %v3888 = vpop.permute.xlu0 %3887
      %3891 = vset.pattern.permute.xlu0 0
      %3892 = vperm.xlu0 %3891, %v3850
      %v3893 = vpop.permute.xlu0 %3892
      %3896 = vset.pattern.permute.xlu0 0
      %3897 = vperm.xlu0 %3896, %v3851
      %v3898 = vpop.permute.xlu0 %3897
      %3901 = vset.pattern.permute.xlu0 0
      %3902 = vperm.xlu0 %3901, %v3852
      %v3903 = vpop.permute.xlu0 %3902
      %3906 = vset.pattern.permute.xlu0 0
      %3907 = vperm.xlu0 %3906, %v3853
      %v3908 = vpop.permute.xlu0 %3907
      %3911 = vset.pattern.permute.xlu0 0
      %3912 = vperm.xlu0 %3911, %v3854
      %v3913 = vpop.permute.xlu0 %3912
      %3916 = vset.pattern.permute.xlu0 0
      %3917 = vperm.xlu0 %3916, %v3855
      %v3918 = vpop.permute.xlu0 %3917
      %3921 = vset.pattern.permute.xlu0 0
      %3922 = vperm.xlu0 %3921, %v3856
      %v3923 = vpop.permute.xlu0 %3922
      %3926 = vset.pattern.permute.xlu0 0
      %3927 = vperm.xlu0 %3926, %v3857
      %v3928 = vpop.permute.xlu0 %3927
      %3931 = vset.pattern.permute.xlu0 0
      %3932 = vperm.xlu0 %3931, %v3858
      %v3933 = vpop.permute.xlu0 %3932
      %3936 = vset.pattern.permute.xlu0 0
      %3937 = vperm.xlu0 %3936, %v3859
      %v3938 = vpop.permute.xlu0 %3937
      %v3940 = vadd.f32 %v3763, %v3863
      %v3941 = vadd.f32 %v3764, %v3868
      %v3942 = vadd.f32 %v3765, %v3873
      %v3943 = vadd.f32 %v3766, %v3878
      %v3944 = vadd.f32 %v3767, %v3883
      %v3945 = vadd.f32 %v3768, %v3888
      %v3946 = vadd.f32 %v3769, %v3893
      %v3947 = vadd.f32 %v3770, %v3898
      %v3948 = vadd.f32 %v3771, %v3903
      %v3949 = vadd.f32 %v3772, %v3908
      %v3950 = vadd.f32 %v3773, %v3913
      %v3951 = vadd.f32 %v3774, %v3918
      %v3952 = vadd.f32 %v3775, %v3923
      %v3953 = vadd.f32 %v3776, %v3928
      %v3954 = vadd.f32 %v3777, %v3933
      %v3955 = vadd.f32 %v3778, %v3938
      %v3956 = vlaneseq
      %v3957 = vshrl.u32 %v3956, 7
      %v3958 = vsub.s32 4, %v3957
      %v3959 = vrot.slane %v581, %v3958
      %v3960 = vmul.f32 %v599, %v3959
      %v3961 = vmul.f32 %v600, %v3959
      %v3962 = vmul.f32 %v601, %v3959
      %v3963 = vmul.f32 %v602, %v3959
      %v3964 = vsel %vm880, %v3960, 0.0
      %3965 = vadd.xlane.f32.xlu0 %v3964
      %v3966 = vpop.xlane.xlu0 %3965
      %v3967 = vsel %vm880, %v3961, 0.0
      %3968 = vadd.xlane.f32.xlu0 %v3967
      %v3969 = vpop.xlane.xlu0 %3968
      %v3970 = vsel %vm880, %v3962, 0.0
      %3971 = vadd.xlane.f32.xlu0 %v3970
      %v3972 = vpop.xlane.xlu0 %3971
      %v3973 = vsel %vm1239, %v3963, 0.0
      %3974 = vadd.xlane.f32.xlu0 %v3973
      %v3975 = vpop.xlane.xlu0 %3974
      %v3976 = vlaneseq
      %v3977 = vshrl.u32 %v3976, 7
      %v3978 = vsub.s32 4, %v3977
      %v3979 = vrot.slane %v504, %v3978
      %v3980 = vsub.f32 %v3979, %v3966
      %v3981 = vsub.f32 %v3979, %v3969
      %v3982 = vsub.f32 %v3979, %v3972
      %v3983 = vsub.f32 %v3979, %v3975
      %v3984 = vtanh.pop %v3980
      %v3985 = vtanh.pop %v3981
      %v3986 = vtanh.pop %v3982
      %v3987 = vtanh.pop %v3983
      %s3988 = scalar_lea.vmem %s8, 512
      %v3989 = vld [vmem:[%s3988] sm:$0xff]
      %v3990 = vld [vmem:[%s3988 + $0x8] sm:$0xff]
      %v3991 = vld [vmem:[%s3988 + $0x10] sm:$0xff]
      %v3992 = vld [vmem:[%s3988 + $0x18] sm:$0xff]
      %v3993 = vld [vmem:[%s3988 + $0x20] sm:$0xff]
      %v3994 = vld [vmem:[%s3988 + $0x28] sm:$0xff]
      %v3995 = vld [vmem:[%s3988 + $0x30] sm:$0xff]
      %v3996 = vld [vmem:[%s3988 + $0x38] sm:$0xff]
      %v3997 = vld [vmem:[%s3988 + $0x40] sm:$0xff]
      %v3998 = vld [vmem:[%s3988 + $0x48] sm:$0xff]
      %v3999 = vld [vmem:[%s3988 + $0x50] sm:$0xff]
      %v4000 = vld [vmem:[%s3988 + $0x58] sm:$0xff]
      %v4001 = vld [vmem:[%s3988 + $0x60] sm:$0xff]
      %v4002 = vld [vmem:[%s3988 + $0x68] sm:$0xff]
      %v4003 = vld [vmem:[%s3988 + $0x70] sm:$0xff]
      %v4004 = vld [vmem:[%s3988 + $0x78] sm:$0xff]
      %4006 = vset.pattern.permute.xlu0 0
      %4007 = vperm.xlu0 %4006, %v3989
      %v4008 = vpop.permute.xlu0 %4007
      %4011 = vset.pattern.permute.xlu0 0
      %4012 = vperm.xlu0 %4011, %v3990
      %v4013 = vpop.permute.xlu0 %4012
      %4016 = vset.pattern.permute.xlu0 0
      %4017 = vperm.xlu0 %4016, %v3991
      %v4018 = vpop.permute.xlu0 %4017
      %4021 = vset.pattern.permute.xlu0 0
      %4022 = vperm.xlu0 %4021, %v3992
      %v4023 = vpop.permute.xlu0 %4022
      %4026 = vset.pattern.permute.xlu0 0
      %4027 = vperm.xlu0 %4026, %v3993
      %v4028 = vpop.permute.xlu0 %4027
      %4031 = vset.pattern.permute.xlu0 0
      %4032 = vperm.xlu0 %4031, %v3994
      %v4033 = vpop.permute.xlu0 %4032
      %4036 = vset.pattern.permute.xlu0 0
      %4037 = vperm.xlu0 %4036, %v3995
      %v4038 = vpop.permute.xlu0 %4037
      %4041 = vset.pattern.permute.xlu0 0
      %4042 = vperm.xlu0 %4041, %v3996
      %v4043 = vpop.permute.xlu0 %4042
      %4046 = vset.pattern.permute.xlu0 0
      %4047 = vperm.xlu0 %4046, %v3997
      %v4048 = vpop.permute.xlu0 %4047
      %4051 = vset.pattern.permute.xlu0 0
      %4052 = vperm.xlu0 %4051, %v3998
      %v4053 = vpop.permute.xlu0 %4052
      %4056 = vset.pattern.permute.xlu0 0
      %4057 = vperm.xlu0 %4056, %v3999
      %v4058 = vpop.permute.xlu0 %4057
      %4061 = vset.pattern.permute.xlu0 0
      %4062 = vperm.xlu0 %4061, %v4000
      %v4063 = vpop.permute.xlu0 %4062
      %4066 = vset.pattern.permute.xlu0 0
      %4067 = vperm.xlu0 %4066, %v4001
      %v4068 = vpop.permute.xlu0 %4067
      %4071 = vset.pattern.permute.xlu0 0
      %4072 = vperm.xlu0 %4071, %v4002
      %v4073 = vpop.permute.xlu0 %4072
      %4076 = vset.pattern.permute.xlu0 0
      %4077 = vperm.xlu0 %4076, %v4003
      %v4078 = vpop.permute.xlu0 %4077
      %4081 = vset.pattern.permute.xlu0 0
      %4082 = vperm.xlu0 %4081, %v4004
      %v4083 = vpop.permute.xlu0 %4082
      %v4085 = vmul.f32 %v4008, %v3484
      %v4086 = vmul.f32 %v4013, %v3489
      %v4087 = vmul.f32 %v4018, %v3494
      %v4088 = vmul.f32 %v4023, %v3499
      %v4089 = vmul.f32 %v4028, %v3504
      %v4090 = vmul.f32 %v4033, %v3509
      %v4091 = vmul.f32 %v4038, %v3514
      %v4092 = vmul.f32 %v4043, %v3519
      %v4093 = vmul.f32 %v4048, %v3524
      %v4094 = vmul.f32 %v4053, %v3529
      %v4095 = vmul.f32 %v4058, %v3534
      %v4096 = vmul.f32 %v4063, %v3539
      %v4097 = vmul.f32 %v4068, %v3544
      %v4098 = vmul.f32 %v4073, %v3549
      %v4099 = vmul.f32 %v4078, %v3554
      %v4100 = vmul.f32 %v4083, %v3559
      %v4102 = vsel %vm880, %v4085, 0
      %v4105 = vsel %vm880, %v4086, 0
      %v4108 = vsel %vm880, %v4087, 0
      %v4111 = vsel %vm880, %v4088, 0
      %v4114 = vsel %vm880, %v4089, 0
      %v4117 = vsel %vm880, %v4090, 0
      %v4120 = vsel %vm880, %v4091, 0
      %v4123 = vsel %vm880, %v4092, 0
      %v4126 = vsel %vm880, %v4093, 0
      %v4129 = vsel %vm880, %v4094, 0
      %v4132 = vsel %vm880, %v4095, 0
      %v4135 = vsel %vm880, %v4096, 0
      %v4138 = vsel %vm880, %v4097, 0
      %v4141 = vsel %vm880, %v4098, 0
      %v4144 = vsel %vm880, %v4099, 0
      %v4147 = vsel %vm880, %v4100, 0
      %v4150 = vsel %vm1073, %v3987, 0
      %4152 = vmatprep.subr.mxu0 0.0
      %4153 = vmatpush1.msra.mxu0 %v3984
      %4154 = vmatprep.subr.mxu0 0.0
      %4155 = vmatpush1.msra.mxu0 %v3985
      %4156 = vmatprep.subr.mxu0 0.0
      %4157 = vmatpush1.msra.mxu0 %v3986
      %4158 = vmatprep.subr.mxu0 0.0
      %4159 = vmatpush1.msra.mxu0 %v4150
      %4160 = vmatprep.subr.mxu0 0.0
      %4161 = vmatpush1.msra.mxu0 0.0
      %4162 = vmatprep.subr.mxu0 0.0
      %4163 = vmatpush1.msra.mxu0 0.0
      %4164 = vmatprep.subr.mxu0 0.0
      %4165 = vmatpush1.msra.mxu0 0.0
      %4166 = vmatprep.subr.mxu0 0.0
      %4167 = vmatpush1.msra.mxu0 0.0
      %4168 = vmatprep.subr.mxu0 0.0
      %4169 = vmatpush1.msra.mxu0 0.0
      %4170 = vmatprep.subr.mxu0 0.0
      %4171 = vmatpush1.msra.mxu0 0.0
      %4172 = vmatprep.subr.mxu0 0.0
      %4173 = vmatpush1.msra.mxu0 0.0
      %4174 = vmatprep.subr.mxu0 0.0
      %4175 = vmatpush1.msra.mxu0 0.0
      %4176 = vmatprep.subr.mxu0 0.0
      %4177 = vmatpush1.msra.mxu0 0.0
      %4178 = vmatprep.subr.mxu0 0.0
      %4179 = vmatpush1.msra.mxu0 0.0
      %4180 = vmatprep.subr.mxu0 0.0
      %4181 = vmatpush1.msra.mxu0 0.0
      %4182 = vmatprep.subr.mxu0 0.0
      %4183 = vmatpush1.msra.mxu0 0.0
      %4184 = vmatprep.subr.mxu0 0.0
      %4185 = vmatpush1.msra.mxu0 0.0
      %4186 = vmatprep.subr.mxu0 0.0
      %4187 = vmatpush1.msra.mxu0 0.0
      %4188 = vmatprep.subr.mxu0 0.0
      %4189 = vmatpush1.msra.mxu0 0.0
      %4190 = vmatprep.subr.mxu0 0.0
      %4191 = vmatpush1.msra.mxu0 0.0
      %4192 = vmatprep.subr.mxu0 0.0
      %4193 = vmatpush1.msra.mxu0 0.0
      %4194 = vmatprep.subr.mxu0 0.0
      %4195 = vmatpush1.msra.mxu0 0.0
      %4196 = vmatprep.subr.mxu0 0.0
      %4197 = vmatpush1.msra.mxu0 0.0
      %4198 = vmatprep.subr.mxu0 0.0
      %4199 = vmatpush1.msra.mxu0 0.0
      %4200 = vmatprep.subr.mxu0 0.0
      %4201 = vmatpush1.msra.mxu0 0.0
      %4202 = vmatprep.subr.mxu0 0.0
      %4203 = vmatpush1.msra.mxu0 0.0
      %4204 = vmatprep.subr.mxu0 0.0
      %4205 = vmatpush1.msra.mxu0 0.0
      %4206 = vmatprep.subr.mxu0 0.0
      %4207 = vmatpush1.msra.mxu0 0.0
      %4208 = vmatprep.subr.mxu0 0.0
      %4209 = vmatpush1.msra.mxu0 0.0
      %4210 = vmatprep.subr.mxu0 0.0
      %4211 = vmatpush1.msra.mxu0 0.0
      %4212 = vmatprep.subr.mxu0 0.0
      %4213 = vmatpush1.msra.mxu0 0.0
      %4214 = vmatprep.subr.mxu0 0.0
      %4215 = vmatpush1.msra.mxu0 0.0
      %4216 = vmatprep.mubr.f32.mxu0 0.0
      %4217 = vmatmul.mubr.f32.gmra.mrb[0].mxu0 %v4102
      %v4218 = vpop.f32.mrb[0].mxu0
      %v4219 = vadd.f32 0.0, %v4218
      %v4220 = vpop.f32.mrb[0].mxu0
      %4221 = vmatprep.mubr.f32.mxu0 0.0
      %4222 = vmatmul.mubr.f32.gmra.mrb[0].mxu0 %v4105
      %v4223 = vpop.f32.mrb[0].mxu0
      %v4224 = vadd.f32 0.0, %v4223
      %v4225 = vpop.f32.mrb[0].mxu0
      %4226 = vmatprep.mubr.f32.mxu0 0.0
      %4227 = vmatmul.mubr.f32.gmra.mrb[0].mxu0 %v4108
      %v4228 = vpop.f32.mrb[0].mxu0
      %v4229 = vadd.f32 0.0, %v4228
      %v4230 = vpop.f32.mrb[0].mxu0
      %4231 = vmatprep.mubr.f32.mxu0 0.0
      %4232 = vmatmul.mubr.f32.gmra.mrb[0].mxu0 %v4111
      %v4233 = vpop.f32.mrb[0].mxu0
      %v4234 = vadd.f32 0.0, %v4233
      %v4235 = vpop.f32.mrb[0].mxu0
      %4236 = vmatprep.mubr.f32.mxu0 0.0
      %4237 = vmatmul.mubr.f32.gmra.mrb[0].mxu0 %v4114
      %v4238 = vpop.f32.mrb[0].mxu0
      %v4239 = vadd.f32 0.0, %v4238
      %v4240 = vpop.f32.mrb[0].mxu0
      %4241 = vmatprep.mubr.f32.mxu0 0.0
      %4242 = vmatmul.mubr.f32.gmra.mrb[0].mxu0 %v4117
      %v4243 = vpop.f32.mrb[0].mxu0
      %v4244 = vadd.f32 0.0, %v4243
      %v4245 = vpop.f32.mrb[0].mxu0
      %4246 = vmatprep.mubr.f32.mxu0 0.0
      %4247 = vmatmul.mubr.f32.gmra.mrb[0].mxu0 %v4120
      %v4248 = vpop.f32.mrb[0].mxu0
      %v4249 = vadd.f32 0.0, %v4248
      %v4250 = vpop.f32.mrb[0].mxu0
      %4251 = vmatprep.mubr.f32.mxu0 0.0
      %4252 = vmatmul.mubr.f32.gmra.mrb[0].mxu0 %v4123
      %v4253 = vpop.f32.mrb[0].mxu0
      %v4254 = vadd.f32 0.0, %v4253
      %v4255 = vpop.f32.mrb[0].mxu0
      %4256 = vmatprep.mubr.f32.mxu0 0.0
      %4257 = vmatmul.mubr.f32.gmra.mrb[0].mxu0 %v4126
      %v4258 = vpop.f32.mrb[0].mxu0
      %v4259 = vadd.f32 0.0, %v4258
      %v4260 = vpop.f32.mrb[0].mxu0
      %4261 = vmatprep.mubr.f32.mxu0 0.0
      %4262 = vmatmul.mubr.f32.gmra.mrb[0].mxu0 %v4129
      %v4263 = vpop.f32.mrb[0].mxu0
      %v4264 = vadd.f32 0.0, %v4263
      %v4265 = vpop.f32.mrb[0].mxu0
      %4266 = vmatprep.mubr.f32.mxu0 0.0
      %4267 = vmatmul.mubr.f32.gmra.mrb[0].mxu0 %v4132
      %v4268 = vpop.f32.mrb[0].mxu0
      %v4269 = vadd.f32 0.0, %v4268
      %v4270 = vpop.f32.mrb[0].mxu0
      %4271 = vmatprep.mubr.f32.mxu0 0.0
      %4272 = vmatmul.mubr.f32.gmra.mrb[0].mxu0 %v4135
      %v4273 = vpop.f32.mrb[0].mxu0
      %v4274 = vadd.f32 0.0, %v4273
      %v4275 = vpop.f32.mrb[0].mxu0
      %4276 = vmatprep.mubr.f32.mxu0 0.0
      %4277 = vmatmul.mubr.f32.gmra.mrb[0].mxu0 %v4138
      %v4278 = vpop.f32.mrb[0].mxu0
      %v4279 = vadd.f32 0.0, %v4278
      %v4280 = vpop.f32.mrb[0].mxu0
      %4281 = vmatprep.mubr.f32.mxu0 0.0
      %4282 = vmatmul.mubr.f32.gmra.mrb[0].mxu0 %v4141
      %v4283 = vpop.f32.mrb[0].mxu0
      %v4284 = vadd.f32 0.0, %v4283
      %v4285 = vpop.f32.mrb[0].mxu0
      %4286 = vmatprep.mubr.f32.mxu0 0.0
      %4287 = vmatmul.mubr.f32.gmra.mrb[0].mxu0 %v4144
      %v4288 = vpop.f32.mrb[0].mxu0
      %v4289 = vadd.f32 0.0, %v4288
      %v4290 = vpop.f32.mrb[0].mxu0
      %4291 = vmatprep.mubr.f32.mxu0 0.0
      %4292 = vmatmul.mubr.f32.gmra.mrb[0].mxu0 %v4147
      %v4293 = vpop.f32.mrb[0].mxu0
      %v4294 = vadd.f32 0.0, %v4293
      %v4295 = vpop.f32.mrb[0].mxu0
      %4296 = vdwg.mxu0
      %v4297 = vadd.f32 %v3940, %v4219
      %v4298 = vadd.f32 %v3941, %v4224
      %v4299 = vadd.f32 %v3942, %v4229
      %v4300 = vadd.f32 %v3943, %v4234
      %v4301 = vadd.f32 %v3944, %v4239
      %v4302 = vadd.f32 %v3945, %v4244
      %v4303 = vadd.f32 %v3946, %v4249
      %v4304 = vadd.f32 %v3947, %v4254
      %v4305 = vadd.f32 %v3948, %v4259
      %v4306 = vadd.f32 %v3949, %v4264
      %v4307 = vadd.f32 %v3950, %v4269
      %v4308 = vadd.f32 %v3951, %v4274
      %v4309 = vadd.f32 %v3952, %v4279
      %v4310 = vadd.f32 %v3953, %v4284
      %v4311 = vadd.f32 %v3954, %v4289
      %v4312 = vadd.f32 %v3955, %v4294
      %v4313 = vlaneseq
      %v4314 = vshrl.u32 %v4313, 7
      %v4315 = vsub.s32 5, %v4314
      %v4316 = vrot.slane %v581, %v4315
      %v4317 = vmul.f32 %v599, %v4316
      %v4318 = vmul.f32 %v600, %v4316
      %v4319 = vmul.f32 %v601, %v4316
      %v4320 = vmul.f32 %v602, %v4316
      %v4321 = vsel %vm880, %v4317, 0.0
      %4322 = vadd.xlane.f32.xlu0 %v4321
      %v4323 = vpop.xlane.xlu0 %4322
      %v4324 = vsel %vm880, %v4318, 0.0
      %4325 = vadd.xlane.f32.xlu0 %v4324
      %v4326 = vpop.xlane.xlu0 %4325
      %v4327 = vsel %vm880, %v4319, 0.0
      %4328 = vadd.xlane.f32.xlu0 %v4327
      %v4329 = vpop.xlane.xlu0 %4328
      %v4330 = vsel %vm1239, %v4320, 0.0
      %4331 = vadd.xlane.f32.xlu0 %v4330
      %v4332 = vpop.xlane.xlu0 %4331
      %v4333 = vlaneseq
      %v4334 = vshrl.u32 %v4333, 7
      %v4335 = vsub.s32 5, %v4334
      %v4336 = vrot.slane %v504, %v4335
      %v4337 = vsub.f32 %v4336, %v4323
      %v4338 = vsub.f32 %v4336, %v4326
      %v4339 = vsub.f32 %v4336, %v4329
      %v4340 = vsub.f32 %v4336, %v4332
      %v4341 = vtanh.pop %v4337
      %v4342 = vtanh.pop %v4338
      %v4343 = vtanh.pop %v4339
      %v4344 = vtanh.pop %v4340
      %s4345 = scalar_lea.vmem %s8, 640
      %v4346 = vld [vmem:[%s4345] sm:$0xff]
      %v4347 = vld [vmem:[%s4345 + $0x8] sm:$0xff]
      %v4348 = vld [vmem:[%s4345 + $0x10] sm:$0xff]
      %v4349 = vld [vmem:[%s4345 + $0x18] sm:$0xff]
      %v4350 = vld [vmem:[%s4345 + $0x20] sm:$0xff]
      %v4351 = vld [vmem:[%s4345 + $0x28] sm:$0xff]
      %v4352 = vld [vmem:[%s4345 + $0x30] sm:$0xff]
      %v4353 = vld [vmem:[%s4345 + $0x38] sm:$0xff]
      %v4354 = vld [vmem:[%s4345 + $0x40] sm:$0xff]
      %v4355 = vld [vmem:[%s4345 + $0x48] sm:$0xff]
      %v4356 = vld [vmem:[%s4345 + $0x50] sm:$0xff]
      %v4357 = vld [vmem:[%s4345 + $0x58] sm:$0xff]
      %v4358 = vld [vmem:[%s4345 + $0x60] sm:$0xff]
      %v4359 = vld [vmem:[%s4345 + $0x68] sm:$0xff]
      %v4360 = vld [vmem:[%s4345 + $0x70] sm:$0xff]
      %v4361 = vld [vmem:[%s4345 + $0x78] sm:$0xff]
      %4363 = vset.pattern.permute.xlu0 0
      %4364 = vperm.xlu0 %4363, %v4346
      %v4365 = vpop.permute.xlu0 %4364
      %4368 = vset.pattern.permute.xlu0 0
      %4369 = vperm.xlu0 %4368, %v4347
      %v4370 = vpop.permute.xlu0 %4369
      %4373 = vset.pattern.permute.xlu0 0
      %4374 = vperm.xlu0 %4373, %v4348
      %v4375 = vpop.permute.xlu0 %4374
      %4378 = vset.pattern.permute.xlu0 0
      %4379 = vperm.xlu0 %4378, %v4349
      %v4380 = vpop.permute.xlu0 %4379
      %4383 = vset.pattern.permute.xlu0 0
      %4384 = vperm.xlu0 %4383, %v4350
      %v4385 = vpop.permute.xlu0 %4384
      %4388 = vset.pattern.permute.xlu0 0
      %4389 = vperm.xlu0 %4388, %v4351
      %v4390 = vpop.permute.xlu0 %4389
      %4393 = vset.pattern.permute.xlu0 0
      %4394 = vperm.xlu0 %4393, %v4352
      %v4395 = vpop.permute.xlu0 %4394
      %4398 = vset.pattern.permute.xlu0 0
      %4399 = vperm.xlu0 %4398, %v4353
      %v4400 = vpop.permute.xlu0 %4399
      %4403 = vset.pattern.permute.xlu0 0
      %4404 = vperm.xlu0 %4403, %v4354
      %v4405 = vpop.permute.xlu0 %4404
      %4408 = vset.pattern.permute.xlu0 0
      %4409 = vperm.xlu0 %4408, %v4355
      %v4410 = vpop.permute.xlu0 %4409
      %4413 = vset.pattern.permute.xlu0 0
      %4414 = vperm.xlu0 %4413, %v4356
      %v4415 = vpop.permute.xlu0 %4414
      %4418 = vset.pattern.permute.xlu0 0
      %4419 = vperm.xlu0 %4418, %v4357
      %v4420 = vpop.permute.xlu0 %4419
      %4423 = vset.pattern.permute.xlu0 0
      %4424 = vperm.xlu0 %4423, %v4358
      %v4425 = vpop.permute.xlu0 %4424
      %4428 = vset.pattern.permute.xlu0 0
      %4429 = vperm.xlu0 %4428, %v4359
      %v4430 = vpop.permute.xlu0 %4429
      %4433 = vset.pattern.permute.xlu0 0
      %4434 = vperm.xlu0 %4433, %v4360
      %v4435 = vpop.permute.xlu0 %4434
      %4438 = vset.pattern.permute.xlu0 0
      %4439 = vperm.xlu0 %4438, %v4361
      %v4440 = vpop.permute.xlu0 %4439
      %v4442 = vmul.f32 %v4365, %v3484
      %v4443 = vmul.f32 %v4370, %v3489
      %v4444 = vmul.f32 %v4375, %v3494
      %v4445 = vmul.f32 %v4380, %v3499
      %v4446 = vmul.f32 %v4385, %v3504
      %v4447 = vmul.f32 %v4390, %v3509
      %v4448 = vmul.f32 %v4395, %v3514
      %v4449 = vmul.f32 %v4400, %v3519
      %v4450 = vmul.f32 %v4405, %v3524
      %v4451 = vmul.f32 %v4410, %v3529
      %v4452 = vmul.f32 %v4415, %v3534
      %v4453 = vmul.f32 %v4420, %v3539
      %v4454 = vmul.f32 %v4425, %v3544
      %v4455 = vmul.f32 %v4430, %v3549
      %v4456 = vmul.f32 %v4435, %v3554
      %v4457 = vmul.f32 %v4440, %v3559
      %v4459 = vsel %vm880, %v4442, 0
      %v4462 = vsel %vm880, %v4443, 0
      %v4465 = vsel %vm880, %v4444, 0
      %v4468 = vsel %vm880, %v4445, 0
      %v4471 = vsel %vm880, %v4446, 0
      %v4474 = vsel %vm880, %v4447, 0
      %v4477 = vsel %vm880, %v4448, 0
      %v4480 = vsel %vm880, %v4449, 0
      %v4483 = vsel %vm880, %v4450, 0
      %v4486 = vsel %vm880, %v4451, 0
      %v4489 = vsel %vm880, %v4452, 0
      %v4492 = vsel %vm880, %v4453, 0
      %v4495 = vsel %vm880, %v4454, 0
      %v4498 = vsel %vm880, %v4455, 0
      %v4501 = vsel %vm880, %v4456, 0
      %v4504 = vsel %vm880, %v4457, 0
      %v4507 = vsel %vm1073, %v4344, 0
      %4509 = vmatprep.subr.mxu0 0.0
      %4510 = vmatpush1.msra.mxu0 %v4341
      %4511 = vmatprep.subr.mxu0 0.0
      %4512 = vmatpush1.msra.mxu0 %v4342
      %4513 = vmatprep.subr.mxu0 0.0
      %4514 = vmatpush1.msra.mxu0 %v4343
      %4515 = vmatprep.subr.mxu0 0.0
      %4516 = vmatpush1.msra.mxu0 %v4507
      %4517 = vmatprep.subr.mxu0 0.0
      %4518 = vmatpush1.msra.mxu0 0.0
      %4519 = vmatprep.subr.mxu0 0.0
      %4520 = vmatpush1.msra.mxu0 0.0
      %4521 = vmatprep.subr.mxu0 0.0
      %4522 = vmatpush1.msra.mxu0 0.0
      %4523 = vmatprep.subr.mxu0 0.0
      %4524 = vmatpush1.msra.mxu0 0.0
      %4525 = vmatprep.subr.mxu0 0.0
      %4526 = vmatpush1.msra.mxu0 0.0
      %4527 = vmatprep.subr.mxu0 0.0
      %4528 = vmatpush1.msra.mxu0 0.0
      %4529 = vmatprep.subr.mxu0 0.0
      %4530 = vmatpush1.msra.mxu0 0.0
      %4531 = vmatprep.subr.mxu0 0.0
      %4532 = vmatpush1.msra.mxu0 0.0
      %4533 = vmatprep.subr.mxu0 0.0
      %4534 = vmatpush1.msra.mxu0 0.0
      %4535 = vmatprep.subr.mxu0 0.0
      %4536 = vmatpush1.msra.mxu0 0.0
      %4537 = vmatprep.subr.mxu0 0.0
      %4538 = vmatpush1.msra.mxu0 0.0
      %4539 = vmatprep.subr.mxu0 0.0
      %4540 = vmatpush1.msra.mxu0 0.0
      %4541 = vmatprep.subr.mxu0 0.0
      %4542 = vmatpush1.msra.mxu0 0.0
      %4543 = vmatprep.subr.mxu0 0.0
      %4544 = vmatpush1.msra.mxu0 0.0
      %4545 = vmatprep.subr.mxu0 0.0
      %4546 = vmatpush1.msra.mxu0 0.0
      %4547 = vmatprep.subr.mxu0 0.0
      %4548 = vmatpush1.msra.mxu0 0.0
      %4549 = vmatprep.subr.mxu0 0.0
      %4550 = vmatpush1.msra.mxu0 0.0
      %4551 = vmatprep.subr.mxu0 0.0
      %4552 = vmatpush1.msra.mxu0 0.0
      %4553 = vmatprep.subr.mxu0 0.0
      %4554 = vmatpush1.msra.mxu0 0.0
      %4555 = vmatprep.subr.mxu0 0.0
      %4556 = vmatpush1.msra.mxu0 0.0
      %4557 = vmatprep.subr.mxu0 0.0
      %4558 = vmatpush1.msra.mxu0 0.0
      %4559 = vmatprep.subr.mxu0 0.0
      %4560 = vmatpush1.msra.mxu0 0.0
      %4561 = vmatprep.subr.mxu0 0.0
      %4562 = vmatpush1.msra.mxu0 0.0
      %4563 = vmatprep.subr.mxu0 0.0
      %4564 = vmatpush1.msra.mxu0 0.0
      %4565 = vmatprep.subr.mxu0 0.0
      %4566 = vmatpush1.msra.mxu0 0.0
      %4567 = vmatprep.subr.mxu0 0.0
      %4568 = vmatpush1.msra.mxu0 0.0
      %4569 = vmatprep.subr.mxu0 0.0
      %4570 = vmatpush1.msra.mxu0 0.0
      %4571 = vmatprep.subr.mxu0 0.0
      %4572 = vmatpush1.msra.mxu0 0.0
      %4573 = vmatprep.mubr.f32.mxu0 0.0
      %4574 = vmatmul.mubr.f32.gmra.mrb[0].mxu0 %v4459
      %v4575 = vpop.f32.mrb[0].mxu0
      %v4576 = vadd.f32 0.0, %v4575
      %v4577 = vpop.f32.mrb[0].mxu0
      %4578 = vmatprep.mubr.f32.mxu0 0.0
      %4579 = vmatmul.mubr.f32.gmra.mrb[0].mxu0 %v4462
      %v4580 = vpop.f32.mrb[0].mxu0
      %v4581 = vadd.f32 0.0, %v4580
      %v4582 = vpop.f32.mrb[0].mxu0
      %4583 = vmatprep.mubr.f32.mxu0 0.0
      %4584 = vmatmul.mubr.f32.gmra.mrb[0].mxu0 %v4465
      %v4585 = vpop.f32.mrb[0].mxu0
      %v4586 = vadd.f32 0.0, %v4585
      %v4587 = vpop.f32.mrb[0].mxu0
      %4588 = vmatprep.mubr.f32.mxu0 0.0
      %4589 = vmatmul.mubr.f32.gmra.mrb[0].mxu0 %v4468
      %v4590 = vpop.f32.mrb[0].mxu0
      %v4591 = vadd.f32 0.0, %v4590
      %v4592 = vpop.f32.mrb[0].mxu0
      %4593 = vmatprep.mubr.f32.mxu0 0.0
      %4594 = vmatmul.mubr.f32.gmra.mrb[0].mxu0 %v4471
      %v4595 = vpop.f32.mrb[0].mxu0
      %v4596 = vadd.f32 0.0, %v4595
      %v4597 = vpop.f32.mrb[0].mxu0
      %4598 = vmatprep.mubr.f32.mxu0 0.0
      %4599 = vmatmul.mubr.f32.gmra.mrb[0].mxu0 %v4474
      %v4600 = vpop.f32.mrb[0].mxu0
      %v4601 = vadd.f32 0.0, %v4600
      %v4602 = vpop.f32.mrb[0].mxu0
      %4603 = vmatprep.mubr.f32.mxu0 0.0
      %4604 = vmatmul.mubr.f32.gmra.mrb[0].mxu0 %v4477
      %v4605 = vpop.f32.mrb[0].mxu0
      %v4606 = vadd.f32 0.0, %v4605
      %v4607 = vpop.f32.mrb[0].mxu0
      %4608 = vmatprep.mubr.f32.mxu0 0.0
      %4609 = vmatmul.mubr.f32.gmra.mrb[0].mxu0 %v4480
      %v4610 = vpop.f32.mrb[0].mxu0
      %v4611 = vadd.f32 0.0, %v4610
      %v4612 = vpop.f32.mrb[0].mxu0
      %4613 = vmatprep.mubr.f32.mxu0 0.0
      %4614 = vmatmul.mubr.f32.gmra.mrb[0].mxu0 %v4483
      %v4615 = vpop.f32.mrb[0].mxu0
      %v4616 = vadd.f32 0.0, %v4615
      %v4617 = vpop.f32.mrb[0].mxu0
      %4618 = vmatprep.mubr.f32.mxu0 0.0
      %4619 = vmatmul.mubr.f32.gmra.mrb[0].mxu0 %v4486
      %v4620 = vpop.f32.mrb[0].mxu0
      %v4621 = vadd.f32 0.0, %v4620
      %v4622 = vpop.f32.mrb[0].mxu0
      %4623 = vmatprep.mubr.f32.mxu0 0.0
      %4624 = vmatmul.mubr.f32.gmra.mrb[0].mxu0 %v4489
      %v4625 = vpop.f32.mrb[0].mxu0
      %v4626 = vadd.f32 0.0, %v4625
      %v4627 = vpop.f32.mrb[0].mxu0
      %4628 = vmatprep.mubr.f32.mxu0 0.0
      %4629 = vmatmul.mubr.f32.gmra.mrb[0].mxu0 %v4492
      %v4630 = vpop.f32.mrb[0].mxu0
      %v4631 = vadd.f32 0.0, %v4630
      %v4632 = vpop.f32.mrb[0].mxu0
      %4633 = vmatprep.mubr.f32.mxu0 0.0
      %4634 = vmatmul.mubr.f32.gmra.mrb[0].mxu0 %v4495
      %v4635 = vpop.f32.mrb[0].mxu0
      %v4636 = vadd.f32 0.0, %v4635
      %v4637 = vpop.f32.mrb[0].mxu0
      %4638 = vmatprep.mubr.f32.mxu0 0.0
      %4639 = vmatmul.mubr.f32.gmra.mrb[0].mxu0 %v4498
      %v4640 = vpop.f32.mrb[0].mxu0
      %v4641 = vadd.f32 0.0, %v4640
      %v4642 = vpop.f32.mrb[0].mxu0
      %4643 = vmatprep.mubr.f32.mxu0 0.0
      %4644 = vmatmul.mubr.f32.gmra.mrb[0].mxu0 %v4501
      %v4645 = vpop.f32.mrb[0].mxu0
      %v4646 = vadd.f32 0.0, %v4645
      %v4647 = vpop.f32.mrb[0].mxu0
      %4648 = vmatprep.mubr.f32.mxu0 0.0
      %4649 = vmatmul.mubr.f32.gmra.mrb[0].mxu0 %v4504
      %v4650 = vpop.f32.mrb[0].mxu0
      %v4651 = vadd.f32 0.0, %v4650
      %v4652 = vpop.f32.mrb[0].mxu0
      %4653 = vdwg.mxu0
      %v4654 = vadd.f32 %v4297, %v4576
      %v4655 = vadd.f32 %v4298, %v4581
      %v4656 = vadd.f32 %v4299, %v4586
      %v4657 = vadd.f32 %v4300, %v4591
      %v4658 = vadd.f32 %v4301, %v4596
      %v4659 = vadd.f32 %v4302, %v4601
      %v4660 = vadd.f32 %v4303, %v4606
      %v4661 = vadd.f32 %v4304, %v4611
      %v4662 = vadd.f32 %v4305, %v4616
      %v4663 = vadd.f32 %v4306, %v4621
      %v4664 = vadd.f32 %v4307, %v4626
      %v4665 = vadd.f32 %v4308, %v4631
      %v4666 = vadd.f32 %v4309, %v4636
      %v4667 = vadd.f32 %v4310, %v4641
      %v4668 = vadd.f32 %v4311, %v4646
      %v4669 = vadd.f32 %v4312, %v4651
      %v4670 = vld [vmem:[%s10] sm:$0xff]
      %v4671 = vld [vmem:[%s10 + $0x8] sm:$0xff]
      %v4672 = vld [vmem:[%s10 + $0x10] sm:$0xff]
      %v4673 = vld [vmem:[%s10 + $0x18] sm:$0xff]
      %v4674 = vld [vmem:[%s10 + $0x20] sm:$0xff]
      %v4675 = vld [vmem:[%s10 + $0x28] sm:$0xff]
      %v4676 = vld [vmem:[%s10 + $0x30] sm:$0xff]
      %v4677 = vld [vmem:[%s10 + $0x38] sm:$0xff]
      %v4678 = vld [vmem:[%s10 + $0x40] sm:$0xff]
      %v4679 = vld [vmem:[%s10 + $0x48] sm:$0xff]
      %v4680 = vld [vmem:[%s10 + $0x50] sm:$0xff]
      %v4681 = vld [vmem:[%s10 + $0x58] sm:$0xff]
      %v4682 = vld [vmem:[%s10 + $0x60] sm:$0xff]
      %v4683 = vld [vmem:[%s10 + $0x68] sm:$0xff]
      %v4684 = vld [vmem:[%s10 + $0x70] sm:$0xff]
      %v4685 = vld [vmem:[%s10 + $0x78] sm:$0xff]
      %4687 = vset.pattern.permute.xlu0 0
      %4688 = vperm.xlu0 %4687, %v4670
      %v4689 = vpop.permute.xlu0 %4688
      %4692 = vset.pattern.permute.xlu0 0
      %4693 = vperm.xlu0 %4692, %v4671
      %v4694 = vpop.permute.xlu0 %4693
      %4697 = vset.pattern.permute.xlu0 0
      %4698 = vperm.xlu0 %4697, %v4672
      %v4699 = vpop.permute.xlu0 %4698
      %4702 = vset.pattern.permute.xlu0 0
      %4703 = vperm.xlu0 %4702, %v4673
      %v4704 = vpop.permute.xlu0 %4703
      %4707 = vset.pattern.permute.xlu0 0
      %4708 = vperm.xlu0 %4707, %v4674
      %v4709 = vpop.permute.xlu0 %4708
      %4712 = vset.pattern.permute.xlu0 0
      %4713 = vperm.xlu0 %4712, %v4675
      %v4714 = vpop.permute.xlu0 %4713
      %4717 = vset.pattern.permute.xlu0 0
      %4718 = vperm.xlu0 %4717, %v4676
      %v4719 = vpop.permute.xlu0 %4718
      %4722 = vset.pattern.permute.xlu0 0
      %4723 = vperm.xlu0 %4722, %v4677
      %v4724 = vpop.permute.xlu0 %4723
      %4727 = vset.pattern.permute.xlu0 0
      %4728 = vperm.xlu0 %4727, %v4678
      %v4729 = vpop.permute.xlu0 %4728
      %4732 = vset.pattern.permute.xlu0 0
      %4733 = vperm.xlu0 %4732, %v4679
      %v4734 = vpop.permute.xlu0 %4733
      %4737 = vset.pattern.permute.xlu0 0
      %4738 = vperm.xlu0 %4737, %v4680
      %v4739 = vpop.permute.xlu0 %4738
      %4742 = vset.pattern.permute.xlu0 0
      %4743 = vperm.xlu0 %4742, %v4681
      %v4744 = vpop.permute.xlu0 %4743
      %4747 = vset.pattern.permute.xlu0 0
      %4748 = vperm.xlu0 %4747, %v4682
      %v4749 = vpop.permute.xlu0 %4748
      %4752 = vset.pattern.permute.xlu0 0
      %4753 = vperm.xlu0 %4752, %v4683
      %v4754 = vpop.permute.xlu0 %4753
      %4757 = vset.pattern.permute.xlu0 0
      %4758 = vperm.xlu0 %4757, %v4684
      %v4759 = vpop.permute.xlu0 %4758
      %4762 = vset.pattern.permute.xlu0 0
      %4763 = vperm.xlu0 %4762, %v4685
      %v4764 = vpop.permute.xlu0 %4763
      %v4766 = vmul.f32 %v4654, %v4689
      %v4767 = vmul.f32 %v4655, %v4694
      %v4768 = vmul.f32 %v4656, %v4699
      %v4769 = vmul.f32 %v4657, %v4704
      %v4770 = vmul.f32 %v4658, %v4709
      %v4771 = vmul.f32 %v4659, %v4714
      %v4772 = vmul.f32 %v4660, %v4719
      %v4773 = vmul.f32 %v4661, %v4724
      %v4774 = vmul.f32 %v4662, %v4729
      %v4775 = vmul.f32 %v4663, %v4734
      %v4776 = vmul.f32 %v4664, %v4739
      %v4777 = vmul.f32 %v4665, %v4744
      %v4778 = vmul.f32 %v4666, %v4749
      %v4779 = vmul.f32 %v4667, %v4754
      %v4780 = vmul.f32 %v4668, %v4759
      %v4781 = vmul.f32 %v4669, %v4764
      %v4782 = vld [vmem:[%s11] sm:$0xff]
      %v4783 = vld [vmem:[%s11 + $0x8] sm:$0xff]
      %v4784 = vld [vmem:[%s11 + $0x10] sm:$0xff]
      %v4785 = vld [vmem:[%s11 + $0x18] sm:$0xff]
      %v4786 = vld [vmem:[%s11 + $0x20] sm:$0xff]
      %v4787 = vld [vmem:[%s11 + $0x28] sm:$0xff]
      %v4788 = vld [vmem:[%s11 + $0x30] sm:$0xff]
      %v4789 = vld [vmem:[%s11 + $0x38] sm:$0xff]
      %v4790 = vld [vmem:[%s11 + $0x40] sm:$0xff]
      %v4791 = vld [vmem:[%s11 + $0x48] sm:$0xff]
      %v4792 = vld [vmem:[%s11 + $0x50] sm:$0xff]
      %v4793 = vld [vmem:[%s11 + $0x58] sm:$0xff]
      %v4794 = vld [vmem:[%s11 + $0x60] sm:$0xff]
      %v4795 = vld [vmem:[%s11 + $0x68] sm:$0xff]
      %v4796 = vld [vmem:[%s11 + $0x70] sm:$0xff]
      %v4797 = vld [vmem:[%s11 + $0x78] sm:$0xff]
      %4799 = vset.pattern.permute.xlu0 0
      %4800 = vperm.xlu0 %4799, %v4782
      %v4801 = vpop.permute.xlu0 %4800
      %4804 = vset.pattern.permute.xlu0 0
      %4805 = vperm.xlu0 %4804, %v4783
      %v4806 = vpop.permute.xlu0 %4805
      %4809 = vset.pattern.permute.xlu0 0
      %4810 = vperm.xlu0 %4809, %v4784
      %v4811 = vpop.permute.xlu0 %4810
      %4814 = vset.pattern.permute.xlu0 0
      %4815 = vperm.xlu0 %4814, %v4785
      %v4816 = vpop.permute.xlu0 %4815
      %4819 = vset.pattern.permute.xlu0 0
      %4820 = vperm.xlu0 %4819, %v4786
      %v4821 = vpop.permute.xlu0 %4820
      %4824 = vset.pattern.permute.xlu0 0
      %4825 = vperm.xlu0 %4824, %v4787
      %v4826 = vpop.permute.xlu0 %4825
      %4829 = vset.pattern.permute.xlu0 0
      %4830 = vperm.xlu0 %4829, %v4788
      %v4831 = vpop.permute.xlu0 %4830
      %4834 = vset.pattern.permute.xlu0 0
      %4835 = vperm.xlu0 %4834, %v4789
      %v4836 = vpop.permute.xlu0 %4835
      %4839 = vset.pattern.permute.xlu0 0
      %4840 = vperm.xlu0 %4839, %v4790
      %v4841 = vpop.permute.xlu0 %4840
      %4844 = vset.pattern.permute.xlu0 0
      %4845 = vperm.xlu0 %4844, %v4791
      %v4846 = vpop.permute.xlu0 %4845
      %4849 = vset.pattern.permute.xlu0 0
      %4850 = vperm.xlu0 %4849, %v4792
      %v4851 = vpop.permute.xlu0 %4850
      %4854 = vset.pattern.permute.xlu0 0
      %4855 = vperm.xlu0 %4854, %v4793
      %v4856 = vpop.permute.xlu0 %4855
      %4859 = vset.pattern.permute.xlu0 0
      %4860 = vperm.xlu0 %4859, %v4794
      %v4861 = vpop.permute.xlu0 %4860
      %4864 = vset.pattern.permute.xlu0 0
      %4865 = vperm.xlu0 %4864, %v4795
      %v4866 = vpop.permute.xlu0 %4865
      %4869 = vset.pattern.permute.xlu0 0
      %4870 = vperm.xlu0 %4869, %v4796
      %v4871 = vpop.permute.xlu0 %4870
      %4874 = vset.pattern.permute.xlu0 0
      %4875 = vperm.xlu0 %4874, %v4797
      %v4876 = vpop.permute.xlu0 %4875
      %v4878 = vadd.f32 %v4766, %v4801
      %v4879 = vadd.f32 %v4767, %v4806
      %v4880 = vadd.f32 %v4768, %v4811
      %v4881 = vadd.f32 %v4769, %v4816
      %v4882 = vadd.f32 %v4770, %v4821
      %v4883 = vadd.f32 %v4771, %v4826
      %v4884 = vadd.f32 %v4772, %v4831
      %v4885 = vadd.f32 %v4773, %v4836
      %v4886 = vadd.f32 %v4774, %v4841
      %v4887 = vadd.f32 %v4775, %v4846
      %v4888 = vadd.f32 %v4776, %v4851
      %v4889 = vadd.f32 %v4777, %v4856
      %v4890 = vadd.f32 %v4778, %v4861
      %v4891 = vadd.f32 %v4779, %v4866
      %v4892 = vadd.f32 %v4780, %v4871
      %v4893 = vadd.f32 %v4781, %v4876
      %v4894 = vadd.f32 %v4878, %v414
      %v4895 = vadd.f32 %v4879, %v415
      %v4896 = vadd.f32 %v4880, %v416
      %v4897 = vadd.f32 %v4881, %v417
      %v4898 = vadd.f32 %v4882, %v418
      %v4899 = vadd.f32 %v4883, %v419
      %v4900 = vadd.f32 %v4884, %v420
      %v4901 = vadd.f32 %v4885, %v421
      %v4902 = vadd.f32 %v4886, %v422
      %v4903 = vadd.f32 %v4887, %v423
      %v4904 = vadd.f32 %v4888, %v424
      %v4905 = vadd.f32 %v4889, %v425
      %v4906 = vadd.f32 %v4890, %v426
      %v4907 = vadd.f32 %v4891, %v427
      %v4908 = vadd.f32 %v4892, %v428
      %v4909 = vadd.f32 %v4893, %v429
      %v4910 = vmax.f32 %v4894, 0.0
      %v4911 = vmax.f32 %v4895, 0.0
      %v4912 = vmax.f32 %v4896, 0.0
      %v4913 = vmax.f32 %v4897, 0.0
      %v4914 = vmax.f32 %v4898, 0.0
      %v4915 = vmax.f32 %v4899, 0.0
      %v4916 = vmax.f32 %v4900, 0.0
      %v4917 = vmax.f32 %v4901, 0.0
      %v4918 = vmax.f32 %v4902, 0.0
      %v4919 = vmax.f32 %v4903, 0.0
      %v4920 = vmax.f32 %v4904, 0.0
      %v4921 = vmax.f32 %v4905, 0.0
      %v4922 = vmax.f32 %v4906, 0.0
      %v4923 = vmax.f32 %v4907, 0.0
      %v4924 = vmax.f32 %v4908, 0.0
      %v4925 = vmax.f32 %v4909, 0.0
      %4926 = vst.msk [vmem:[%s413] sm:$0xff] %vm880, %v4910
      %4927 = vst.msk [vmem:[%s413 + $0x8] sm:$0xff] %vm880, %v4911
      %4928 = vst.msk [vmem:[%s413 + $0x10] sm:$0xff] %vm880, %v4912
      %4929 = vst.msk [vmem:[%s413 + $0x18] sm:$0xff] %vm880, %v4913
      %4930 = vst.msk [vmem:[%s413 + $0x20] sm:$0xff] %vm880, %v4914
      %4931 = vst.msk [vmem:[%s413 + $0x28] sm:$0xff] %vm880, %v4915
      %4932 = vst.msk [vmem:[%s413 + $0x30] sm:$0xff] %vm880, %v4916
      %4933 = vst.msk [vmem:[%s413 + $0x38] sm:$0xff] %vm880, %v4917
      %4934 = vst.msk [vmem:[%s413 + $0x40] sm:$0xff] %vm880, %v4918
      %4935 = vst.msk [vmem:[%s413 + $0x48] sm:$0xff] %vm880, %v4919
      %4936 = vst.msk [vmem:[%s413 + $0x50] sm:$0xff] %vm880, %v4920
      %4937 = vst.msk [vmem:[%s413 + $0x58] sm:$0xff] %vm880, %v4921
      %4938 = vst.msk [vmem:[%s413 + $0x60] sm:$0xff] %vm880, %v4922
      %4939 = vst.msk [vmem:[%s413 + $0x68] sm:$0xff] %vm880, %v4923
      %4940 = vst.msk [vmem:[%s413 + $0x70] sm:$0xff] %vm880, %v4924
      %4941 = vst.msk [vmem:[%s413 + $0x78] sm:$0xff] %vm880, %v4925
      %p4942 = scmp.lt.s32.totalorder %s23, 1
      %s4943 = scalar_select %p4942, %s23, 1
      %s4944 = smul.addr %s4943, 16
      %s4945 = smul.addr %s4944, 8
      %s4946 = scalar_lea.vmem %s12, %s4945
      // Predicated region
      $region69: #{tpu_custom_call.1} parent=67 // pred_check
        %p4947 = pneg %p298
      $region70: #{tpu_custom_call.1} parent=67 // pred_check_branch
        %4949 = sbr.rel (%p4947) target = $region72
      $region71: #{tpu_custom_call.1} parent=67 // pred_region
        _
      $region72: #{tpu_custom_call.1} parent=67 // pred_fallthru
        _
    $region68: #{tpu_custom_call.1} parent=5 // pred_fallthru
      _
    %p4950 = scmp.le.s32.totalorder 2, %s18
    // Predicated region
    $region73: #{tpu_custom_call.1} parent=5 // pred_check
      %p4951 = pneg %p4950
    $region74: #{tpu_custom_call.1} parent=5 // pred_check_branch
      %4953 = sbr.rel (%p4951) target = $region76
    $region75: #{tpu_custom_call.1} parent=5 // pred_region
      %s4954 = ssub.s32 %s18, 2
      // Predicated region
      $region77: #{tpu_custom_call.1} parent=75 // pred_check
        %p4955 = pneg %p304
      $region78: #{tpu_custom_call.1} parent=75 // pred_check_branch
        %4957 = sbr.rel (%p4955) target = $region80
      $region79: #{tpu_custom_call.1} parent=75 // pred_region
        %p4958 = scmp.lt.s32.totalorder %s24, 1
        %s4959 = scalar_select %p4958, %s24, 1
        %s4960 = smul.addr %s4959, 16
        %s4961 = smul.addr %s4960, 8
        %s4962 = scalar_lea.vmem %s12, %s4961
      $region80: #{tpu_custom_call.1} parent=75 // pred_fallthru
        _
    $region76: #{tpu_custom_call.1} parent=5 // pred_fallthru
      _
  $region6: #{tpu_custom_call.1} parent=0 // loop_footer
    %s22 = sadd.s32 1, %s18
  $region7: #{tpu_custom_call.1} parent=0 // loop_footer_branch
    %17 = sbr.rel target = $region3
  $region8: #{tpu_custom_call.1} parent=0 // loop_exit
    _

</llo_original>
